<compile_context>
chip_gen: v7x
topology: tpu7x:2x2x1
jax: 0.10.0
libtpu: 0.0.40
codegen_flags: <defaults>
</compile_context>

<pallas_src>
import jax
import jax.numpy as jnp
from jax.experimental import pallas as pl
from jax.experimental.pallas import tpu as pltpu

# Model config (mirrors Net.__init__: hidden_dims = [8, 16, 64, output_size])
INPUT_SIZE = 32
OUTPUT_SIZE = 4
HIDDEN_DIMS = [8, 16, 64, OUTPUT_SIZE]
PACK = 128 // OUTPUT_SIZE        # 32 original rows packed per 128-lane output row


def _round_up(a, b):
    return ((a + b - 1) // b) * b


def mlp_kernel(x_ref, w1_ref, b1_ref, w2_ref, b2_ref,
               w3_ref, b3_ref, w4_ref, b4_ref, o_ref):
    """Fused (Linear+ReLU) x4 on row-packed, lane-dense tiles.

    x_ref:  (tile_r, PACK*INPUT_SIZE)   f32  (32 original rows per packed row)
    w*_ref: block-diagonal kron(I_PACK, W)   bf16
    b*_ref: (1, PACK*out)                    f32
    o_ref:  (tile_r, PACK*OUTPUT_SIZE=128)   f32 (lane-dense output)
    """
    h = x_ref[...]                                   # f32 tile straight from HBM
    for w_ref, b_ref in ((w1_ref, b1_ref), (w2_ref, b2_ref),
                         (w3_ref, b3_ref), (w4_ref, b4_ref)):
        lhs = h.astype(w_ref.dtype)                  # cast to bf16 in-kernel (VPU)
        acc = jnp.dot(lhs, w_ref[...], preferred_element_type=jnp.float32)  # MXU
        h = jnp.maximum(acc + b_ref[...], 0.0)       # bias + ReLU in f32
    o_ref[...] = h


def pack_params(params, compute_dtype=jnp.bfloat16):
    """One-time repack: kron(I_PACK, W) applies the same Linear to each of the
    PACK rows living side-by-side in the lane dimension (total ~3.3 MiB bf16)."""
    eye = jnp.eye(PACK, dtype=jnp.float32)
    packed = []
    for w, b in params:
        w_bd = jnp.kron(eye, w).astype(compute_dtype)                 # (PACK*in, PACK*out)
        b_bd = jnp.tile(b, PACK).reshape(1, -1).astype(jnp.float32)   # (1, PACK*out)
        packed.append((w_bd, b_bd))
    return tuple(packed)


def net_forward(x, packed_params, *, tile_rows=16384):
    """x: (B, T, INPUT_SIZE) float32 -> (B, T, OUTPUT_SIZE) float32."""
    B, T, F = x.shape
    assert F == INPUT_SIZE
    N = B * T

    n_rows = pl.cdiv(N, PACK)                  # packed rows needed
    # Packed-row tile: multiple of 8 (sublane), capped by tile_rows original rows,
    # shrunk for small inputs so there are >= ~4 grid steps when enough work exists
    # (keeps both v7x TensorCores busy).
    cap = max(8, tile_rows // PACK)
    tile_r = max(8, min(cap, _round_up(pl.cdiv(n_rows, 4), 8)))
    n_rows_pad = _round_up(n_rows, tile_r)
    n_pad = n_rows_pad * PACK

    # Free row-major repack: (N, F) -> (n_rows_pad, PACK*F); stays f32 (no cast pass).
    x2d = x.reshape(N, F)
    if n_pad != N:
        x2d = jnp.pad(x2d, ((0, n_pad - N), (0, 0)))
    x_packed = x2d.reshape(n_rows_pad, PACK * F)

    (w1, b1), (w2, b2), (w3, b3), (w4, b4) = packed_params
    const = lambda a: pl.BlockSpec(a.shape, lambda i: (0,) * a.ndim)   # resident weights

    out_packed = pl.pallas_call(
        mlp_kernel,
        out_shape=jax.ShapeDtypeStruct((n_rows_pad, PACK * OUTPUT_SIZE), jnp.float32),
        grid_spec=pltpu.PrefetchScalarGridSpec(
            num_scalar_prefetch=0,
            grid=(n_rows_pad // tile_r,),
            in_specs=[
                pl.BlockSpec((tile_r, PACK * F), lambda i: (i, 0)),
                const(w1), const(b1),
                const(w2), const(b2),
                const(w3), const(b3),
                const(w4), const(b4),
            ],
            out_specs=pl.BlockSpec((tile_r, PACK * OUTPUT_SIZE), lambda i: (i, 0)),
        ),
        compiler_params=pltpu.CompilerParams(
            dimension_semantics=("parallel",),
            vmem_limit_bytes=48 * 1024 * 1024,   # headroom over v5e's 16 MiB scoped default
        ),
    )(x_packed, w1, b1, w2, b2, w3, b3, w4, b4)

    # Free reinterpretation back: (n_rows_pad, 128) -> (n_pad, 4) -> drop padding.
    out = out_packed.reshape(n_pad, OUTPUT_SIZE)[:N]
    return out.reshape(B, T, OUTPUT_SIZE)


def init_params(key):
    """Deterministic synthetic weights; stored as (in, out) so kernel does x @ W."""
    params = []
    in_dim = INPUT_SIZE
    for out_dim in HIDDEN_DIMS:
        key, kw, kb = jax.random.split(key, 3)
        bound = 1.0 / jnp.sqrt(in_dim)
        w = jax.random.uniform(kw, (in_dim, out_dim), jnp.float32, -bound, bound)
        b = jax.random.uniform(kb, (out_dim,), jnp.float32, -bound, bound)
        params.append((w, b))
        in_dim = out_dim
    return params


def reference_forward_f32(x, params):
    """Pure-f32 reference matching the PyTorch module (Linear + ReLU, incl. last)."""
    h = x
    for w, b in params:
        h = jnp.maximum(h @ w + b, 0.0)
    return h


def reference_forward_matched(x, params, compute_dtype=jnp.bfloat16):
    """Reference with the same bf16-in / f32-accumulate precision as the kernel."""
    h = x
    for w, b in params:
        acc = jnp.dot(h.astype(compute_dtype), w.astype(compute_dtype),
                      preferred_element_type=jnp.float32)
        h = jnp.maximum(acc + b, 0.0)
    return h


if __name__ == "__main__":
    key = jax.random.PRNGKey(0)
    key, kx = jax.random.split(key)
    B, T = 2, 8
    x = jax.random.normal(kx, (B, T, INPUT_SIZE), dtype=jnp.float32)

    params = init_params(key)
    packed = pack_params(params)          # one-time weight repack (cache in real use)

    fwd = jax.jit(net_forward)
    out = jax.block_until_ready(fwd(x, packed))
    assert out.shape == (B, T, OUTPUT_SIZE)

    ref_matched = reference_forward_matched(x, params)   # same precision as kernel
    ref_f32 = reference_forward_f32(x, params)           # module semantics in f32

    assert jnp.allclose(out, ref_matched, atol=1e-3, rtol=1e-3)
    assert jnp.allclose(out, ref_f32, atol=5e-2, rtol=5e-2)

    # TODO(synk): the unused `hidden=None` arg / imported LSTM in the PyTorch file has
    # no effect on forward(), so it is intentionally not modeled.
    print("KERNEL_OK")
</pallas_src>

<mosaic_0001>
module attributes {stable_mosaic.version = 11 : i64} {
  func.func @mlp_kernel(%arg0: i32, %arg1: memref<8x1024xf32, #tpu.memory_space<vmem>>, %arg2: memref<1024x256xbf16, #tpu.memory_space<vmem>>, %arg3: memref<1x256xf32, #tpu.memory_space<vmem>>, %arg4: memref<256x512xbf16, #tpu.memory_space<vmem>>, %arg5: memref<1x512xf32, #tpu.memory_space<vmem>>, %arg6: memref<512x2048xbf16, #tpu.memory_space<vmem>>, %arg7: memref<1x2048xf32, #tpu.memory_space<vmem>>, %arg8: memref<2048x128xbf16, #tpu.memory_space<vmem>>, %arg9: memref<1x128xf32, #tpu.memory_space<vmem>>, %arg10: memref<8x128xf32, #tpu.memory_space<vmem>>) attributes {dimension_semantics = [#tpu.dimension_semantics<parallel>], iteration_bounds = array<i64: 1>, scalar_prefetch = 0 : i64, scratch_operands = 0 : i64, tpu.core_type = #tpu.core_type<tc>, window_params = [{transform_indices = @transform_0, window_bounds = array<i64: 8, 1024>}, {pipeline_mode = #tpu.pipeline_mode<synchronous>, transform_indices = @transform_1, window_bounds = array<i64: 1024, 256>}, {pipeline_mode = #tpu.pipeline_mode<synchronous>, transform_indices = @transform_2, window_bounds = array<i64: 1, 256>}, {pipeline_mode = #tpu.pipeline_mode<synchronous>, transform_indices = @transform_3, window_bounds = array<i64: 256, 512>}, {pipeline_mode = #tpu.pipeline_mode<synchronous>, transform_indices = @transform_4, window_bounds = array<i64: 1, 512>}, {pipeline_mode = #tpu.pipeline_mode<synchronous>, transform_indices = @transform_5, window_bounds = array<i64: 512, 2048>}, {pipeline_mode = #tpu.pipeline_mode<synchronous>, transform_indices = @transform_6, window_bounds = array<i64: 1, 2048>}, {pipeline_mode = #tpu.pipeline_mode<synchronous>, transform_indices = @transform_7, window_bounds = array<i64: 2048, 128>}, {pipeline_mode = #tpu.pipeline_mode<synchronous>, transform_indices = @transform_8, window_bounds = array<i64: 1, 128>}, {transform_indices = @transform_9, window_bounds = array<i64: 8, 128>}]} {
    %c0 = arith.constant 0 : index
    %c0_0 = arith.constant 0 : index
    %0 = vector.load %arg1[%c0, %c0_0] : memref<8x1024xf32, #tpu.memory_space<vmem>>, vector<8x1024xf32>
    %1 = arith.truncf %0 : vector<8x1024xf32> to vector<8x1024xbf16>
    %c0_1 = arith.constant 0 : index
    %c0_2 = arith.constant 0 : index
    %2 = vector.load %arg2[%c0_1, %c0_2] : memref<1024x256xbf16, #tpu.memory_space<vmem>>, vector<1024x256xbf16>
    %cst = arith.constant dense<0.000000e+00> : vector<8x256xf32>
    %3 = tpu.matmul %1, %2, %cst {dimension_numbers = #tpu.dot_dimension_numbers<[1], [0], [0], [1], [0, 0, 1, 1], [], []>} : vector<8x1024xbf16>, vector<1024x256xbf16>, vector<8x256xf32> -> vector<8x256xf32>
    %c0_3 = arith.constant 0 : index
    %c0_4 = arith.constant 0 : index
    %4 = vector.load %arg3[%c0_3, %c0_4] : memref<1x256xf32, #tpu.memory_space<vmem>>, vector<1x256xf32>
    %5 = vector.broadcast %4 : vector<1x256xf32> to vector<8x256xf32>
    %6 = arith.addf %3, %5 : vector<8x256xf32>
    %cst_5 = arith.constant 0.000000e+00 : f32
    %7 = vector.broadcast %cst_5 : f32 to vector<8x256xf32>
    %8 = arith.maximumf %6, %7 : vector<8x256xf32>
    %9 = arith.truncf %8 : vector<8x256xf32> to vector<8x256xbf16>
    %c0_6 = arith.constant 0 : index
    %c0_7 = arith.constant 0 : index
    %10 = vector.load %arg4[%c0_6, %c0_7] : memref<256x512xbf16, #tpu.memory_space<vmem>>, vector<256x512xbf16>
    %cst_8 = arith.constant dense<0.000000e+00> : vector<8x512xf32>
    %11 = tpu.matmul %9, %10, %cst_8 {dimension_numbers = #tpu.dot_dimension_numbers<[1], [0], [0], [1], [0, 0, 1, 1], [], []>} : vector<8x256xbf16>, vector<256x512xbf16>, vector<8x512xf32> -> vector<8x512xf32>
    %c0_9 = arith.constant 0 : index
    %c0_10 = arith.constant 0 : index
    %12 = vector.load %arg5[%c0_9, %c0_10] : memref<1x512xf32, #tpu.memory_space<vmem>>, vector<1x512xf32>
    %13 = vector.broadcast %12 : vector<1x512xf32> to vector<8x512xf32>
    %14 = arith.addf %11, %13 : vector<8x512xf32>
    %cst_11 = arith.constant 0.000000e+00 : f32
    %15 = vector.broadcast %cst_11 : f32 to vector<8x512xf32>
    %16 = arith.maximumf %14, %15 : vector<8x512xf32>
    %17 = arith.truncf %16 : vector<8x512xf32> to vector<8x512xbf16>
    %c0_12 = arith.constant 0 : index
    %c0_13 = arith.constant 0 : index
    %18 = vector.load %arg6[%c0_12, %c0_13] : memref<512x2048xbf16, #tpu.memory_space<vmem>>, vector<512x2048xbf16>
    %cst_14 = arith.constant dense<0.000000e+00> : vector<8x2048xf32>
    %19 = tpu.matmul %17, %18, %cst_14 {dimension_numbers = #tpu.dot_dimension_numbers<[1], [0], [0], [1], [0, 0, 1, 1], [], []>} : vector<8x512xbf16>, vector<512x2048xbf16>, vector<8x2048xf32> -> vector<8x2048xf32>
    %c0_15 = arith.constant 0 : index
    %c0_16 = arith.constant 0 : index
    %20 = vector.load %arg7[%c0_15, %c0_16] : memref<1x2048xf32, #tpu.memory_space<vmem>>, vector<1x2048xf32>
    %21 = vector.broadcast %20 : vector<1x2048xf32> to vector<8x2048xf32>
    %22 = arith.addf %19, %21 : vector<8x2048xf32>
    %cst_17 = arith.constant 0.000000e+00 : f32
    %23 = vector.broadcast %cst_17 : f32 to vector<8x2048xf32>
    %24 = arith.maximumf %22, %23 : vector<8x2048xf32>
    %25 = arith.truncf %24 : vector<8x2048xf32> to vector<8x2048xbf16>
    %c0_18 = arith.constant 0 : index
    %c0_19 = arith.constant 0 : index
    %26 = vector.load %arg8[%c0_18, %c0_19] : memref<2048x128xbf16, #tpu.memory_space<vmem>>, vector<2048x128xbf16>
    %cst_20 = arith.constant dense<0.000000e+00> : vector<8x128xf32>
    %27 = tpu.matmul %25, %26, %cst_20 {dimension_numbers = #tpu.dot_dimension_numbers<[1], [0], [0], [1], [0, 0, 1, 1], [], []>} : vector<8x2048xbf16>, vector<2048x128xbf16>, vector<8x128xf32> -> vector<8x128xf32>
    %c0_21 = arith.constant 0 : index
    %c0_22 = arith.constant 0 : index
    %28 = vector.load %arg9[%c0_21, %c0_22] : memref<1x128xf32, #tpu.memory_space<vmem>>, vector<1x128xf32>
    %29 = vector.broadcast %28 : vector<1x128xf32> to vector<8x128xf32>
    %30 = arith.addf %27, %29 : vector<8x128xf32>
    %cst_23 = arith.constant 0.000000e+00 : f32
    %31 = vector.broadcast %cst_23 : f32 to vector<8x128xf32>
    %32 = arith.maximumf %30, %31 : vector<8x128xf32>
    %c0_24 = arith.constant 0 : index
    %c0_25 = arith.constant 0 : index
    %33 = vector.load %arg10[%c0_24, %c0_25] : memref<8x128xf32, #tpu.memory_space<vmem>>, vector<8x128xf32>
    tpu.vector_store %arg10[%c0_24, %c0_25], %32 {strides = array<i32>} : memref<8x128xf32, #tpu.memory_space<vmem>>, vector<8x128xf32>,
    return
  }
  func.func @transform_0(%arg0: i32) -> (i32, i32) {
    %c0_i32 = arith.constant 0 : i32
    %c0_i32_0 = arith.constant 0 : i32
    return %arg0, %c0_i32 : i32, i32
  }
  func.func @transform_1(%arg0: i32) -> (i32, i32) {
    %c0_i32 = arith.constant 0 : i32
    %c0_i32_0 = arith.constant 0 : i32
    %c0_i32_1 = arith.constant 0 : i32
    return %c0_i32, %c0_i32_0 : i32, i32
  }
  func.func @transform_2(%arg0: i32) -> (i32, i32) {
    %c0_i32 = arith.constant 0 : i32
    %c0_i32_0 = arith.constant 0 : i32
    %c0_i32_1 = arith.constant 0 : i32
    return %c0_i32, %c0_i32_0 : i32, i32
  }
  func.func @transform_3(%arg0: i32) -> (i32, i32) {
    %c0_i32 = arith.constant 0 : i32
    %c0_i32_0 = arith.constant 0 : i32
    %c0_i32_1 = arith.constant 0 : i32
    return %c0_i32, %c0_i32_0 : i32, i32
  }
  func.func @transform_4(%arg0: i32) -> (i32, i32) {
    %c0_i32 = arith.constant 0 : i32
    %c0_i32_0 = arith.constant 0 : i32
    %c0_i32_1 = arith.constant 0 : i32
    return %c0_i32, %c0_i32_0 : i32, i32
  }
  func.func @transform_5(%arg0: i32) -> (i32, i32) {
    %c0_i32 = arith.constant 0 : i32
    %c0_i32_0 = arith.constant 0 : i32
    %c0_i32_1 = arith.constant 0 : i32
    return %c0_i32, %c0_i32_0 : i32, i32
  }
  func.func @transform_6(%arg0: i32) -> (i32, i32) {
    %c0_i32 = arith.constant 0 : i32
    %c0_i32_0 = arith.constant 0 : i32
    %c0_i32_1 = arith.constant 0 : i32
    return %c0_i32, %c0_i32_0 : i32, i32
  }
  func.func @transform_7(%arg0: i32) -> (i32, i32) {
    %c0_i32 = arith.constant 0 : i32
    %c0_i32_0 = arith.constant 0 : i32
    %c0_i32_1 = arith.constant 0 : i32
    return %c0_i32, %c0_i32_0 : i32, i32
  }
  func.func @transform_8(%arg0: i32) -> (i32, i32) {
    %c0_i32 = arith.constant 0 : i32
    %c0_i32_0 = arith.constant 0 : i32
    %c0_i32_1 = arith.constant 0 : i32
    return %c0_i32, %c0_i32_0 : i32, i32
  }
  func.func @transform_9(%arg0: i32) -> (i32, i32) {
    %c0_i32 = arith.constant 0 : i32
    %c0_i32_0 = arith.constant 0 : i32
    return %arg0, %c0_i32 : i32, i32
  }
}

</mosaic_0001>

<llo_original>
// kernel: net_forward.1
$region0: #{net_forward.1}
  #allocation0 [shape = 'u32[]', space=smem, size = 0x4, offset = 0x4, fixed_abs, tag = 'smem constant byte address 0x4 - core index']
  #allocation1 [shape = 'u32[144,128]{1,0:T(1,128)}', space=vmem, size = 0x12000, scoped, tag = 'internal scratch']
  %s0 = inlined_call_operand.vmem [shape: f32[8,1024], index: 0, kind: input, shape index: {}]
  %s1 = inlined_call_operand.hbm [shape: bf16[1024,256], index: 1, kind: input, shape index: {}]
  %s2 = inlined_call_operand.hbm [shape: f32[1,256], index: 2, kind: input, shape index: {}]
  %s3 = inlined_call_operand.hbm [shape: bf16[256,512], index: 3, kind: input, shape index: {}]
  %s4 = inlined_call_operand.hbm [shape: f32[1,512], index: 4, kind: input, shape index: {}]
  %s5 = inlined_call_operand.hbm [shape: bf16[512,2048], index: 5, kind: input, shape index: {}]
  %s6 = inlined_call_operand.hbm [shape: f32[1,2048], index: 6, kind: input, shape index: {}]
  %s7 = inlined_call_operand.hbm [shape: bf16[2048,128], index: 7, kind: input, shape index: {}]
  %s8 = inlined_call_operand.hbm [shape: f32[1,128], index: 8, kind: input, shape index: {}]
  %s9 = inlined_call_operand.vmem [shape: f32[8,128], index: 9, kind: output, shape index: {}]
  %s10 = sld [smem:[#allocation0]]
  $region78: #{net_forward.1} parent=0
    _
  %s12 = ssub.s32 1, %s10
  %s13 = scalar_select 0, %s12, %s10
  $region1: #{net_forward.1} parent=0
    #allocation2 [shape = 'u8[524288]{0}', space=vmem, size = 0x80000, scoped, tag = 'input window, operand 1, single buffered']
    #allocation3 [shape = 's32[1]{0}', space=sflag, size = 0x4, scoped, tag = 'scoped memory for net_forward.1']
    #allocation4 [shape = 'u8[1024]{0}', space=vmem, size = 0x400, scoped, tag = 'input window, operand 2, single buffered']
    #allocation5 [shape = 's32[1]{0}', space=sflag, size = 0x4, scoped, tag = 'scoped memory for net_forward.1']
    #allocation6 [shape = 'u8[262144]{0}', space=vmem, size = 0x40000, scoped, tag = 'input window, operand 3, single buffered']
    #allocation7 [shape = 'u8[2048]{0}', space=vmem, size = 0x800, scoped, tag = 'input window, operand 4, single buffered']
    #allocation8 [shape = 's32[1]{0}', space=sflag, size = 0x4, scoped, tag = 'scoped memory for net_forward.1']
    #allocation9 [shape = 'u8[2097152]{0}', space=vmem, size = 0x200000, scoped, tag = 'input window, operand 5, single buffered']
    #allocation10 [shape = 'u8[8192]{0}', space=vmem, size = 0x2000, scoped, tag = 'input window, operand 6, single buffered']
    #allocation11 [shape = 's32[1]{0}', space=sflag, size = 0x4, scoped, tag = 'scoped memory for net_forward.1']
    #allocation12 [shape = 'u8[524288]{0}', space=vmem, size = 0x80000, scoped, tag = 'input window, operand 7, single buffered']
    #allocation13 [shape = 'u8[512]{0}', space=vmem, size = 0x400, scoped, tag = 'input window, operand 8, single buffered']
    #allocation14 [shape = 's32[1]{0}', space=sflag, size = 0x4, scoped, tag = 'scoped memory for net_forward.1']
    %14 = vsyncpa [#allocation3], 0
    %15 = vsyncpa [#allocation5], 0
    %16 = vsyncpa [#allocation8], 0
    %17 = vsyncpa [#allocation11], 0
    %18 = vsyncpa [#allocation14], 0
    // Predicated region
    $region2: #{net_forward.1} parent=1 // pred_check
      _
    $region3: #{net_forward.1} parent=1 // pred_check_branch
      %20 = sbr.rel (0) target = $region5
    $region4: #{net_forward.1} parent=1 // pred_region
      _
    $region5: #{net_forward.1} parent=1 // pred_fallthru
      _
    // Predicated region
    $region6: #{net_forward.1} parent=1 // pred_check
      _
    $region7: #{net_forward.1} parent=1 // pred_check_branch
      %22 = sbr.rel (0) target = $region9
    $region8: #{net_forward.1} parent=1 // pred_region
      %s24 = ssub.s32 16384, 16384
      %25 = vsyncadd [#allocation3], %s24
      %s26 = sshll.u32 [#allocation2], 4
      %s27 = int_to_ptr.vmem [resolvable:$true] %s26
      %32 = dma.hbm_to_vmem [thread:$0]  %s1, 16384, %s27, [#allocation3], 128, 128, 8
    $region9: #{net_forward.1} parent=1 // pred_fallthru
      _
    // Predicated region
    $region10: #{net_forward.1} parent=1 // pred_check
      _
    $region11: #{net_forward.1} parent=1 // pred_check_branch
      %34 = sbr.rel (0) target = $region13
    $region12: #{net_forward.1} parent=1 // pred_region
      %s36 = ssub.s32 32, 32
      %37 = vsyncadd [#allocation5], %s36
      %s39 = sshll.u32 [#allocation4], 4
      %s40 = int_to_ptr.vmem [resolvable:$true] %s39
      %42 = dma.hbm_to_vmem [thread:$0]  %s2, 32, %s40, [#allocation5]
    $region13: #{net_forward.1} parent=1 // pred_fallthru
      _
    // Predicated region
    $region14: #{net_forward.1} parent=1 // pred_check
      _
    $region15: #{net_forward.1} parent=1 // pred_check_branch
      %44 = sbr.rel (0) target = $region17
    $region16: #{net_forward.1} parent=1 // pred_region
      %s46 = ssub.s32 8192, 8192
      %47 = vsyncadd [#allocation5], %s46
      %s48 = sshll.u32 [#allocation6], 4
      %s49 = int_to_ptr.vmem [resolvable:$true] %s48
      %54 = dma.hbm_to_vmem [thread:$0]  %s3, 8192, %s49, [#allocation5], 256, 256, 16
    $region17: #{net_forward.1} parent=1 // pred_fallthru
      _
    // Predicated region
    $region18: #{net_forward.1} parent=1 // pred_check
      _
    $region19: #{net_forward.1} parent=1 // pred_check_branch
      %56 = sbr.rel (0) target = $region21
    $region20: #{net_forward.1} parent=1 // pred_region
      %s58 = ssub.s32 64, 64
      %59 = vsyncadd [#allocation8], %s58
      %s61 = sshll.u32 [#allocation7], 4
      %s62 = int_to_ptr.vmem [resolvable:$true] %s61
      %64 = dma.hbm_to_vmem [thread:$0]  %s4, 64, %s62, [#allocation8]
    $region21: #{net_forward.1} parent=1 // pred_fallthru
      _
    // Predicated region
    $region22: #{net_forward.1} parent=1 // pred_check
      _
    $region23: #{net_forward.1} parent=1 // pred_check_branch
      %66 = sbr.rel (0) target = $region25
    $region24: #{net_forward.1} parent=1 // pred_region
      %s68 = ssub.s32 65536, 65536
      %69 = vsyncadd [#allocation8], %s68
      %s70 = sshll.u32 [#allocation9], 4
      %s71 = int_to_ptr.vmem [resolvable:$true] %s70
      %76 = dma.hbm_to_vmem [thread:$0]  %s5, 65536, %s71, [#allocation8], 1024, 1024, 64
    $region25: #{net_forward.1} parent=1 // pred_fallthru
      _
    // Predicated region
    $region26: #{net_forward.1} parent=1 // pred_check
      _
    $region27: #{net_forward.1} parent=1 // pred_check_branch
      %78 = sbr.rel (0) target = $region29
    $region28: #{net_forward.1} parent=1 // pred_region
      %s80 = ssub.s32 256, 256
      %81 = vsyncadd [#allocation11], %s80
      %s83 = sshll.u32 [#allocation10], 4
      %s84 = int_to_ptr.vmem [resolvable:$true] %s83
      %86 = dma.hbm_to_vmem [thread:$0]  %s6, 256, %s84, [#allocation11]
    $region29: #{net_forward.1} parent=1 // pred_fallthru
      _
    // Predicated region
    $region30: #{net_forward.1} parent=1 // pred_check
      _
    $region31: #{net_forward.1} parent=1 // pred_check_branch
      %88 = sbr.rel (0) target = $region33
    $region32: #{net_forward.1} parent=1 // pred_region
      %s90 = ssub.s32 16384, 16384
      %91 = vsyncadd [#allocation11], %s90
      %s92 = sshll.u32 [#allocation12], 4
      %s93 = int_to_ptr.vmem [resolvable:$true] %s92
      %98 = dma.hbm_to_vmem [thread:$0]  %s7, 16384, %s93, [#allocation11], 64, 64, 4
    $region33: #{net_forward.1} parent=1 // pred_fallthru
      _
    // Predicated region
    $region34: #{net_forward.1} parent=1 // pred_check
      _
    $region35: #{net_forward.1} parent=1 // pred_check_branch
      %100 = sbr.rel (0) target = $region37
    $region36: #{net_forward.1} parent=1 // pred_region
      %s102 = ssub.s32 16, 16
      %103 = vsyncadd [#allocation14], %s102
      %s105 = sshll.u32 [#allocation13], 4
      %s106 = int_to_ptr.vmem [resolvable:$true] %s105
      %108 = dma.hbm_to_vmem [thread:$0]  %s8, 16, %s106, [#allocation14]
    $region37: #{net_forward.1} parent=1 // pred_fallthru
      _
    // Predicated region
    $region38: #{net_forward.1} parent=1 // pred_check
      _
    $region39: #{net_forward.1} parent=1 // pred_check_branch
      %110 = sbr.rel (0) target = $region41
    $region40: #{net_forward.1} parent=1 // pred_region
      %111 = dma.done [#allocation3], 16384
    $region41: #{net_forward.1} parent=1 // pred_fallthru
      _
    // Predicated region
    $region42: #{net_forward.1} parent=1 // pred_check
      _
    $region43: #{net_forward.1} parent=1 // pred_check_branch
      %113 = sbr.rel (0) target = $region45
    $region44: #{net_forward.1} parent=1 // pred_region
      %114 = dma.done [#allocation5], 32
    $region45: #{net_forward.1} parent=1 // pred_fallthru
      _
    // Predicated region
    $region46: #{net_forward.1} parent=1 // pred_check
      _
    $region47: #{net_forward.1} parent=1 // pred_check_branch
      %116 = sbr.rel (0) target = $region49
    $region48: #{net_forward.1} parent=1 // pred_region
      %117 = dma.done [#allocation5], 8192
    $region49: #{net_forward.1} parent=1 // pred_fallthru
      _
    // Predicated region
    $region50: #{net_forward.1} parent=1 // pred_check
      _
    $region51: #{net_forward.1} parent=1 // pred_check_branch
      %119 = sbr.rel (0) target = $region53
    $region52: #{net_forward.1} parent=1 // pred_region
      %120 = dma.done [#allocation8], 64
    $region53: #{net_forward.1} parent=1 // pred_fallthru
      _
    // Predicated region
    $region54: #{net_forward.1} parent=1 // pred_check
      _
    $region55: #{net_forward.1} parent=1 // pred_check_branch
      %122 = sbr.rel (0) target = $region57
    $region56: #{net_forward.1} parent=1 // pred_region
      %123 = dma.done [#allocation8], 65536
    $region57: #{net_forward.1} parent=1 // pred_fallthru
      _
    // Predicated region
    $region58: #{net_forward.1} parent=1 // pred_check
      _
    $region59: #{net_forward.1} parent=1 // pred_check_branch
      %125 = sbr.rel (0) target = $region61
    $region60: #{net_forward.1} parent=1 // pred_region
      %126 = dma.done [#allocation11], 256
    $region61: #{net_forward.1} parent=1 // pred_fallthru
      _
    // Predicated region
    $region62: #{net_forward.1} parent=1 // pred_check
      _
    $region63: #{net_forward.1} parent=1 // pred_check_branch
      %128 = sbr.rel (0) target = $region65
    $region64: #{net_forward.1} parent=1 // pred_region
      %129 = dma.done [#allocation11], 16384
    $region65: #{net_forward.1} parent=1 // pred_fallthru
      _
    // Predicated region
    $region66: #{net_forward.1} parent=1 // pred_check
      _
    $region67: #{net_forward.1} parent=1 // pred_check_branch
      %131 = sbr.rel (0) target = $region69
    $region68: #{net_forward.1} parent=1 // pred_region
      %132 = dma.done [#allocation14], 16
    $region69: #{net_forward.1} parent=1 // pred_fallthru
      _
    %v134 = vld [vmem:[%s0] sm:$0xff]
    %v135 = vld [vmem:[%s0 + $0x8] sm:$0xff]
    %v136 = vld [vmem:[%s0 + $0x10] sm:$0xff]
    %v137 = vld [vmem:[%s0 + $0x18] sm:$0xff]
    %v138 = vld [vmem:[%s0 + $0x20] sm:$0xff]
    %v139 = vld [vmem:[%s0 + $0x28] sm:$0xff]
    %v140 = vld [vmem:[%s0 + $0x30] sm:$0xff]
    %v141 = vld [vmem:[%s0 + $0x38] sm:$0xff]
    %v142 = vpack.c.bf16 %v134, %v134
    %v143 = vpack.c.bf16 %v135, %v135
    %v144 = vpack.c.bf16 %v136, %v136
    %v145 = vpack.c.bf16 %v137, %v137
    %v146 = vpack.c.bf16 %v138, %v138
    %v147 = vpack.c.bf16 %v139, %v139
    %v148 = vpack.c.bf16 %v140, %v140
    %v149 = vpack.c.bf16 %v141, %v141
    %v150 = vld [vmem:[#allocation2] sm:$0xff]
    %v151 = vld [vmem:[#allocation2 + $0x8] sm:$0xff]
    %v152 = vld [vmem:[#allocation2 + $0x10] sm:$0xff]
    %v153 = vld [vmem:[#allocation2 + $0x18] sm:$0xff]
    %v154 = vld [vmem:[#allocation2 + $0x20] sm:$0xff]
    %v155 = vld [vmem:[#allocation2 + $0x28] sm:$0xff]
    %v156 = vld [vmem:[#allocation2 + $0x30] sm:$0xff]
    %v157 = vld [vmem:[#allocation2 + $0x38] sm:$0xff]
    %v158 = vld [vmem:[#allocation2 + $0x40] sm:$0xff]
    %v159 = vld [vmem:[#allocation2 + $0x48] sm:$0xff]
    %v160 = vld [vmem:[#allocation2 + $0x50] sm:$0xff]
    %v161 = vld [vmem:[#allocation2 + $0x58] sm:$0xff]
    %v162 = vld [vmem:[#allocation2 + $0x60] sm:$0xff]
    %v163 = vld [vmem:[#allocation2 + $0x68] sm:$0xff]
    %v164 = vld [vmem:[#allocation2 + $0x70] sm:$0xff]
    %v165 = vld [vmem:[#allocation2 + $0x78] sm:$0xff]
    %v166 = vld [vmem:[#allocation2 + $0x80] sm:$0xff]
    %v167 = vld [vmem:[#allocation2 + $0x88] sm:$0xff]
    %v168 = vld [vmem:[#allocation2 + $0x90] sm:$0xff]
    %v169 = vld [vmem:[#allocation2 + $0x98] sm:$0xff]
    %v170 = vld [vmem:[#allocation2 + $0xa0] sm:$0xff]
    %v171 = vld [vmem:[#allocation2 + $0xa8] sm:$0xff]
    %v172 = vld [vmem:[#allocation2 + $0xb0] sm:$0xff]
    %v173 = vld [vmem:[#allocation2 + $0xb8] sm:$0xff]
    %v174 = vld [vmem:[#allocation2 + $0xc0] sm:$0xff]
    %v175 = vld [vmem:[#allocation2 + $0xc8] sm:$0xff]
    %v176 = vld [vmem:[#allocation2 + $0xd0] sm:$0xff]
    %v177 = vld [vmem:[#allocation2 + $0xd8] sm:$0xff]
    %v178 = vld [vmem:[#allocation2 + $0xe0] sm:$0xff]
    %v179 = vld [vmem:[#allocation2 + $0xe8] sm:$0xff]
    %v180 = vld [vmem:[#allocation2 + $0xf0] sm:$0xff]
    %v181 = vld [vmem:[#allocation2 + $0xf8] sm:$0xff]
    %v182 = vld [vmem:[#allocation2 + $0x100] sm:$0xff]
    %v183 = vld [vmem:[#allocation2 + $0x108] sm:$0xff]
    %v184 = vld [vmem:[#allocation2 + $0x110] sm:$0xff]
    %v185 = vld [vmem:[#allocation2 + $0x118] sm:$0xff]
    %v186 = vld [vmem:[#allocation2 + $0x120] sm:$0xff]
    %v187 = vld [vmem:[#allocation2 + $0x128] sm:$0xff]
    %v188 = vld [vmem:[#allocation2 + $0x130] sm:$0xff]
    %v189 = vld [vmem:[#allocation2 + $0x138] sm:$0xff]
    %v190 = vld [vmem:[#allocation2 + $0x140] sm:$0xff]
    %v191 = vld [vmem:[#allocation2 + $0x148] sm:$0xff]
    %v192 = vld [vmem:[#allocation2 + $0x150] sm:$0xff]
    %v193 = vld [vmem:[#allocation2 + $0x158] sm:$0xff]
    %v194 = vld [vmem:[#allocation2 + $0x160] sm:$0xff]
    %v195 = vld [vmem:[#allocation2 + $0x168] sm:$0xff]
    %v196 = vld [vmem:[#allocation2 + $0x170] sm:$0xff]
    %v197 = vld [vmem:[#allocation2 + $0x178] sm:$0xff]
    %v198 = vld [vmem:[#allocation2 + $0x180] sm:$0xff]
    %v199 = vld [vmem:[#allocation2 + $0x188] sm:$0xff]
    %v200 = vld [vmem:[#allocation2 + $0x190] sm:$0xff]
    %v201 = vld [vmem:[#allocation2 + $0x198] sm:$0xff]
    %v202 = vld [vmem:[#allocation2 + $0x1a0] sm:$0xff]
    %v203 = vld [vmem:[#allocation2 + $0x1a8] sm:$0xff]
    %v204 = vld [vmem:[#allocation2 + $0x1b0] sm:$0xff]
    %v205 = vld [vmem:[#allocation2 + $0x1b8] sm:$0xff]
    %v206 = vld [vmem:[#allocation2 + $0x1c0] sm:$0xff]
    %v207 = vld [vmem:[#allocation2 + $0x1c8] sm:$0xff]
    %v208 = vld [vmem:[#allocation2 + $0x1d0] sm:$0xff]
    %v209 = vld [vmem:[#allocation2 + $0x1d8] sm:$0xff]
    %v210 = vld [vmem:[#allocation2 + $0x1e0] sm:$0xff]
    %v211 = vld [vmem:[#allocation2 + $0x1e8] sm:$0xff]
    %v212 = vld [vmem:[#allocation2 + $0x1f0] sm:$0xff]
    %v213 = vld [vmem:[#allocation2 + $0x1f8] sm:$0xff]
    %v214 = vld [vmem:[#allocation2 + $0x200] sm:$0xff]
    %v215 = vld [vmem:[#allocation2 + $0x208] sm:$0xff]
    %v216 = vld [vmem:[#allocation2 + $0x210] sm:$0xff]
    %v217 = vld [vmem:[#allocation2 + $0x218] sm:$0xff]
    %v218 = vld [vmem:[#allocation2 + $0x220] sm:$0xff]
    %v219 = vld [vmem:[#allocation2 + $0x228] sm:$0xff]
    %v220 = vld [vmem:[#allocation2 + $0x230] sm:$0xff]
    %v221 = vld [vmem:[#allocation2 + $0x238] sm:$0xff]
    %v222 = vld [vmem:[#allocation2 + $0x240] sm:$0xff]
    %v223 = vld [vmem:[#allocation2 + $0x248] sm:$0xff]
    %v224 = vld [vmem:[#allocation2 + $0x250] sm:$0xff]
    %v225 = vld [vmem:[#allocation2 + $0x258] sm:$0xff]
    %v226 = vld [vmem:[#allocation2 + $0x260] sm:$0xff]
    %v227 = vld [vmem:[#allocation2 + $0x268] sm:$0xff]
    %v228 = vld [vmem:[#allocation2 + $0x270] sm:$0xff]
    %v229 = vld [vmem:[#allocation2 + $0x278] sm:$0xff]
    %v230 = vld [vmem:[#allocation2 + $0x280] sm:$0xff]
    %v231 = vld [vmem:[#allocation2 + $0x288] sm:$0xff]
    %v232 = vld [vmem:[#allocation2 + $0x290] sm:$0xff]
    %v233 = vld [vmem:[#allocation2 + $0x298] sm:$0xff]
    %v234 = vld [vmem:[#allocation2 + $0x2a0] sm:$0xff]
    %v235 = vld [vmem:[#allocation2 + $0x2a8] sm:$0xff]
    %v236 = vld [vmem:[#allocation2 + $0x2b0] sm:$0xff]
    %v237 = vld [vmem:[#allocation2 + $0x2b8] sm:$0xff]
    %v238 = vld [vmem:[#allocation2 + $0x2c0] sm:$0xff]
    %v239 = vld [vmem:[#allocation2 + $0x2c8] sm:$0xff]
    %v240 = vld [vmem:[#allocation2 + $0x2d0] sm:$0xff]
    %v241 = vld [vmem:[#allocation2 + $0x2d8] sm:$0xff]
    %v242 = vld [vmem:[#allocation2 + $0x2e0] sm:$0xff]
    %v243 = vld [vmem:[#allocation2 + $0x2e8] sm:$0xff]
    %v244 = vld [vmem:[#allocation2 + $0x2f0] sm:$0xff]
    %v245 = vld [vmem:[#allocation2 + $0x2f8] sm:$0xff]
    %v246 = vld [vmem:[#allocation2 + $0x300] sm:$0xff]
    %v247 = vld [vmem:[#allocation2 + $0x308] sm:$0xff]
    %v248 = vld [vmem:[#allocation2 + $0x310] sm:$0xff]
    %v249 = vld [vmem:[#allocation2 + $0x318] sm:$0xff]
    %v250 = vld [vmem:[#allocation2 + $0x320] sm:$0xff]
    %v251 = vld [vmem:[#allocation2 + $0x328] sm:$0xff]
    %v252 = vld [vmem:[#allocation2 + $0x330] sm:$0xff]
    %v253 = vld [vmem:[#allocation2 + $0x338] sm:$0xff]
    %v254 = vld [vmem:[#allocation2 + $0x340] sm:$0xff]
    %v255 = vld [vmem:[#allocation2 + $0x348] sm:$0xff]
    %v256 = vld [vmem:[#allocation2 + $0x350] sm:$0xff]
    %v257 = vld [vmem:[#allocation2 + $0x358] sm:$0xff]
    %v258 = vld [vmem:[#allocation2 + $0x360] sm:$0xff]
    %v259 = vld [vmem:[#allocation2 + $0x368] sm:$0xff]
    %v260 = vld [vmem:[#allocation2 + $0x370] sm:$0xff]
    %v261 = vld [vmem:[#allocation2 + $0x378] sm:$0xff]
    %v262 = vld [vmem:[#allocation2 + $0x380] sm:$0xff]
    %v263 = vld [vmem:[#allocation2 + $0x388] sm:$0xff]
    %v264 = vld [vmem:[#allocation2 + $0x390] sm:$0xff]
    %v265 = vld [vmem:[#allocation2 + $0x398] sm:$0xff]
    %v266 = vld [vmem:[#allocation2 + $0x3a0] sm:$0xff]
    %v267 = vld [vmem:[#allocation2 + $0x3a8] sm:$0xff]
    %v268 = vld [vmem:[#allocation2 + $0x3b0] sm:$0xff]
    %v269 = vld [vmem:[#allocation2 + $0x3b8] sm:$0xff]
    %v270 = vld [vmem:[#allocation2 + $0x3c0] sm:$0xff]
    %v271 = vld [vmem:[#allocation2 + $0x3c8] sm:$0xff]
    %v272 = vld [vmem:[#allocation2 + $0x3d0] sm:$0xff]
    %v273 = vld [vmem:[#allocation2 + $0x3d8] sm:$0xff]
    %v274 = vld [vmem:[#allocation2 + $0x3e0] sm:$0xff]
    %v275 = vld [vmem:[#allocation2 + $0x3e8] sm:$0xff]
    %v276 = vld [vmem:[#allocation2 + $0x3f0] sm:$0xff]
    %v277 = vld [vmem:[#allocation2 + $0x3f8] sm:$0xff]
    %v278 = vld [vmem:[#allocation4] sm:$0x3]
    %v280 = vlaneseq
    %v281 = vshrl.u32 %v280, 7
    %v282 = vsub.s32 0, %v281
    %v283 = vrot.slane %v278, %v282
    %v284 = vlaneseq
    %v285 = vshrl.u32 %v284, 7
    %v286 = vsub.s32 1, %v285
    %v287 = vrot.slane %v278, %v286
    %v418 = vunpack.c.l.b16 %v150
    %v419 = vunpack.c.h.b16 %v150
    %v420 = vunpack.c.l.b16 %v151
    %v421 = vunpack.c.h.b16 %v151
    %v422 = vunpack.c.l.b16 %v152
    %v423 = vunpack.c.h.b16 %v152
    %v424 = vunpack.c.l.b16 %v153
    %v425 = vunpack.c.h.b16 %v153
    %v426 = vunpack.c.l.b16 %v154
    %v427 = vunpack.c.h.b16 %v154
    %v428 = vunpack.c.l.b16 %v155
    %v429 = vunpack.c.h.b16 %v155
    %v430 = vunpack.c.l.b16 %v156
    %v431 = vunpack.c.h.b16 %v156
    %v432 = vunpack.c.l.b16 %v157
    %v433 = vunpack.c.h.b16 %v157
    %v434 = vunpack.c.l.b16 %v158
    %v435 = vunpack.c.h.b16 %v158
    %v436 = vunpack.c.l.b16 %v159
    %v437 = vunpack.c.h.b16 %v159
    %v438 = vunpack.c.l.b16 %v160
    %v439 = vunpack.c.h.b16 %v160
    %v440 = vunpack.c.l.b16 %v161
    %v441 = vunpack.c.h.b16 %v161
    %v442 = vunpack.c.l.b16 %v162
    %v443 = vunpack.c.h.b16 %v162
    %v444 = vunpack.c.l.b16 %v163
    %v445 = vunpack.c.h.b16 %v163
    %v446 = vunpack.c.l.b16 %v164
    %v447 = vunpack.c.h.b16 %v164
    %v448 = vunpack.c.l.b16 %v165
    %v449 = vunpack.c.h.b16 %v165
    %v450 = vunpack.c.l.b16 %v166
    %v451 = vunpack.c.h.b16 %v166
    %v452 = vunpack.c.l.b16 %v167
    %v453 = vunpack.c.h.b16 %v167
    %v454 = vunpack.c.l.b16 %v168
    %v455 = vunpack.c.h.b16 %v168
    %v456 = vunpack.c.l.b16 %v169
    %v457 = vunpack.c.h.b16 %v169
    %v458 = vunpack.c.l.b16 %v170
    %v459 = vunpack.c.h.b16 %v170
    %v460 = vunpack.c.l.b16 %v171
    %v461 = vunpack.c.h.b16 %v171
    %v462 = vunpack.c.l.b16 %v172
    %v463 = vunpack.c.h.b16 %v172
    %v464 = vunpack.c.l.b16 %v173
    %v465 = vunpack.c.h.b16 %v173
    %v466 = vunpack.c.l.b16 %v174
    %v467 = vunpack.c.h.b16 %v174
    %v468 = vunpack.c.l.b16 %v175
    %v469 = vunpack.c.h.b16 %v175
    %v470 = vunpack.c.l.b16 %v176
    %v471 = vunpack.c.h.b16 %v176
    %v472 = vunpack.c.l.b16 %v177
    %v473 = vunpack.c.h.b16 %v177
    %v474 = vunpack.c.l.b16 %v178
    %v475 = vunpack.c.h.b16 %v178
    %v476 = vunpack.c.l.b16 %v179
    %v477 = vunpack.c.h.b16 %v179
    %v478 = vunpack.c.l.b16 %v180
    %v479 = vunpack.c.h.b16 %v180
    %v480 = vunpack.c.l.b16 %v181
    %v481 = vunpack.c.h.b16 %v181
    %v482 = vunpack.c.l.b16 %v182
    %v483 = vunpack.c.h.b16 %v182
    %v484 = vunpack.c.l.b16 %v183
    %v485 = vunpack.c.h.b16 %v183
    %v486 = vunpack.c.l.b16 %v184
    %v487 = vunpack.c.h.b16 %v184
    %v488 = vunpack.c.l.b16 %v185
    %v489 = vunpack.c.h.b16 %v185
    %v490 = vunpack.c.l.b16 %v186
    %v491 = vunpack.c.h.b16 %v186
    %v492 = vunpack.c.l.b16 %v187
    %v493 = vunpack.c.h.b16 %v187
    %v494 = vunpack.c.l.b16 %v188
    %v495 = vunpack.c.h.b16 %v188
    %v496 = vunpack.c.l.b16 %v189
    %v497 = vunpack.c.h.b16 %v189
    %v498 = vunpack.c.l.b16 %v190
    %v499 = vunpack.c.h.b16 %v190
    %v500 = vunpack.c.l.b16 %v191
    %v501 = vunpack.c.h.b16 %v191
    %v502 = vunpack.c.l.b16 %v192
    %v503 = vunpack.c.h.b16 %v192
    %v504 = vunpack.c.l.b16 %v193
    %v505 = vunpack.c.h.b16 %v193
    %v506 = vunpack.c.l.b16 %v194
    %v507 = vunpack.c.h.b16 %v194
    %v508 = vunpack.c.l.b16 %v195
    %v509 = vunpack.c.h.b16 %v195
    %v510 = vunpack.c.l.b16 %v196
    %v511 = vunpack.c.h.b16 %v196
    %v512 = vunpack.c.l.b16 %v197
    %v513 = vunpack.c.h.b16 %v197
    %v514 = vunpack.c.l.b16 %v198
    %v515 = vunpack.c.h.b16 %v198
    %v516 = vunpack.c.l.b16 %v199
    %v517 = vunpack.c.h.b16 %v199
    %v518 = vunpack.c.l.b16 %v200
    %v519 = vunpack.c.h.b16 %v200
    %v520 = vunpack.c.l.b16 %v201
    %v521 = vunpack.c.h.b16 %v201
    %v522 = vunpack.c.l.b16 %v202
    %v523 = vunpack.c.h.b16 %v202
    %v524 = vunpack.c.l.b16 %v203
    %v525 = vunpack.c.h.b16 %v203
    %v526 = vunpack.c.l.b16 %v204
    %v527 = vunpack.c.h.b16 %v204
    %v528 = vunpack.c.l.b16 %v205
    %v529 = vunpack.c.h.b16 %v205
    %v530 = vunpack.c.l.b16 %v206
    %v531 = vunpack.c.h.b16 %v206
    %v532 = vunpack.c.l.b16 %v207
    %v533 = vunpack.c.h.b16 %v207
    %v534 = vunpack.c.l.b16 %v208
    %v535 = vunpack.c.h.b16 %v208
    %v536 = vunpack.c.l.b16 %v209
    %v537 = vunpack.c.h.b16 %v209
    %v538 = vunpack.c.l.b16 %v210
    %v539 = vunpack.c.h.b16 %v210
    %v540 = vunpack.c.l.b16 %v211
    %v541 = vunpack.c.h.b16 %v211
    %v542 = vunpack.c.l.b16 %v212
    %v543 = vunpack.c.h.b16 %v212
    %v544 = vunpack.c.l.b16 %v213
    %v545 = vunpack.c.h.b16 %v213
    %v546 = vunpack.c.l.b16 %v214
    %v547 = vunpack.c.h.b16 %v214
    %v548 = vunpack.c.l.b16 %v215
    %v549 = vunpack.c.h.b16 %v215
    %v550 = vunpack.c.l.b16 %v216
    %v551 = vunpack.c.h.b16 %v216
    %v552 = vunpack.c.l.b16 %v217
    %v553 = vunpack.c.h.b16 %v217
    %v554 = vunpack.c.l.b16 %v218
    %v555 = vunpack.c.h.b16 %v218
    %v556 = vunpack.c.l.b16 %v219
    %v557 = vunpack.c.h.b16 %v219
    %v558 = vunpack.c.l.b16 %v220
    %v559 = vunpack.c.h.b16 %v220
    %v560 = vunpack.c.l.b16 %v221
    %v561 = vunpack.c.h.b16 %v221
    %v562 = vunpack.c.l.b16 %v222
    %v563 = vunpack.c.h.b16 %v222
    %v564 = vunpack.c.l.b16 %v223
    %v565 = vunpack.c.h.b16 %v223
    %v566 = vunpack.c.l.b16 %v224
    %v567 = vunpack.c.h.b16 %v224
    %v568 = vunpack.c.l.b16 %v225
    %v569 = vunpack.c.h.b16 %v225
    %v570 = vunpack.c.l.b16 %v226
    %v571 = vunpack.c.h.b16 %v226
    %v572 = vunpack.c.l.b16 %v227
    %v573 = vunpack.c.h.b16 %v227
    %v574 = vunpack.c.l.b16 %v228
    %v575 = vunpack.c.h.b16 %v228
    %v576 = vunpack.c.l.b16 %v229
    %v577 = vunpack.c.h.b16 %v229
    %v578 = vunpack.c.l.b16 %v230
    %v579 = vunpack.c.h.b16 %v230
    %v580 = vunpack.c.l.b16 %v231
    %v581 = vunpack.c.h.b16 %v231
    %v582 = vunpack.c.l.b16 %v232
    %v583 = vunpack.c.h.b16 %v232
    %v584 = vunpack.c.l.b16 %v233
    %v585 = vunpack.c.h.b16 %v233
    %v586 = vunpack.c.l.b16 %v234
    %v587 = vunpack.c.h.b16 %v234
    %v588 = vunpack.c.l.b16 %v235
    %v589 = vunpack.c.h.b16 %v235
    %v590 = vunpack.c.l.b16 %v236
    %v591 = vunpack.c.h.b16 %v236
    %v592 = vunpack.c.l.b16 %v237
    %v593 = vunpack.c.h.b16 %v237
    %v594 = vunpack.c.l.b16 %v238
    %v595 = vunpack.c.h.b16 %v238
    %v596 = vunpack.c.l.b16 %v239
    %v597 = vunpack.c.h.b16 %v239
    %v598 = vunpack.c.l.b16 %v240
    %v599 = vunpack.c.h.b16 %v240
    %v600 = vunpack.c.l.b16 %v241
    %v601 = vunpack.c.h.b16 %v241
    %v602 = vunpack.c.l.b16 %v242
    %v603 = vunpack.c.h.b16 %v242
    %v604 = vunpack.c.l.b16 %v243
    %v605 = vunpack.c.h.b16 %v243
    %v606 = vunpack.c.l.b16 %v244
    %v607 = vunpack.c.h.b16 %v244
    %v608 = vunpack.c.l.b16 %v245
    %v609 = vunpack.c.h.b16 %v245
    %v610 = vunpack.c.l.b16 %v246
    %v611 = vunpack.c.h.b16 %v246
    %v612 = vunpack.c.l.b16 %v247
    %v613 = vunpack.c.h.b16 %v247
    %v614 = vunpack.c.l.b16 %v248
    %v615 = vunpack.c.h.b16 %v248
    %v616 = vunpack.c.l.b16 %v249
    %v617 = vunpack.c.h.b16 %v249
    %v618 = vunpack.c.l.b16 %v250
    %v619 = vunpack.c.h.b16 %v250
    %v620 = vunpack.c.l.b16 %v251
    %v621 = vunpack.c.h.b16 %v251
    %v622 = vunpack.c.l.b16 %v252
    %v623 = vunpack.c.h.b16 %v252
    %v624 = vunpack.c.l.b16 %v253
    %v625 = vunpack.c.h.b16 %v253
    %v626 = vunpack.c.l.b16 %v254
    %v627 = vunpack.c.h.b16 %v254
    %v628 = vunpack.c.l.b16 %v255
    %v629 = vunpack.c.h.b16 %v255
    %v630 = vunpack.c.l.b16 %v256
    %v631 = vunpack.c.h.b16 %v256
    %v632 = vunpack.c.l.b16 %v257
    %v633 = vunpack.c.h.b16 %v257
    %v634 = vunpack.c.l.b16 %v258
    %v635 = vunpack.c.h.b16 %v258
    %v636 = vunpack.c.l.b16 %v259
    %v637 = vunpack.c.h.b16 %v259
    %v638 = vunpack.c.l.b16 %v260
    %v639 = vunpack.c.h.b16 %v260
    %v640 = vunpack.c.l.b16 %v261
    %v641 = vunpack.c.h.b16 %v261
    %v642 = vunpack.c.l.b16 %v262
    %v643 = vunpack.c.h.b16 %v262
    %v644 = vunpack.c.l.b16 %v263
    %v645 = vunpack.c.h.b16 %v263
    %v646 = vunpack.c.l.b16 %v264
    %v647 = vunpack.c.h.b16 %v264
    %v648 = vunpack.c.l.b16 %v265
    %v649 = vunpack.c.h.b16 %v265
    %v650 = vunpack.c.l.b16 %v266
    %v651 = vunpack.c.h.b16 %v266
    %v652 = vunpack.c.l.b16 %v267
    %v653 = vunpack.c.h.b16 %v267
    %v654 = vunpack.c.l.b16 %v268
    %v655 = vunpack.c.h.b16 %v268
    %v656 = vunpack.c.l.b16 %v269
    %v657 = vunpack.c.h.b16 %v269
    %v658 = vunpack.c.l.b16 %v270
    %v659 = vunpack.c.h.b16 %v270
    %v660 = vunpack.c.l.b16 %v271
    %v661 = vunpack.c.h.b16 %v271
    %v662 = vunpack.c.l.b16 %v272
    %v663 = vunpack.c.h.b16 %v272
    %v664 = vunpack.c.l.b16 %v273
    %v665 = vunpack.c.h.b16 %v273
    %v666 = vunpack.c.l.b16 %v274
    %v667 = vunpack.c.h.b16 %v274
    %v668 = vunpack.c.l.b16 %v275
    %v669 = vunpack.c.h.b16 %v275
    %v670 = vunpack.c.l.b16 %v276
    %v671 = vunpack.c.h.b16 %v276
    %v672 = vunpack.c.l.b16 %v277
    %v673 = vunpack.c.h.b16 %v277
    %v674 = vpack.c.b16 %v420, %v418
    %v675 = vpack.c.b16 %v421, %v419
    %v676 = vpack.c.b16 %v424, %v422
    %v677 = vpack.c.b16 %v425, %v423
    %v678 = vpack.c.b16 %v428, %v426
    %v679 = vpack.c.b16 %v429, %v427
    %v680 = vpack.c.b16 %v432, %v430
    %v681 = vpack.c.b16 %v433, %v431
    %v682 = vpack.c.b16 %v436, %v434
    %v683 = vpack.c.b16 %v437, %v435
    %v684 = vpack.c.b16 %v440, %v438
    %v685 = vpack.c.b16 %v441, %v439
    %v686 = vpack.c.b16 %v444, %v442
    %v687 = vpack.c.b16 %v445, %v443
    %v688 = vpack.c.b16 %v448, %v446
    %v689 = vpack.c.b16 %v449, %v447
    %v690 = vpack.c.b16 %v452, %v450
    %v691 = vpack.c.b16 %v453, %v451
    %v692 = vpack.c.b16 %v456, %v454
    %v693 = vpack.c.b16 %v457, %v455
    %v694 = vpack.c.b16 %v460, %v458
    %v695 = vpack.c.b16 %v461, %v459
    %v696 = vpack.c.b16 %v464, %v462
    %v697 = vpack.c.b16 %v465, %v463
    %v698 = vpack.c.b16 %v468, %v466
    %v699 = vpack.c.b16 %v469, %v467
    %v700 = vpack.c.b16 %v472, %v470
    %v701 = vpack.c.b16 %v473, %v471
    %v702 = vpack.c.b16 %v476, %v474
    %v703 = vpack.c.b16 %v477, %v475
    %v704 = vpack.c.b16 %v480, %v478
    %v705 = vpack.c.b16 %v481, %v479
    %v706 = vpack.c.b16 %v484, %v482
    %v707 = vpack.c.b16 %v485, %v483
    %v708 = vpack.c.b16 %v488, %v486
    %v709 = vpack.c.b16 %v489, %v487
    %v710 = vpack.c.b16 %v492, %v490
    %v711 = vpack.c.b16 %v493, %v491
    %v712 = vpack.c.b16 %v496, %v494
    %v713 = vpack.c.b16 %v497, %v495
    %v714 = vpack.c.b16 %v500, %v498
    %v715 = vpack.c.b16 %v501, %v499
    %v716 = vpack.c.b16 %v504, %v502
    %v717 = vpack.c.b16 %v505, %v503
    %v718 = vpack.c.b16 %v508, %v506
    %v719 = vpack.c.b16 %v509, %v507
    %v720 = vpack.c.b16 %v512, %v510
    %v721 = vpack.c.b16 %v513, %v511
    %v722 = vpack.c.b16 %v516, %v514
    %v723 = vpack.c.b16 %v517, %v515
    %v724 = vpack.c.b16 %v520, %v518
    %v725 = vpack.c.b16 %v521, %v519
    %v726 = vpack.c.b16 %v524, %v522
    %v727 = vpack.c.b16 %v525, %v523
    %v728 = vpack.c.b16 %v528, %v526
    %v729 = vpack.c.b16 %v529, %v527
    %v730 = vpack.c.b16 %v532, %v530
    %v731 = vpack.c.b16 %v533, %v531
    %v732 = vpack.c.b16 %v536, %v534
    %v733 = vpack.c.b16 %v537, %v535
    %v734 = vpack.c.b16 %v540, %v538
    %v735 = vpack.c.b16 %v541, %v539
    %v736 = vpack.c.b16 %v544, %v542
    %v737 = vpack.c.b16 %v545, %v543
    %v738 = vpack.c.b16 %v548, %v546
    %v739 = vpack.c.b16 %v549, %v547
    %v740 = vpack.c.b16 %v552, %v550
    %v741 = vpack.c.b16 %v553, %v551
    %v742 = vpack.c.b16 %v556, %v554
    %v743 = vpack.c.b16 %v557, %v555
    %v744 = vpack.c.b16 %v560, %v558
    %v745 = vpack.c.b16 %v561, %v559
    %v746 = vpack.c.b16 %v564, %v562
    %v747 = vpack.c.b16 %v565, %v563
    %v748 = vpack.c.b16 %v568, %v566
    %v749 = vpack.c.b16 %v569, %v567
    %v750 = vpack.c.b16 %v572, %v570
    %v751 = vpack.c.b16 %v573, %v571
    %v752 = vpack.c.b16 %v576, %v574
    %v753 = vpack.c.b16 %v577, %v575
    %v754 = vpack.c.b16 %v580, %v578
    %v755 = vpack.c.b16 %v581, %v579
    %v756 = vpack.c.b16 %v584, %v582
    %v757 = vpack.c.b16 %v585, %v583
    %v758 = vpack.c.b16 %v588, %v586
    %v759 = vpack.c.b16 %v589, %v587
    %v760 = vpack.c.b16 %v592, %v590
    %v761 = vpack.c.b16 %v593, %v591
    %v762 = vpack.c.b16 %v596, %v594
    %v763 = vpack.c.b16 %v597, %v595
    %v764 = vpack.c.b16 %v600, %v598
    %v765 = vpack.c.b16 %v601, %v599
    %v766 = vpack.c.b16 %v604, %v602
    %v767 = vpack.c.b16 %v605, %v603
    %v768 = vpack.c.b16 %v608, %v606
    %v769 = vpack.c.b16 %v609, %v607
    %v770 = vpack.c.b16 %v612, %v610
    %v771 = vpack.c.b16 %v613, %v611
    %v772 = vpack.c.b16 %v616, %v614
    %v773 = vpack.c.b16 %v617, %v615
    %v774 = vpack.c.b16 %v620, %v618
    %v775 = vpack.c.b16 %v621, %v619
    %v776 = vpack.c.b16 %v624, %v622
    %v777 = vpack.c.b16 %v625, %v623
    %v778 = vpack.c.b16 %v628, %v626
    %v779 = vpack.c.b16 %v629, %v627
    %v780 = vpack.c.b16 %v632, %v630
    %v781 = vpack.c.b16 %v633, %v631
    %v782 = vpack.c.b16 %v636, %v634
    %v783 = vpack.c.b16 %v637, %v635
    %v784 = vpack.c.b16 %v640, %v638
    %v785 = vpack.c.b16 %v641, %v639
    %v786 = vpack.c.b16 %v644, %v642
    %v787 = vpack.c.b16 %v645, %v643
    %v788 = vpack.c.b16 %v648, %v646
    %v789 = vpack.c.b16 %v649, %v647
    %v790 = vpack.c.b16 %v652, %v650
    %v791 = vpack.c.b16 %v653, %v651
    %v792 = vpack.c.b16 %v656, %v654
    %v793 = vpack.c.b16 %v657, %v655
    %v794 = vpack.c.b16 %v660, %v658
    %v795 = vpack.c.b16 %v661, %v659
    %v796 = vpack.c.b16 %v664, %v662
    %v797 = vpack.c.b16 %v665, %v663
    %v798 = vpack.c.b16 %v668, %v666
    %v799 = vpack.c.b16 %v669, %v667
    %v800 = vpack.c.b16 %v672, %v670
    %v801 = vpack.c.b16 %v673, %v671
    %930 = vmatprep.subr.bf16.mxu0 %v675
    %931 = vmatpush1.bf16.msra.mxu0 %v674
    %932 = vmatprep.subr.bf16.mxu0 %v677
    %933 = vmatpush1.bf16.msra.mxu0 %v676
    %934 = vmatprep.subr.bf16.mxu0 %v679
    %935 = vmatpush1.bf16.msra.mxu0 %v678
    %936 = vmatprep.subr.bf16.mxu0 %v681
    %937 = vmatpush1.bf16.msra.mxu0 %v680
    %938 = vmatprep.subr.bf16.mxu0 %v683
    %939 = vmatpush1.bf16.msra.mxu0 %v682
    %940 = vmatprep.subr.bf16.mxu0 %v685
    %941 = vmatpush1.bf16.msra.mxu0 %v684
    %942 = vmatprep.subr.bf16.mxu0 %v687
    %943 = vmatpush1.bf16.msra.mxu0 %v686
    %944 = vmatprep.subr.bf16.mxu0 %v689
    %945 = vmatpush1.bf16.msra.mxu0 %v688
    %946 = vmatprep.subr.bf16.mxu0 %v691
    %947 = vmatpush1.bf16.msra.mxu0 %v690
    %948 = vmatprep.subr.bf16.mxu0 %v693
    %949 = vmatpush1.bf16.msra.mxu0 %v692
    %950 = vmatprep.subr.bf16.mxu0 %v695
    %951 = vmatpush1.bf16.msra.mxu0 %v694
    %952 = vmatprep.subr.bf16.mxu0 %v697
    %953 = vmatpush1.bf16.msra.mxu0 %v696
    %954 = vmatprep.subr.bf16.mxu0 %v699
    %955 = vmatpush1.bf16.msra.mxu0 %v698
    %956 = vmatprep.subr.bf16.mxu0 %v701
    %957 = vmatpush1.bf16.msra.mxu0 %v700
    %958 = vmatprep.subr.bf16.mxu0 %v703
    %959 = vmatpush1.bf16.msra.mxu0 %v702
    %960 = vmatprep.subr.bf16.mxu0 %v705
    %961 = vmatpush1.bf16.msra.mxu0 %v704
    %962 = vmatprep.mubr.bf16.mxu0 %v143
    %963 = vmatmul.mubr.bf16.gmra.mrb[0].mxu0 %v142
    %v964 = vpop.f32.mrb[0].mxu0
    %v965 = vadd.f32 %v283, %v964
    %v966 = vpop.f32.mrb[0].mxu0
    %v967 = vadd.f32 %v287, %v966
    %v968 = vpop.f32.mrb[0].mxu0
    %v969 = vpop.f32.mrb[0].mxu0
    %970 = vdwg.mxu0
    %971 = vmatprep.subr.bf16.mxu0 %v707
    %972 = vmatpush1.bf16.msra.mxu0 %v706
    %973 = vmatprep.subr.bf16.mxu0 %v709
    %974 = vmatpush1.bf16.msra.mxu0 %v708
    %975 = vmatprep.subr.bf16.mxu0 %v711
    %976 = vmatpush1.bf16.msra.mxu0 %v710
    %977 = vmatprep.subr.bf16.mxu0 %v713
    %978 = vmatpush1.bf16.msra.mxu0 %v712
    %979 = vmatprep.subr.bf16.mxu0 %v715
    %980 = vmatpush1.bf16.msra.mxu0 %v714
    %981 = vmatprep.subr.bf16.mxu0 %v717
    %982 = vmatpush1.bf16.msra.mxu0 %v716
    %983 = vmatprep.subr.bf16.mxu0 %v719
    %984 = vmatpush1.bf16.msra.mxu0 %v718
    %985 = vmatprep.subr.bf16.mxu0 %v721
    %986 = vmatpush1.bf16.msra.mxu0 %v720
    %987 = vmatprep.subr.bf16.mxu0 %v723
    %988 = vmatpush1.bf16.msra.mxu0 %v722
    %989 = vmatprep.subr.bf16.mxu0 %v725
    %990 = vmatpush1.bf16.msra.mxu0 %v724
    %991 = vmatprep.subr.bf16.mxu0 %v727
    %992 = vmatpush1.bf16.msra.mxu0 %v726
    %993 = vmatprep.subr.bf16.mxu0 %v729
    %994 = vmatpush1.bf16.msra.mxu0 %v728
    %995 = vmatprep.subr.bf16.mxu0 %v731
    %996 = vmatpush1.bf16.msra.mxu0 %v730
    %997 = vmatprep.subr.bf16.mxu0 %v733
    %998 = vmatpush1.bf16.msra.mxu0 %v732
    %999 = vmatprep.subr.bf16.mxu0 %v735
    %1000 = vmatpush1.bf16.msra.mxu0 %v734
    %1001 = vmatprep.subr.bf16.mxu0 %v737
    %1002 = vmatpush1.bf16.msra.mxu0 %v736
    %1003 = vmatprep.mubr.bf16.mxu0 %v145
    %1004 = vmatmul.mubr.bf16.gmra.mrb[0].mxu0 %v144
    %v1005 = vpop.f32.mrb[0].mxu0
    %v1006 = vadd.f32 %v965, %v1005
    %v1007 = vpop.f32.mrb[0].mxu0
    %v1008 = vadd.f32 %v967, %v1007
    %v1009 = vpop.f32.mrb[0].mxu0
    %v1010 = vpop.f32.mrb[0].mxu0
    %1011 = vdwg.mxu0
    %1012 = vmatprep.subr.bf16.mxu0 %v739
    %1013 = vmatpush1.bf16.msra.mxu0 %v738
    %1014 = vmatprep.subr.bf16.mxu0 %v741
    %1015 = vmatpush1.bf16.msra.mxu0 %v740
    %1016 = vmatprep.subr.bf16.mxu0 %v743
    %1017 = vmatpush1.bf16.msra.mxu0 %v742
    %1018 = vmatprep.subr.bf16.mxu0 %v745
    %1019 = vmatpush1.bf16.msra.mxu0 %v744
    %1020 = vmatprep.subr.bf16.mxu0 %v747
    %1021 = vmatpush1.bf16.msra.mxu0 %v746
    %1022 = vmatprep.subr.bf16.mxu0 %v749
    %1023 = vmatpush1.bf16.msra.mxu0 %v748
    %1024 = vmatprep.subr.bf16.mxu0 %v751
    %1025 = vmatpush1.bf16.msra.mxu0 %v750
    %1026 = vmatprep.subr.bf16.mxu0 %v753
    %1027 = vmatpush1.bf16.msra.mxu0 %v752
    %1028 = vmatprep.subr.bf16.mxu0 %v755
    %1029 = vmatpush1.bf16.msra.mxu0 %v754
    %1030 = vmatprep.subr.bf16.mxu0 %v757
    %1031 = vmatpush1.bf16.msra.mxu0 %v756
    %1032 = vmatprep.subr.bf16.mxu0 %v759
    %1033 = vmatpush1.bf16.msra.mxu0 %v758
    %1034 = vmatprep.subr.bf16.mxu0 %v761
    %1035 = vmatpush1.bf16.msra.mxu0 %v760
    %1036 = vmatprep.subr.bf16.mxu0 %v763
    %1037 = vmatpush1.bf16.msra.mxu0 %v762
    %1038 = vmatprep.subr.bf16.mxu0 %v765
    %1039 = vmatpush1.bf16.msra.mxu0 %v764
    %1040 = vmatprep.subr.bf16.mxu0 %v767
    %1041 = vmatpush1.bf16.msra.mxu0 %v766
    %1042 = vmatprep.subr.bf16.mxu0 %v769
    %1043 = vmatpush1.bf16.msra.mxu0 %v768
    %1044 = vmatprep.mubr.bf16.mxu0 %v147
    %1045 = vmatmul.mubr.bf16.gmra.mrb[0].mxu0 %v146
    %v1046 = vpop.f32.mrb[0].mxu0
    %v1047 = vadd.f32 %v1006, %v1046
    %v1048 = vpop.f32.mrb[0].mxu0
    %v1049 = vadd.f32 %v1008, %v1048
    %v1050 = vpop.f32.mrb[0].mxu0
    %v1051 = vpop.f32.mrb[0].mxu0
    %1052 = vdwg.mxu0
    %1053 = vmatprep.subr.bf16.mxu0 %v771
    %1054 = vmatpush1.bf16.msra.mxu0 %v770
    %1055 = vmatprep.subr.bf16.mxu0 %v773
    %1056 = vmatpush1.bf16.msra.mxu0 %v772
    %1057 = vmatprep.subr.bf16.mxu0 %v775
    %1058 = vmatpush1.bf16.msra.mxu0 %v774
    %1059 = vmatprep.subr.bf16.mxu0 %v777
    %1060 = vmatpush1.bf16.msra.mxu0 %v776
    %1061 = vmatprep.subr.bf16.mxu0 %v779
    %1062 = vmatpush1.bf16.msra.mxu0 %v778
    %1063 = vmatprep.subr.bf16.mxu0 %v781
    %1064 = vmatpush1.bf16.msra.mxu0 %v780
    %1065 = vmatprep.subr.bf16.mxu0 %v783
    %1066 = vmatpush1.bf16.msra.mxu0 %v782
    %1067 = vmatprep.subr.bf16.mxu0 %v785
    %1068 = vmatpush1.bf16.msra.mxu0 %v784
    %1069 = vmatprep.subr.bf16.mxu0 %v787
    %1070 = vmatpush1.bf16.msra.mxu0 %v786
    %1071 = vmatprep.subr.bf16.mxu0 %v789
    %1072 = vmatpush1.bf16.msra.mxu0 %v788
    %1073 = vmatprep.subr.bf16.mxu0 %v791
    %1074 = vmatpush1.bf16.msra.mxu0 %v790
    %1075 = vmatprep.subr.bf16.mxu0 %v793
    %1076 = vmatpush1.bf16.msra.mxu0 %v792
    %1077 = vmatprep.subr.bf16.mxu0 %v795
    %1078 = vmatpush1.bf16.msra.mxu0 %v794
    %1079 = vmatprep.subr.bf16.mxu0 %v797
    %1080 = vmatpush1.bf16.msra.mxu0 %v796
    %1081 = vmatprep.subr.bf16.mxu0 %v799
    %1082 = vmatpush1.bf16.msra.mxu0 %v798
    %1083 = vmatprep.subr.bf16.mxu0 %v801
    %1084 = vmatpush1.bf16.msra.mxu0 %v800
    %1085 = vmatprep.mubr.bf16.mxu0 %v149
    %1086 = vmatmul.mubr.bf16.gmra.mrb[0].mxu0 %v148
    %v1087 = vpop.f32.mrb[0].mxu0
    %v1088 = vadd.f32 %v1047, %v1087
    %v1089 = vpop.f32.mrb[0].mxu0
    %v1090 = vadd.f32 %v1049, %v1089
    %v1091 = vpop.f32.mrb[0].mxu0
    %v1092 = vpop.f32.mrb[0].mxu0
    %1093 = vdwg.mxu0
    %v1094 = vmax.f32 %v1088, 0.0
    %v1095 = vmax.f32 %v1090, 0.0
    %v1096 = vpack.c.bf16 %v1094, %v1094
    %v1097 = vpack.c.bf16 %v1095, %v1095
    %v1098 = vld [vmem:[#allocation6] sm:$0xff]
    %v1099 = vld [vmem:[#allocation6 + $0x8] sm:$0xff]
    %v1100 = vld [vmem:[#allocation6 + $0x10] sm:$0xff]
    %v1101 = vld [vmem:[#allocation6 + $0x18] sm:$0xff]
    %v1102 = vld [vmem:[#allocation6 + $0x20] sm:$0xff]
    %v1103 = vld [vmem:[#allocation6 + $0x28] sm:$0xff]
    %v1104 = vld [vmem:[#allocation6 + $0x30] sm:$0xff]
    %v1105 = vld [vmem:[#allocation6 + $0x38] sm:$0xff]
    %v1106 = vld [vmem:[#allocation6 + $0x40] sm:$0xff]
    %v1107 = vld [vmem:[#allocation6 + $0x48] sm:$0xff]
    %v1108 = vld [vmem:[#allocation6 + $0x50] sm:$0xff]
    %v1109 = vld [vmem:[#allocation6 + $0x58] sm:$0xff]
    %v1110 = vld [vmem:[#allocation6 + $0x60] sm:$0xff]
    %v1111 = vld [vmem:[#allocation6 + $0x68] sm:$0xff]
    %v1112 = vld [vmem:[#allocation6 + $0x70] sm:$0xff]
    %v1113 = vld [vmem:[#allocation6 + $0x78] sm:$0xff]
    %v1114 = vld [vmem:[#allocation6 + $0x80] sm:$0xff]
    %v1115 = vld [vmem:[#allocation6 + $0x88] sm:$0xff]
    %v1116 = vld [vmem:[#allocation6 + $0x90] sm:$0xff]
    %v1117 = vld [vmem:[#allocation6 + $0x98] sm:$0xff]
    %v1118 = vld [vmem:[#allocation6 + $0xa0] sm:$0xff]
    %v1119 = vld [vmem:[#allocation6 + $0xa8] sm:$0xff]
    %v1120 = vld [vmem:[#allocation6 + $0xb0] sm:$0xff]
    %v1121 = vld [vmem:[#allocation6 + $0xb8] sm:$0xff]
    %v1122 = vld [vmem:[#allocation6 + $0xc0] sm:$0xff]
    %v1123 = vld [vmem:[#allocation6 + $0xc8] sm:$0xff]
    %v1124 = vld [vmem:[#allocation6 + $0xd0] sm:$0xff]
    %v1125 = vld [vmem:[#allocation6 + $0xd8] sm:$0xff]
    %v1126 = vld [vmem:[#allocation6 + $0xe0] sm:$0xff]
    %v1127 = vld [vmem:[#allocation6 + $0xe8] sm:$0xff]
    %v1128 = vld [vmem:[#allocation6 + $0xf0] sm:$0xff]
    %v1129 = vld [vmem:[#allocation6 + $0xf8] sm:$0xff]
    %v1130 = vld [vmem:[#allocation6 + $0x100] sm:$0xff]
    %v1131 = vld [vmem:[#allocation6 + $0x108] sm:$0xff]
    %v1132 = vld [vmem:[#allocation6 + $0x110] sm:$0xff]
    %v1133 = vld [vmem:[#allocation6 + $0x118] sm:$0xff]
    %v1134 = vld [vmem:[#allocation6 + $0x120] sm:$0xff]
    %v1135 = vld [vmem:[#allocation6 + $0x128] sm:$0xff]
    %v1136 = vld [vmem:[#allocation6 + $0x130] sm:$0xff]
    %v1137 = vld [vmem:[#allocation6 + $0x138] sm:$0xff]
    %v1138 = vld [vmem:[#allocation6 + $0x140] sm:$0xff]
    %v1139 = vld [vmem:[#allocation6 + $0x148] sm:$0xff]
    %v1140 = vld [vmem:[#allocation6 + $0x150] sm:$0xff]
    %v1141 = vld [vmem:[#allocation6 + $0x158] sm:$0xff]
    %v1142 = vld [vmem:[#allocation6 + $0x160] sm:$0xff]
    %v1143 = vld [vmem:[#allocation6 + $0x168] sm:$0xff]
    %v1144 = vld [vmem:[#allocation6 + $0x170] sm:$0xff]
    %v1145 = vld [vmem:[#allocation6 + $0x178] sm:$0xff]
    %v1146 = vld [vmem:[#allocation6 + $0x180] sm:$0xff]
    %v1147 = vld [vmem:[#allocation6 + $0x188] sm:$0xff]
    %v1148 = vld [vmem:[#allocation6 + $0x190] sm:$0xff]
    %v1149 = vld [vmem:[#allocation6 + $0x198] sm:$0xff]
    %v1150 = vld [vmem:[#allocation6 + $0x1a0] sm:$0xff]
    %v1151 = vld [vmem:[#allocation6 + $0x1a8] sm:$0xff]
    %v1152 = vld [vmem:[#allocation6 + $0x1b0] sm:$0xff]
    %v1153 = vld [vmem:[#allocation6 + $0x1b8] sm:$0xff]
    %v1154 = vld [vmem:[#allocation6 + $0x1c0] sm:$0xff]
    %v1155 = vld [vmem:[#allocation6 + $0x1c8] sm:$0xff]
    %v1156 = vld [vmem:[#allocation6 + $0x1d0] sm:$0xff]
    %v1157 = vld [vmem:[#allocation6 + $0x1d8] sm:$0xff]
    %v1158 = vld [vmem:[#allocation6 + $0x1e0] sm:$0xff]
    %v1159 = vld [vmem:[#allocation6 + $0x1e8] sm:$0xff]
    %v1160 = vld [vmem:[#allocation6 + $0x1f0] sm:$0xff]
    %v1161 = vld [vmem:[#allocation6 + $0x1f8] sm:$0xff]
    %v1162 = vld [vmem:[#allocation7] sm:$0xf]
    %v1164 = vlaneseq
    %v1165 = vshrl.u32 %v1164, 7
    %v1166 = vsub.s32 0, %v1165
    %v1167 = vrot.slane %v1162, %v1166
    %v1168 = vlaneseq
    %v1169 = vshrl.u32 %v1168, 7
    %v1170 = vsub.s32 1, %v1169
    %v1171 = vrot.slane %v1162, %v1170
    %v1172 = vlaneseq
    %v1173 = vshrl.u32 %v1172, 7
    %v1174 = vsub.s32 2, %v1173
    %v1175 = vrot.slane %v1162, %v1174
    %v1176 = vlaneseq
    %v1177 = vshrl.u32 %v1176, 7
    %v1178 = vsub.s32 3, %v1177
    %v1179 = vrot.slane %v1162, %v1178
    %v1248 = vunpack.c.l.b16 %v1098
    %v1249 = vunpack.c.h.b16 %v1098
    %v1250 = vunpack.c.l.b16 %v1099
    %v1251 = vunpack.c.h.b16 %v1099
    %v1252 = vunpack.c.l.b16 %v1100
    %v1253 = vunpack.c.h.b16 %v1100
    %v1254 = vunpack.c.l.b16 %v1101
    %v1255 = vunpack.c.h.b16 %v1101
    %v1256 = vunpack.c.l.b16 %v1102
    %v1257 = vunpack.c.h.b16 %v1102
    %v1258 = vunpack.c.l.b16 %v1103
    %v1259 = vunpack.c.h.b16 %v1103
    %v1260 = vunpack.c.l.b16 %v1104
    %v1261 = vunpack.c.h.b16 %v1104
    %v1262 = vunpack.c.l.b16 %v1105
    %v1263 = vunpack.c.h.b16 %v1105
    %v1264 = vunpack.c.l.b16 %v1106
    %v1265 = vunpack.c.h.b16 %v1106
    %v1266 = vunpack.c.l.b16 %v1107
    %v1267 = vunpack.c.h.b16 %v1107
    %v1268 = vunpack.c.l.b16 %v1108
    %v1269 = vunpack.c.h.b16 %v1108
    %v1270 = vunpack.c.l.b16 %v1109
    %v1271 = vunpack.c.h.b16 %v1109
    %v1272 = vunpack.c.l.b16 %v1110
    %v1273 = vunpack.c.h.b16 %v1110
    %v1274 = vunpack.c.l.b16 %v1111
    %v1275 = vunpack.c.h.b16 %v1111
    %v1276 = vunpack.c.l.b16 %v1112
    %v1277 = vunpack.c.h.b16 %v1112
    %v1278 = vunpack.c.l.b16 %v1113
    %v1279 = vunpack.c.h.b16 %v1113
    %v1280 = vunpack.c.l.b16 %v1114
    %v1281 = vunpack.c.h.b16 %v1114
    %v1282 = vunpack.c.l.b16 %v1115
    %v1283 = vunpack.c.h.b16 %v1115
    %v1284 = vunpack.c.l.b16 %v1116
    %v1285 = vunpack.c.h.b16 %v1116
    %v1286 = vunpack.c.l.b16 %v1117
    %v1287 = vunpack.c.h.b16 %v1117
    %v1288 = vunpack.c.l.b16 %v1118
    %v1289 = vunpack.c.h.b16 %v1118
    %v1290 = vunpack.c.l.b16 %v1119
    %v1291 = vunpack.c.h.b16 %v1119
    %v1292 = vunpack.c.l.b16 %v1120
    %v1293 = vunpack.c.h.b16 %v1120
    %v1294 = vunpack.c.l.b16 %v1121
    %v1295 = vunpack.c.h.b16 %v1121
    %v1296 = vunpack.c.l.b16 %v1122
    %v1297 = vunpack.c.h.b16 %v1122
    %v1298 = vunpack.c.l.b16 %v1123
    %v1299 = vunpack.c.h.b16 %v1123
    %v1300 = vunpack.c.l.b16 %v1124
    %v1301 = vunpack.c.h.b16 %v1124
    %v1302 = vunpack.c.l.b16 %v1125
    %v1303 = vunpack.c.h.b16 %v1125
    %v1304 = vunpack.c.l.b16 %v1126
    %v1305 = vunpack.c.h.b16 %v1126
    %v1306 = vunpack.c.l.b16 %v1127
    %v1307 = vunpack.c.h.b16 %v1127
    %v1308 = vunpack.c.l.b16 %v1128
    %v1309 = vunpack.c.h.b16 %v1128
    %v1310 = vunpack.c.l.b16 %v1129
    %v1311 = vunpack.c.h.b16 %v1129
    %v1312 = vunpack.c.l.b16 %v1130
    %v1313 = vunpack.c.h.b16 %v1130
    %v1314 = vunpack.c.l.b16 %v1131
    %v1315 = vunpack.c.h.b16 %v1131
    %v1316 = vunpack.c.l.b16 %v1132
    %v1317 = vunpack.c.h.b16 %v1132
    %v1318 = vunpack.c.l.b16 %v1133
    %v1319 = vunpack.c.h.b16 %v1133
    %v1320 = vunpack.c.l.b16 %v1134
    %v1321 = vunpack.c.h.b16 %v1134
    %v1322 = vunpack.c.l.b16 %v1135
    %v1323 = vunpack.c.h.b16 %v1135
    %v1324 = vunpack.c.l.b16 %v1136
    %v1325 = vunpack.c.h.b16 %v1136
    %v1326 = vunpack.c.l.b16 %v1137
    %v1327 = vunpack.c.h.b16 %v1137
    %v1328 = vunpack.c.l.b16 %v1138
    %v1329 = vunpack.c.h.b16 %v1138
    %v1330 = vunpack.c.l.b16 %v1139
    %v1331 = vunpack.c.h.b16 %v1139
    %v1332 = vunpack.c.l.b16 %v1140
    %v1333 = vunpack.c.h.b16 %v1140
    %v1334 = vunpack.c.l.b16 %v1141
    %v1335 = vunpack.c.h.b16 %v1141
    %v1336 = vunpack.c.l.b16 %v1142
    %v1337 = vunpack.c.h.b16 %v1142
    %v1338 = vunpack.c.l.b16 %v1143
    %v1339 = vunpack.c.h.b16 %v1143
    %v1340 = vunpack.c.l.b16 %v1144
    %v1341 = vunpack.c.h.b16 %v1144
    %v1342 = vunpack.c.l.b16 %v1145
    %v1343 = vunpack.c.h.b16 %v1145
    %v1344 = vunpack.c.l.b16 %v1146
    %v1345 = vunpack.c.h.b16 %v1146
    %v1346 = vunpack.c.l.b16 %v1147
    %v1347 = vunpack.c.h.b16 %v1147
    %v1348 = vunpack.c.l.b16 %v1148
    %v1349 = vunpack.c.h.b16 %v1148
    %v1350 = vunpack.c.l.b16 %v1149
    %v1351 = vunpack.c.h.b16 %v1149
    %v1352 = vunpack.c.l.b16 %v1150
    %v1353 = vunpack.c.h.b16 %v1150
    %v1354 = vunpack.c.l.b16 %v1151
    %v1355 = vunpack.c.h.b16 %v1151
    %v1356 = vunpack.c.l.b16 %v1152
    %v1357 = vunpack.c.h.b16 %v1152
    %v1358 = vunpack.c.l.b16 %v1153
    %v1359 = vunpack.c.h.b16 %v1153
    %v1360 = vunpack.c.l.b16 %v1154
    %v1361 = vunpack.c.h.b16 %v1154
    %v1362 = vunpack.c.l.b16 %v1155
    %v1363 = vunpack.c.h.b16 %v1155
    %v1364 = vunpack.c.l.b16 %v1156
    %v1365 = vunpack.c.h.b16 %v1156
    %v1366 = vunpack.c.l.b16 %v1157
    %v1367 = vunpack.c.h.b16 %v1157
    %v1368 = vunpack.c.l.b16 %v1158
    %v1369 = vunpack.c.h.b16 %v1158
    %v1370 = vunpack.c.l.b16 %v1159
    %v1371 = vunpack.c.h.b16 %v1159
    %v1372 = vunpack.c.l.b16 %v1160
    %v1373 = vunpack.c.h.b16 %v1160
    %v1374 = vunpack.c.l.b16 %v1161
    %v1375 = vunpack.c.h.b16 %v1161
    %v1376 = vpack.c.b16 %v1252, %v1248
    %v1377 = vpack.c.b16 %v1253, %v1249
    %v1378 = vpack.c.b16 %v1254, %v1250
    %v1379 = vpack.c.b16 %v1255, %v1251
    %v1380 = vpack.c.b16 %v1260, %v1256
    %v1381 = vpack.c.b16 %v1261, %v1257
    %v1382 = vpack.c.b16 %v1262, %v1258
    %v1383 = vpack.c.b16 %v1263, %v1259
    %v1384 = vpack.c.b16 %v1268, %v1264
    %v1385 = vpack.c.b16 %v1269, %v1265
    %v1386 = vpack.c.b16 %v1270, %v1266
    %v1387 = vpack.c.b16 %v1271, %v1267
    %v1388 = vpack.c.b16 %v1276, %v1272
    %v1389 = vpack.c.b16 %v1277, %v1273
    %v1390 = vpack.c.b16 %v1278, %v1274
    %v1391 = vpack.c.b16 %v1279, %v1275
    %v1392 = vpack.c.b16 %v1284, %v1280
    %v1393 = vpack.c.b16 %v1285, %v1281
    %v1394 = vpack.c.b16 %v1286, %v1282
    %v1395 = vpack.c.b16 %v1287, %v1283
    %v1396 = vpack.c.b16 %v1292, %v1288
    %v1397 = vpack.c.b16 %v1293, %v1289
    %v1398 = vpack.c.b16 %v1294, %v1290
    %v1399 = vpack.c.b16 %v1295, %v1291
    %v1400 = vpack.c.b16 %v1300, %v1296
    %v1401 = vpack.c.b16 %v1301, %v1297
    %v1402 = vpack.c.b16 %v1302, %v1298
    %v1403 = vpack.c.b16 %v1303, %v1299
    %v1404 = vpack.c.b16 %v1308, %v1304
    %v1405 = vpack.c.b16 %v1309, %v1305
    %v1406 = vpack.c.b16 %v1310, %v1306
    %v1407 = vpack.c.b16 %v1311, %v1307
    %v1408 = vpack.c.b16 %v1316, %v1312
    %v1409 = vpack.c.b16 %v1317, %v1313
    %v1410 = vpack.c.b16 %v1318, %v1314
    %v1411 = vpack.c.b16 %v1319, %v1315
    %v1412 = vpack.c.b16 %v1324, %v1320
    %v1413 = vpack.c.b16 %v1325, %v1321
    %v1414 = vpack.c.b16 %v1326, %v1322
    %v1415 = vpack.c.b16 %v1327, %v1323
    %v1416 = vpack.c.b16 %v1332, %v1328
    %v1417 = vpack.c.b16 %v1333, %v1329
    %v1418 = vpack.c.b16 %v1334, %v1330
    %v1419 = vpack.c.b16 %v1335, %v1331
    %v1420 = vpack.c.b16 %v1340, %v1336
    %v1421 = vpack.c.b16 %v1341, %v1337
    %v1422 = vpack.c.b16 %v1342, %v1338
    %v1423 = vpack.c.b16 %v1343, %v1339
    %v1424 = vpack.c.b16 %v1348, %v1344
    %v1425 = vpack.c.b16 %v1349, %v1345
    %v1426 = vpack.c.b16 %v1350, %v1346
    %v1427 = vpack.c.b16 %v1351, %v1347
    %v1428 = vpack.c.b16 %v1356, %v1352
    %v1429 = vpack.c.b16 %v1357, %v1353
    %v1430 = vpack.c.b16 %v1358, %v1354
    %v1431 = vpack.c.b16 %v1359, %v1355
    %v1432 = vpack.c.b16 %v1364, %v1360
    %v1433 = vpack.c.b16 %v1365, %v1361
    %v1434 = vpack.c.b16 %v1366, %v1362
    %v1435 = vpack.c.b16 %v1367, %v1363
    %v1436 = vpack.c.b16 %v1372, %v1368
    %v1437 = vpack.c.b16 %v1373, %v1369
    %v1438 = vpack.c.b16 %v1374, %v1370
    %v1439 = vpack.c.b16 %v1375, %v1371
    %1504 = vmatprep.subr.bf16.mxu0 %v1377
    %1505 = vmatpush1.bf16.msra.mxu0 %v1376
    %1506 = vmatprep.subr.bf16.mxu0 %v1381
    %1507 = vmatpush1.bf16.msra.mxu0 %v1380
    %1508 = vmatprep.subr.bf16.mxu0 %v1385
    %1509 = vmatpush1.bf16.msra.mxu0 %v1384
    %1510 = vmatprep.subr.bf16.mxu0 %v1389
    %1511 = vmatpush1.bf16.msra.mxu0 %v1388
    %1512 = vmatprep.subr.bf16.mxu0 %v1393
    %1513 = vmatpush1.bf16.msra.mxu0 %v1392
    %1514 = vmatprep.subr.bf16.mxu0 %v1397
    %1515 = vmatpush1.bf16.msra.mxu0 %v1396
    %1516 = vmatprep.subr.bf16.mxu0 %v1401
    %1517 = vmatpush1.bf16.msra.mxu0 %v1400
    %1518 = vmatprep.subr.bf16.mxu0 %v1405
    %1519 = vmatpush1.bf16.msra.mxu0 %v1404
    %1520 = vmatprep.subr.bf16.mxu0 %v1409
    %1521 = vmatpush1.bf16.msra.mxu0 %v1408
    %1522 = vmatprep.subr.bf16.mxu0 %v1413
    %1523 = vmatpush1.bf16.msra.mxu0 %v1412
    %1524 = vmatprep.subr.bf16.mxu0 %v1417
    %1525 = vmatpush1.bf16.msra.mxu0 %v1416
    %1526 = vmatprep.subr.bf16.mxu0 %v1421
    %1527 = vmatpush1.bf16.msra.mxu0 %v1420
    %1528 = vmatprep.subr.bf16.mxu0 %v1425
    %1529 = vmatpush1.bf16.msra.mxu0 %v1424
    %1530 = vmatprep.subr.bf16.mxu0 %v1429
    %1531 = vmatpush1.bf16.msra.mxu0 %v1428
    %1532 = vmatprep.subr.bf16.mxu0 %v1433
    %1533 = vmatpush1.bf16.msra.mxu0 %v1432
    %1534 = vmatprep.subr.bf16.mxu0 %v1437
    %1535 = vmatpush1.bf16.msra.mxu0 %v1436
    %1536 = vmatprep.mubr.bf16.mxu0 %v1097
    %1537 = vmatmul.mubr.bf16.gmra.mrb[0].mxu0 %v1096
    %v1538 = vpop.f32.mrb[0].mxu0
    %v1539 = vadd.f32 %v1167, %v1538
    %v1540 = vpop.f32.mrb[0].mxu0
    %v1541 = vadd.f32 %v1171, %v1540
    %v1542 = vpop.f32.mrb[0].mxu0
    %v1543 = vpop.f32.mrb[0].mxu0
    %1544 = vdwg.mxu0
    %1545 = vmatprep.subr.bf16.mxu0 %v1379
    %1546 = vmatpush1.bf16.msra.mxu0 %v1378
    %1547 = vmatprep.subr.bf16.mxu0 %v1383
    %1548 = vmatpush1.bf16.msra.mxu0 %v1382
    %1549 = vmatprep.subr.bf16.mxu0 %v1387
    %1550 = vmatpush1.bf16.msra.mxu0 %v1386
    %1551 = vmatprep.subr.bf16.mxu0 %v1391
    %1552 = vmatpush1.bf16.msra.mxu0 %v1390
    %1553 = vmatprep.subr.bf16.mxu0 %v1395
    %1554 = vmatpush1.bf16.msra.mxu0 %v1394
    %1555 = vmatprep.subr.bf16.mxu0 %v1399
    %1556 = vmatpush1.bf16.msra.mxu0 %v1398
    %1557 = vmatprep.subr.bf16.mxu0 %v1403
    %1558 = vmatpush1.bf16.msra.mxu0 %v1402
    %1559 = vmatprep.subr.bf16.mxu0 %v1407
    %1560 = vmatpush1.bf16.msra.mxu0 %v1406
    %1561 = vmatprep.subr.bf16.mxu0 %v1411
    %1562 = vmatpush1.bf16.msra.mxu0 %v1410
    %1563 = vmatprep.subr.bf16.mxu0 %v1415
    %1564 = vmatpush1.bf16.msra.mxu0 %v1414
    %1565 = vmatprep.subr.bf16.mxu0 %v1419
    %1566 = vmatpush1.bf16.msra.mxu0 %v1418
    %1567 = vmatprep.subr.bf16.mxu0 %v1423
    %1568 = vmatpush1.bf16.msra.mxu0 %v1422
    %1569 = vmatprep.subr.bf16.mxu0 %v1427
    %1570 = vmatpush1.bf16.msra.mxu0 %v1426
    %1571 = vmatprep.subr.bf16.mxu0 %v1431
    %1572 = vmatpush1.bf16.msra.mxu0 %v1430
    %1573 = vmatprep.subr.bf16.mxu0 %v1435
    %1574 = vmatpush1.bf16.msra.mxu0 %v1434
    %1575 = vmatprep.subr.bf16.mxu0 %v1439
    %1576 = vmatpush1.bf16.msra.mxu0 %v1438
    %1577 = vmatprep.mubr.bf16.mxu0 %v1097
    %1578 = vmatmul.mubr.bf16.gmra.mrb[0].mxu0 %v1096
    %v1579 = vpop.f32.mrb[0].mxu0
    %v1580 = vadd.f32 %v1175, %v1579
    %v1581 = vpop.f32.mrb[0].mxu0
    %v1582 = vadd.f32 %v1179, %v1581
    %v1583 = vpop.f32.mrb[0].mxu0
    %v1584 = vpop.f32.mrb[0].mxu0
    %1585 = vdwg.mxu0
    %v1586 = vmax.f32 %v1539, 0.0
    %v1587 = vmax.f32 %v1541, 0.0
    %v1588 = vmax.f32 %v1580, 0.0
    %v1589 = vmax.f32 %v1582, 0.0
    %v1590 = vpack.c.bf16 %v1586, %v1586
    %v1591 = vpack.c.bf16 %v1587, %v1587
    %v1592 = vpack.c.bf16 %v1588, %v1588
    %v1593 = vpack.c.bf16 %v1589, %v1589
    %v1594 = vld [vmem:[#allocation9] sm:$0xff]
    %v1595 = vld [vmem:[#allocation9 + $0x8] sm:$0xff]
    %v1596 = vld [vmem:[#allocation9 + $0x10] sm:$0xff]
    %v1597 = vld [vmem:[#allocation9 + $0x18] sm:$0xff]
    %v1598 = vld [vmem:[#allocation9 + $0x20] sm:$0xff]
    %v1599 = vld [vmem:[#allocation9 + $0x28] sm:$0xff]
    %v1600 = vld [vmem:[#allocation9 + $0x30] sm:$0xff]
    %v1601 = vld [vmem:[#allocation9 + $0x38] sm:$0xff]
    %v1602 = vld [vmem:[#allocation9 + $0x40] sm:$0xff]
    %v1603 = vld [vmem:[#allocation9 + $0x48] sm:$0xff]
    %v1604 = vld [vmem:[#allocation9 + $0x50] sm:$0xff]
    %v1605 = vld [vmem:[#allocation9 + $0x58] sm:$0xff]
    %v1606 = vld [vmem:[#allocation9 + $0x60] sm:$0xff]
    %v1607 = vld [vmem:[#allocation9 + $0x68] sm:$0xff]
    %v1608 = vld [vmem:[#allocation9 + $0x70] sm:$0xff]
    %v1609 = vld [vmem:[#allocation9 + $0x78] sm:$0xff]
    %v1610 = vld [vmem:[#allocation9 + $0x80] sm:$0xff]
    %v1611 = vld [vmem:[#allocation9 + $0x88] sm:$0xff]
    %v1612 = vld [vmem:[#allocation9 + $0x90] sm:$0xff]
    %v1613 = vld [vmem:[#allocation9 + $0x98] sm:$0xff]
    %v1614 = vld [vmem:[#allocation9 + $0xa0] sm:$0xff]
    %v1615 = vld [vmem:[#allocation9 + $0xa8] sm:$0xff]
    %v1616 = vld [vmem:[#allocation9 + $0xb0] sm:$0xff]
    %v1617 = vld [vmem:[#allocation9 + $0xb8] sm:$0xff]
    %v1618 = vld [vmem:[#allocation9 + $0xc0] sm:$0xff]
    %v1619 = vld [vmem:[#allocation9 + $0xc8] sm:$0xff]
    %v1620 = vld [vmem:[#allocation9 + $0xd0] sm:$0xff]
    %v1621 = vld [vmem:[#allocation9 + $0xd8] sm:$0xff]
    %v1622 = vld [vmem:[#allocation9 + $0xe0] sm:$0xff]
    %v1623 = vld [vmem:[#allocation9 + $0xe8] sm:$0xff]
    %v1624 = vld [vmem:[#allocation9 + $0xf0] sm:$0xff]
    %v1625 = vld [vmem:[#allocation9 + $0xf8] sm:$0xff]
    %v1626 = vld [vmem:[#allocation9 + $0x100] sm:$0xff]
    %v1627 = vld [vmem:[#allocation9 + $0x108] sm:$0xff]
    %v1628 = vld [vmem:[#allocation9 + $0x110] sm:$0xff]
    %v1629 = vld [vmem:[#allocation9 + $0x118] sm:$0xff]
    %v1630 = vld [vmem:[#allocation9 + $0x120] sm:$0xff]
    %v1631 = vld [vmem:[#allocation9 + $0x128] sm:$0xff]
    %v1632 = vld [vmem:[#allocation9 + $0x130] sm:$0xff]
    %v1633 = vld [vmem:[#allocation9 + $0x138] sm:$0xff]
    %v1634 = vld [vmem:[#allocation9 + $0x140] sm:$0xff]
    %v1635 = vld [vmem:[#allocation9 + $0x148] sm:$0xff]
    %v1636 = vld [vmem:[#allocation9 + $0x150] sm:$0xff]
    %v1637 = vld [vmem:[#allocation9 + $0x158] sm:$0xff]
    %v1638 = vld [vmem:[#allocation9 + $0x160] sm:$0xff]
    %v1639 = vld [vmem:[#allocation9 + $0x168] sm:$0xff]
    %v1640 = vld [vmem:[#allocation9 + $0x170] sm:$0xff]
    %v1641 = vld [vmem:[#allocation9 + $0x178] sm:$0xff]
    %v1642 = vld [vmem:[#allocation9 + $0x180] sm:$0xff]
    %v1643 = vld [vmem:[#allocation9 + $0x188] sm:$0xff]
    %v1644 = vld [vmem:[#allocation9 + $0x190] sm:$0xff]
    %v1645 = vld [vmem:[#allocation9 + $0x198] sm:$0xff]
    %v1646 = vld [vmem:[#allocation9 + $0x1a0] sm:$0xff]
    %v1647 = vld [vmem:[#allocation9 + $0x1a8] sm:$0xff]
    %v1648 = vld [vmem:[#allocation9 + $0x1b0] sm:$0xff]
    %v1649 = vld [vmem:[#allocation9 + $0x1b8] sm:$0xff]
    %v1650 = vld [vmem:[#allocation9 + $0x1c0] sm:$0xff]
    %v1651 = vld [vmem:[#allocation9 + $0x1c8] sm:$0xff]
    %v1652 = vld [vmem:[#allocation9 + $0x1d0] sm:$0xff]
    %v1653 = vld [vmem:[#allocation9 + $0x1d8] sm:$0xff]
    %v1654 = vld [vmem:[#allocation9 + $0x1e0] sm:$0xff]
    %v1655 = vld [vmem:[#allocation9 + $0x1e8] sm:$0xff]
    %v1656 = vld [vmem:[#allocation9 + $0x1f0] sm:$0xff]
    %v1657 = vld [vmem:[#allocation9 + $0x1f8] sm:$0xff]
    %v1658 = vld [vmem:[#allocation9 + $0x200] sm:$0xff]
    %v1659 = vld [vmem:[#allocation9 + $0x208] sm:$0xff]
    %v1660 = vld [vmem:[#allocation9 + $0x210] sm:$0xff]
    %v1661 = vld [vmem:[#allocation9 + $0x218] sm:$0xff]
    %v1662 = vld [vmem:[#allocation9 + $0x220] sm:$0xff]
    %v1663 = vld [vmem:[#allocation9 + $0x228] sm:$0xff]
    %v1664 = vld [vmem:[#allocation9 + $0x230] sm:$0xff]
    %v1665 = vld [vmem:[#allocation9 + $0x238] sm:$0xff]
    %v1666 = vld [vmem:[#allocation9 + $0x240] sm:$0xff]
    %v1667 = vld [vmem:[#allocation9 + $0x248] sm:$0xff]
    %v1668 = vld [vmem:[#allocation9 + $0x250] sm:$0xff]
    %v1669 = vld [vmem:[#allocation9 + $0x258] sm:$0xff]
    %v1670 = vld [vmem:[#allocation9 + $0x260] sm:$0xff]
    %v1671 = vld [vmem:[#allocation9 + $0x268] sm:$0xff]
    %v1672 = vld [vmem:[#allocation9 + $0x270] sm:$0xff]
    %v1673 = vld [vmem:[#allocation9 + $0x278] sm:$0xff]
    %v1674 = vld [vmem:[#allocation9 + $0x280] sm:$0xff]
    %v1675 = vld [vmem:[#allocation9 + $0x288] sm:$0xff]
    %v1676 = vld [vmem:[#allocation9 + $0x290] sm:$0xff]
    %v1677 = vld [vmem:[#allocation9 + $0x298] sm:$0xff]
    %v1678 = vld [vmem:[#allocation9 + $0x2a0] sm:$0xff]
    %v1679 = vld [vmem:[#allocation9 + $0x2a8] sm:$0xff]
    %v1680 = vld [vmem:[#allocation9 + $0x2b0] sm:$0xff]
    %v1681 = vld [vmem:[#allocation9 + $0x2b8] sm:$0xff]
    %v1682 = vld [vmem:[#allocation9 + $0x2c0] sm:$0xff]
    %v1683 = vld [vmem:[#allocation9 + $0x2c8] sm:$0xff]
    %v1684 = vld [vmem:[#allocation9 + $0x2d0] sm:$0xff]
    %v1685 = vld [vmem:[#allocation9 + $0x2d8] sm:$0xff]
    %v1686 = vld [vmem:[#allocation9 + $0x2e0] sm:$0xff]
    %v1687 = vld [vmem:[#allocation9 + $0x2e8] sm:$0xff]
    %v1688 = vld [vmem:[#allocation9 + $0x2f0] sm:$0xff]
    %v1689 = vld [vmem:[#allocation9 + $0x2f8] sm:$0xff]
    %v1690 = vld [vmem:[#allocation9 + $0x300] sm:$0xff]
    %v1691 = vld [vmem:[#allocation9 + $0x308] sm:$0xff]
    %v1692 = vld [vmem:[#allocation9 + $0x310] sm:$0xff]
    %v1693 = vld [vmem:[#allocation9 + $0x318] sm:$0xff]
    %v1694 = vld [vmem:[#allocation9 + $0x320] sm:$0xff]
    %v1695 = vld [vmem:[#allocation9 + $0x328] sm:$0xff]
    %v1696 = vld [vmem:[#allocation9 + $0x330] sm:$0xff]
    %v1697 = vld [vmem:[#allocation9 + $0x338] sm:$0xff]
    %v1698 = vld [vmem:[#allocation9 + $0x340] sm:$0xff]
    %v1699 = vld [vmem:[#allocation9 + $0x348] sm:$0xff]
    %v1700 = vld [vmem:[#allocation9 + $0x350] sm:$0xff]
    %v1701 = vld [vmem:[#allocation9 + $0x358] sm:$0xff]
    %v1702 = vld [vmem:[#allocation9 + $0x360] sm:$0xff]
    %v1703 = vld [vmem:[#allocation9 + $0x368] sm:$0xff]
    %v1704 = vld [vmem:[#allocation9 + $0x370] sm:$0xff]
    %v1705 = vld [vmem:[#allocation9 + $0x378] sm:$0xff]
    %v1706 = vld [vmem:[#allocation9 + $0x380] sm:$0xff]
    %v1707 = vld [vmem:[#allocation9 + $0x388] sm:$0xff]
    %v1708 = vld [vmem:[#allocation9 + $0x390] sm:$0xff]
    %v1709 = vld [vmem:[#allocation9 + $0x398] sm:$0xff]
    %v1710 = vld [vmem:[#allocation9 + $0x3a0] sm:$0xff]
    %v1711 = vld [vmem:[#allocation9 + $0x3a8] sm:$0xff]
    %v1712 = vld [vmem:[#allocation9 + $0x3b0] sm:$0xff]
    %v1713 = vld [vmem:[#allocation9 + $0x3b8] sm:$0xff]
    %v1714 = vld [vmem:[#allocation9 + $0x3c0] sm:$0xff]
    %v1715 = vld [vmem:[#allocation9 + $0x3c8] sm:$0xff]
    %v1716 = vld [vmem:[#allocation9 + $0x3d0] sm:$0xff]
    %v1717 = vld [vmem:[#allocation9 + $0x3d8] sm:$0xff]
    %v1718 = vld [vmem:[#allocation9 + $0x3e0] sm:$0xff]
    %v1719 = vld [vmem:[#allocation9 + $0x3e8] sm:$0xff]
    %v1720 = vld [vmem:[#allocation9 + $0x3f0] sm:$0xff]
    %v1721 = vld [vmem:[#allocation9 + $0x3f8] sm:$0xff]
    %v1722 = vld [vmem:[#allocation9 + $0x400] sm:$0xff]
    %v1723 = vld [vmem:[#allocation9 + $0x408] sm:$0xff]
    %v1724 = vld [vmem:[#allocation9 + $0x410] sm:$0xff]
    %v1725 = vld [vmem:[#allocation9 + $0x418] sm:$0xff]
    %v1726 = vld [vmem:[#allocation9 + $0x420] sm:$0xff]
    %v1727 = vld [vmem:[#allocation9 + $0x428] sm:$0xff]
    %v1728 = vld [vmem:[#allocation9 + $0x430] sm:$0xff]
    %v1729 = vld [vmem:[#allocation9 + $0x438] sm:$0xff]
    %v1730 = vld [vmem:[#allocation9 + $0x440] sm:$0xff]
    %v1731 = vld [vmem:[#allocation9 + $0x448] sm:$0xff]
    %v1732 = vld [vmem:[#allocation9 + $0x450] sm:$0xff]
    %v1733 = vld [vmem:[#allocation9 + $0x458] sm:$0xff]
    %v1734 = vld [vmem:[#allocation9 + $0x460] sm:$0xff]
    %v1735 = vld [vmem:[#allocation9 + $0x468] sm:$0xff]
    %v1736 = vld [vmem:[#allocation9 + $0x470] sm:$0xff]
    %v1737 = vld [vmem:[#allocation9 + $0x478] sm:$0xff]
    %v1738 = vld [vmem:[#allocation9 + $0x480] sm:$0xff]
    %v1739 = vld [vmem:[#allocation9 + $0x488] sm:$0xff]
    %v1740 = vld [vmem:[#allocation9 + $0x490] sm:$0xff]
    %v1741 = vld [vmem:[#allocation9 + $0x498] sm:$0xff]
    %v1742 = vld [vmem:[#allocation9 + $0x4a0] sm:$0xff]
    %v1743 = vld [vmem:[#allocation9 + $0x4a8] sm:$0xff]
    %v1744 = vld [vmem:[#allocation9 + $0x4b0] sm:$0xff]
    %v1745 = vld [vmem:[#allocation9 + $0x4b8] sm:$0xff]
    %v1746 = vld [vmem:[#allocation9 + $0x4c0] sm:$0xff]
    %v1747 = vld [vmem:[#allocation9 + $0x4c8] sm:$0xff]
    %v1748 = vld [vmem:[#allocation9 + $0x4d0] sm:$0xff]
    %v1749 = vld [vmem:[#allocation9 + $0x4d8] sm:$0xff]
    %v1750 = vld [vmem:[#allocation9 + $0x4e0] sm:$0xff]
    %v1751 = vld [vmem:[#allocation9 + $0x4e8] sm:$0xff]
    %v1752 = vld [vmem:[#allocation9 + $0x4f0] sm:$0xff]
    %v1753 = vld [vmem:[#allocation9 + $0x4f8] sm:$0xff]
    %v1754 = vld [vmem:[#allocation9 + $0x500] sm:$0xff]
    %v1755 = vld [vmem:[#allocation9 + $0x508] sm:$0xff]
    %v1756 = vld [vmem:[#allocation9 + $0x510] sm:$0xff]
    %v1757 = vld [vmem:[#allocation9 + $0x518] sm:$0xff]
    %v1758 = vld [vmem:[#allocation9 + $0x520] sm:$0xff]
    %v1759 = vld [vmem:[#allocation9 + $0x528] sm:$0xff]
    %v1760 = vld [vmem:[#allocation9 + $0x530] sm:$0xff]
    %v1761 = vld [vmem:[#allocation9 + $0x538] sm:$0xff]
    %v1762 = vld [vmem:[#allocation9 + $0x540] sm:$0xff]
    %v1763 = vld [vmem:[#allocation9 + $0x548] sm:$0xff]
    %v1764 = vld [vmem:[#allocation9 + $0x550] sm:$0xff]
    %v1765 = vld [vmem:[#allocation9 + $0x558] sm:$0xff]
    %v1766 = vld [vmem:[#allocation9 + $0x560] sm:$0xff]
    %v1767 = vld [vmem:[#allocation9 + $0x568] sm:$0xff]
    %v1768 = vld [vmem:[#allocation9 + $0x570] sm:$0xff]
    %v1769 = vld [vmem:[#allocation9 + $0x578] sm:$0xff]
    %v1770 = vld [vmem:[#allocation9 + $0x580] sm:$0xff]
    %v1771 = vld [vmem:[#allocation9 + $0x588] sm:$0xff]
    %v1772 = vld [vmem:[#allocation9 + $0x590] sm:$0xff]
    %v1773 = vld [vmem:[#allocation9 + $0x598] sm:$0xff]
    %v1774 = vld [vmem:[#allocation9 + $0x5a0] sm:$0xff]
    %v1775 = vld [vmem:[#allocation9 + $0x5a8] sm:$0xff]
    %v1776 = vld [vmem:[#allocation9 + $0x5b0] sm:$0xff]
    %v1777 = vld [vmem:[#allocation9 + $0x5b8] sm:$0xff]
    %v1778 = vld [vmem:[#allocation9 + $0x5c0] sm:$0xff]
    %v1779 = vld [vmem:[#allocation9 + $0x5c8] sm:$0xff]
    %v1780 = vld [vmem:[#allocation9 + $0x5d0] sm:$0xff]
    %v1781 = vld [vmem:[#allocation9 + $0x5d8] sm:$0xff]
    %v1782 = vld [vmem:[#allocation9 + $0x5e0] sm:$0xff]
    %v1783 = vld [vmem:[#allocation9 + $0x5e8] sm:$0xff]
    %v1784 = vld [vmem:[#allocation9 + $0x5f0] sm:$0xff]
    %v1785 = vld [vmem:[#allocation9 + $0x5f8] sm:$0xff]
    %v1786 = vld [vmem:[#allocation9 + $0x600] sm:$0xff]
    %v1787 = vld [vmem:[#allocation9 + $0x608] sm:$0xff]
    %v1788 = vld [vmem:[#allocation9 + $0x610] sm:$0xff]
    %v1789 = vld [vmem:[#allocation9 + $0x618] sm:$0xff]
    %v1790 = vld [vmem:[#allocation9 + $0x620] sm:$0xff]
    %v1791 = vld [vmem:[#allocation9 + $0x628] sm:$0xff]
    %v1792 = vld [vmem:[#allocation9 + $0x630] sm:$0xff]
    %v1793 = vld [vmem:[#allocation9 + $0x638] sm:$0xff]
    %v1794 = vld [vmem:[#allocation9 + $0x640] sm:$0xff]
    %v1795 = vld [vmem:[#allocation9 + $0x648] sm:$0xff]
    %v1796 = vld [vmem:[#allocation9 + $0x650] sm:$0xff]
    %v1797 = vld [vmem:[#allocation9 + $0x658] sm:$0xff]
    %v1798 = vld [vmem:[#allocation9 + $0x660] sm:$0xff]
    %v1799 = vld [vmem:[#allocation9 + $0x668] sm:$0xff]
    %v1800 = vld [vmem:[#allocation9 + $0x670] sm:$0xff]
    %v1801 = vld [vmem:[#allocation9 + $0x678] sm:$0xff]
    %v1802 = vld [vmem:[#allocation9 + $0x680] sm:$0xff]
    %v1803 = vld [vmem:[#allocation9 + $0x688] sm:$0xff]
    %v1804 = vld [vmem:[#allocation9 + $0x690] sm:$0xff]
    %v1805 = vld [vmem:[#allocation9 + $0x698] sm:$0xff]
    %v1806 = vld [vmem:[#allocation9 + $0x6a0] sm:$0xff]
    %v1807 = vld [vmem:[#allocation9 + $0x6a8] sm:$0xff]
    %v1808 = vld [vmem:[#allocation9 + $0x6b0] sm:$0xff]
    %v1809 = vld [vmem:[#allocation9 + $0x6b8] sm:$0xff]
    %v1810 = vld [vmem:[#allocation9 + $0x6c0] sm:$0xff]
    %v1811 = vld [vmem:[#allocation9 + $0x6c8] sm:$0xff]
    %v1812 = vld [vmem:[#allocation9 + $0x6d0] sm:$0xff]
    %v1813 = vld [vmem:[#allocation9 + $0x6d8] sm:$0xff]
    %v1814 = vld [vmem:[#allocation9 + $0x6e0] sm:$0xff]
    %v1815 = vld [vmem:[#allocation9 + $0x6e8] sm:$0xff]
    %v1816 = vld [vmem:[#allocation9 + $0x6f0] sm:$0xff]
    %v1817 = vld [vmem:[#allocation9 + $0x6f8] sm:$0xff]
    %v1818 = vld [vmem:[#allocation9 + $0x700] sm:$0xff]
    %v1819 = vld [vmem:[#allocation9 + $0x708] sm:$0xff]
    %v1820 = vld [vmem:[#allocation9 + $0x710] sm:$0xff]
    %v1821 = vld [vmem:[#allocation9 + $0x718] sm:$0xff]
    %v1822 = vld [vmem:[#allocation9 + $0x720] sm:$0xff]
    %v1823 = vld [vmem:[#allocation9 + $0x728] sm:$0xff]
    %v1824 = vld [vmem:[#allocation9 + $0x730] sm:$0xff]
    %v1825 = vld [vmem:[#allocation9 + $0x738] sm:$0xff]
    %v1826 = vld [vmem:[#allocation9 + $0x740] sm:$0xff]
    %v1827 = vld [vmem:[#allocation9 + $0x748] sm:$0xff]
    %v1828 = vld [vmem:[#allocation9 + $0x750] sm:$0xff]
    %v1829 = vld [vmem:[#allocation9 + $0x758] sm:$0xff]
    %v1830 = vld [vmem:[#allocation9 + $0x760] sm:$0xff]
    %v1831 = vld [vmem:[#allocation9 + $0x768] sm:$0xff]
    %v1832 = vld [vmem:[#allocation9 + $0x770] sm:$0xff]
    %v1833 = vld [vmem:[#allocation9 + $0x778] sm:$0xff]
    %v1834 = vld [vmem:[#allocation9 + $0x780] sm:$0xff]
    %v1835 = vld [vmem:[#allocation9 + $0x788] sm:$0xff]
    %v1836 = vld [vmem:[#allocation9 + $0x790] sm:$0xff]
    %v1837 = vld [vmem:[#allocation9 + $0x798] sm:$0xff]
    %v1838 = vld [vmem:[#allocation9 + $0x7a0] sm:$0xff]
    %v1839 = vld [vmem:[#allocation9 + $0x7a8] sm:$0xff]
    %v1840 = vld [vmem:[#allocation9 + $0x7b0] sm:$0xff]
    %v1841 = vld [vmem:[#allocation9 + $0x7b8] sm:$0xff]
    %v1842 = vld [vmem:[#allocation9 + $0x7c0] sm:$0xff]
    %v1843 = vld [vmem:[#allocation9 + $0x7c8] sm:$0xff]
    %v1844 = vld [vmem:[#allocation9 + $0x7d0] sm:$0xff]
    %v1845 = vld [vmem:[#allocation9 + $0x7d8] sm:$0xff]
    %v1846 = vld [vmem:[#allocation9 + $0x7e0] sm:$0xff]
    %v1847 = vld [vmem:[#allocation9 + $0x7e8] sm:$0xff]
    %v1848 = vld [vmem:[#allocation9 + $0x7f0] sm:$0xff]
    %v1849 = vld [vmem:[#allocation9 + $0x7f8] sm:$0xff]
    %v1850 = vld [vmem:[#allocation9 + $0x800] sm:$0xff]
    %v1851 = vld [vmem:[#allocation9 + $0x808] sm:$0xff]
    %v1852 = vld [vmem:[#allocation9 + $0x810] sm:$0xff]
    %v1853 = vld [vmem:[#allocation9 + $0x818] sm:$0xff]
    %v1854 = vld [vmem:[#allocation9 + $0x820] sm:$0xff]
    %v1855 = vld [vmem:[#allocation9 + $0x828] sm:$0xff]
    %v1856 = vld [vmem:[#allocation9 + $0x830] sm:$0xff]
    %v1857 = vld [vmem:[#allocation9 + $0x838] sm:$0xff]
    %v1858 = vld [vmem:[#allocation9 + $0x840] sm:$0xff]
    %v1859 = vld [vmem:[#allocation9 + $0x848] sm:$0xff]
    %v1860 = vld [vmem:[#allocation9 + $0x850] sm:$0xff]
    %v1861 = vld [vmem:[#allocation9 + $0x858] sm:$0xff]
    %v1862 = vld [vmem:[#allocation9 + $0x860] sm:$0xff]
    %v1863 = vld [vmem:[#allocation9 + $0x868] sm:$0xff]
    %v1864 = vld [vmem:[#allocation9 + $0x870] sm:$0xff]
    %v1865 = vld [vmem:[#allocation9 + $0x878] sm:$0xff]
    %v1866 = vld [vmem:[#allocation9 + $0x880] sm:$0xff]
    %v1867 = vld [vmem:[#allocation9 + $0x888] sm:$0xff]
    %v1868 = vld [vmem:[#allocation9 + $0x890] sm:$0xff]
    %v1869 = vld [vmem:[#allocation9 + $0x898] sm:$0xff]
    %v1870 = vld [vmem:[#allocation9 + $0x8a0] sm:$0xff]
    %v1871 = vld [vmem:[#allocation9 + $0x8a8] sm:$0xff]
    %v1872 = vld [vmem:[#allocation9 + $0x8b0] sm:$0xff]
    %v1873 = vld [vmem:[#allocation9 + $0x8b8] sm:$0xff]
    %v1874 = vld [vmem:[#allocation9 + $0x8c0] sm:$0xff]
    %v1875 = vld [vmem:[#allocation9 + $0x8c8] sm:$0xff]
    %v1876 = vld [vmem:[#allocation9 + $0x8d0] sm:$0xff]
    %v1877 = vld [vmem:[#allocation9 + $0x8d8] sm:$0xff]
    %v1878 = vld [vmem:[#allocation9 + $0x8e0] sm:$0xff]
    %v1879 = vld [vmem:[#allocation9 + $0x8e8] sm:$0xff]
    %v1880 = vld [vmem:[#allocation9 + $0x8f0] sm:$0xff]
    %v1881 = vld [vmem:[#allocation9 + $0x8f8] sm:$0xff]
    %v1882 = vld [vmem:[#allocation9 + $0x900] sm:$0xff]
    %v1883 = vld [vmem:[#allocation9 + $0x908] sm:$0xff]
    %v1884 = vld [vmem:[#allocation9 + $0x910] sm:$0xff]
    %v1885 = vld [vmem:[#allocation9 + $0x918] sm:$0xff]
    %v1886 = vld [vmem:[#allocation9 + $0x920] sm:$0xff]
    %v1887 = vld [vmem:[#allocation9 + $0x928] sm:$0xff]
    %v1888 = vld [vmem:[#allocation9 + $0x930] sm:$0xff]
    %v1889 = vld [vmem:[#allocation9 + $0x938] sm:$0xff]
    %v1890 = vld [vmem:[#allocation9 + $0x940] sm:$0xff]
    %v1891 = vld [vmem:[#allocation9 + $0x948] sm:$0xff]
    %v1892 = vld [vmem:[#allocation9 + $0x950] sm:$0xff]
    %v1893 = vld [vmem:[#allocation9 + $0x958] sm:$0xff]
    %v1894 = vld [vmem:[#allocation9 + $0x960] sm:$0xff]
    %v1895 = vld [vmem:[#allocation9 + $0x968] sm:$0xff]
    %v1896 = vld [vmem:[#allocation9 + $0x970] sm:$0xff]
    %v1897 = vld [vmem:[#allocation9 + $0x978] sm:$0xff]
    %v1898 = vld [vmem:[#allocation9 + $0x980] sm:$0xff]
    %v1899 = vld [vmem:[#allocation9 + $0x988] sm:$0xff]
    %v1900 = vld [vmem:[#allocation9 + $0x990] sm:$0xff]
    %v1901 = vld [vmem:[#allocation9 + $0x998] sm:$0xff]
    %v1902 = vld [vmem:[#allocation9 + $0x9a0] sm:$0xff]
    %v1903 = vld [vmem:[#allocation9 + $0x9a8] sm:$0xff]
    %v1904 = vld [vmem:[#allocation9 + $0x9b0] sm:$0xff]
    %v1905 = vld [vmem:[#allocation9 + $0x9b8] sm:$0xff]
    %v1906 = vld [vmem:[#allocation9 + $0x9c0] sm:$0xff]
    %v1907 = vld [vmem:[#allocation9 + $0x9c8] sm:$0xff]
    %v1908 = vld [vmem:[#allocation9 + $0x9d0] sm:$0xff]
    %v1909 = vld [vmem:[#allocation9 + $0x9d8] sm:$0xff]
    %v1910 = vld [vmem:[#allocation9 + $0x9e0] sm:$0xff]
    %v1911 = vld [vmem:[#allocation9 + $0x9e8] sm:$0xff]
    %v1912 = vld [vmem:[#allocation9 + $0x9f0] sm:$0xff]
    %v1913 = vld [vmem:[#allocation9 + $0x9f8] sm:$0xff]
    %v1914 = vld [vmem:[#allocation9 + $0xa00] sm:$0xff]
    %v1915 = vld [vmem:[#allocation9 + $0xa08] sm:$0xff]
    %v1916 = vld [vmem:[#allocation9 + $0xa10] sm:$0xff]
    %v1917 = vld [vmem:[#allocation9 + $0xa18] sm:$0xff]
    %v1918 = vld [vmem:[#allocation9 + $0xa20] sm:$0xff]
    %v1919 = vld [vmem:[#allocation9 + $0xa28] sm:$0xff]
    %v1920 = vld [vmem:[#allocation9 + $0xa30] sm:$0xff]
    %v1921 = vld [vmem:[#allocation9 + $0xa38] sm:$0xff]
    %v1922 = vld [vmem:[#allocation9 + $0xa40] sm:$0xff]
    %v1923 = vld [vmem:[#allocation9 + $0xa48] sm:$0xff]
    %v1924 = vld [vmem:[#allocation9 + $0xa50] sm:$0xff]
    %v1925 = vld [vmem:[#allocation9 + $0xa58] sm:$0xff]
    %v1926 = vld [vmem:[#allocation9 + $0xa60] sm:$0xff]
    %v1927 = vld [vmem:[#allocation9 + $0xa68] sm:$0xff]
    %v1928 = vld [vmem:[#allocation9 + $0xa70] sm:$0xff]
    %v1929 = vld [vmem:[#allocation9 + $0xa78] sm:$0xff]
    %v1930 = vld [vmem:[#allocation9 + $0xa80] sm:$0xff]
    %v1931 = vld [vmem:[#allocation9 + $0xa88] sm:$0xff]
    %v1932 = vld [vmem:[#allocation9 + $0xa90] sm:$0xff]
    %v1933 = vld [vmem:[#allocation9 + $0xa98] sm:$0xff]
    %v1934 = vld [vmem:[#allocation9 + $0xaa0] sm:$0xff]
    %v1935 = vld [vmem:[#allocation9 + $0xaa8] sm:$0xff]
    %v1936 = vld [vmem:[#allocation9 + $0xab0] sm:$0xff]
    %v1937 = vld [vmem:[#allocation9 + $0xab8] sm:$0xff]
    %v1938 = vld [vmem:[#allocation9 + $0xac0] sm:$0xff]
    %v1939 = vld [vmem:[#allocation9 + $0xac8] sm:$0xff]
    %v1940 = vld [vmem:[#allocation9 + $0xad0] sm:$0xff]
    %v1941 = vld [vmem:[#allocation9 + $0xad8] sm:$0xff]
    %v1942 = vld [vmem:[#allocation9 + $0xae0] sm:$0xff]
    %v1943 = vld [vmem:[#allocation9 + $0xae8] sm:$0xff]
    %v1944 = vld [vmem:[#allocation9 + $0xaf0] sm:$0xff]
    %v1945 = vld [vmem:[#allocation9 + $0xaf8] sm:$0xff]
    %v1946 = vld [vmem:[#allocation9 + $0xb00] sm:$0xff]
    %v1947 = vld [vmem:[#allocation9 + $0xb08] sm:$0xff]
    %v1948 = vld [vmem:[#allocation9 + $0xb10] sm:$0xff]
    %v1949 = vld [vmem:[#allocation9 + $0xb18] sm:$0xff]
    %v1950 = vld [vmem:[#allocation9 + $0xb20] sm:$0xff]
    %v1951 = vld [vmem:[#allocation9 + $0xb28] sm:$0xff]
    %v1952 = vld [vmem:[#allocation9 + $0xb30] sm:$0xff]
    %v1953 = vld [vmem:[#allocation9 + $0xb38] sm:$0xff]
    %v1954 = vld [vmem:[#allocation9 + $0xb40] sm:$0xff]
    %v1955 = vld [vmem:[#allocation9 + $0xb48] sm:$0xff]
    %v1956 = vld [vmem:[#allocation9 + $0xb50] sm:$0xff]
    %v1957 = vld [vmem:[#allocation9 + $0xb58] sm:$0xff]
    %v1958 = vld [vmem:[#allocation9 + $0xb60] sm:$0xff]
    %v1959 = vld [vmem:[#allocation9 + $0xb68] sm:$0xff]
    %v1960 = vld [vmem:[#allocation9 + $0xb70] sm:$0xff]
    %v1961 = vld [vmem:[#allocation9 + $0xb78] sm:$0xff]
    %v1962 = vld [vmem:[#allocation9 + $0xb80] sm:$0xff]
    %v1963 = vld [vmem:[#allocation9 + $0xb88] sm:$0xff]
    %v1964 = vld [vmem:[#allocation9 + $0xb90] sm:$0xff]
    %v1965 = vld [vmem:[#allocation9 + $0xb98] sm:$0xff]
    %v1966 = vld [vmem:[#allocation9 + $0xba0] sm:$0xff]
    %v1967 = vld [vmem:[#allocation9 + $0xba8] sm:$0xff]
    %v1968 = vld [vmem:[#allocation9 + $0xbb0] sm:$0xff]
    %v1969 = vld [vmem:[#allocation9 + $0xbb8] sm:$0xff]
    %v1970 = vld [vmem:[#allocation9 + $0xbc0] sm:$0xff]
    %v1971 = vld [vmem:[#allocation9 + $0xbc8] sm:$0xff]
    %v1972 = vld [vmem:[#allocation9 + $0xbd0] sm:$0xff]
    %v1973 = vld [vmem:[#allocation9 + $0xbd8] sm:$0xff]
    %v1974 = vld [vmem:[#allocation9 + $0xbe0] sm:$0xff]
    %v1975 = vld [vmem:[#allocation9 + $0xbe8] sm:$0xff]
    %v1976 = vld [vmem:[#allocation9 + $0xbf0] sm:$0xff]
    %v1977 = vld [vmem:[#allocation9 + $0xbf8] sm:$0xff]
    %v1978 = vld [vmem:[#allocation9 + $0xc00] sm:$0xff]
    %v1979 = vld [vmem:[#allocation9 + $0xc08] sm:$0xff]
    %v1980 = vld [vmem:[#allocation9 + $0xc10] sm:$0xff]
    %v1981 = vld [vmem:[#allocation9 + $0xc18] sm:$0xff]
    %v1982 = vld [vmem:[#allocation9 + $0xc20] sm:$0xff]
    %v1983 = vld [vmem:[#allocation9 + $0xc28] sm:$0xff]
    %v1984 = vld [vmem:[#allocation9 + $0xc30] sm:$0xff]
    %v1985 = vld [vmem:[#allocation9 + $0xc38] sm:$0xff]
    %v1986 = vld [vmem:[#allocation9 + $0xc40] sm:$0xff]
    %v1987 = vld [vmem:[#allocation9 + $0xc48] sm:$0xff]
    %v1988 = vld [vmem:[#allocation9 + $0xc50] sm:$0xff]
    %v1989 = vld [vmem:[#allocation9 + $0xc58] sm:$0xff]
    %v1990 = vld [vmem:[#allocation9 + $0xc60] sm:$0xff]
    %v1991 = vld [vmem:[#allocation9 + $0xc68] sm:$0xff]
    %v1992 = vld [vmem:[#allocation9 + $0xc70] sm:$0xff]
    %v1993 = vld [vmem:[#allocation9 + $0xc78] sm:$0xff]
    %v1994 = vld [vmem:[#allocation9 + $0xc80] sm:$0xff]
    %v1995 = vld [vmem:[#allocation9 + $0xc88] sm:$0xff]
    %v1996 = vld [vmem:[#allocation9 + $0xc90] sm:$0xff]
    %v1997 = vld [vmem:[#allocation9 + $0xc98] sm:$0xff]
    %v1998 = vld [vmem:[#allocation9 + $0xca0] sm:$0xff]
    %v1999 = vld [vmem:[#allocation9 + $0xca8] sm:$0xff]
    %v2000 = vld [vmem:[#allocation9 + $0xcb0] sm:$0xff]
    %v2001 = vld [vmem:[#allocation9 + $0xcb8] sm:$0xff]
    %v2002 = vld [vmem:[#allocation9 + $0xcc0] sm:$0xff]
    %v2003 = vld [vmem:[#allocation9 + $0xcc8] sm:$0xff]
    %v2004 = vld [vmem:[#allocation9 + $0xcd0] sm:$0xff]
    %v2005 = vld [vmem:[#allocation9 + $0xcd8] sm:$0xff]
    %v2006 = vld [vmem:[#allocation9 + $0xce0] sm:$0xff]
    %v2007 = vld [vmem:[#allocation9 + $0xce8] sm:$0xff]
    %v2008 = vld [vmem:[#allocation9 + $0xcf0] sm:$0xff]
    %v2009 = vld [vmem:[#allocation9 + $0xcf8] sm:$0xff]
    %v2010 = vld [vmem:[#allocation9 + $0xd00] sm:$0xff]
    %v2011 = vld [vmem:[#allocation9 + $0xd08] sm:$0xff]
    %v2012 = vld [vmem:[#allocation9 + $0xd10] sm:$0xff]
    %v2013 = vld [vmem:[#allocation9 + $0xd18] sm:$0xff]
    %v2014 = vld [vmem:[#allocation9 + $0xd20] sm:$0xff]
    %v2015 = vld [vmem:[#allocation9 + $0xd28] sm:$0xff]
    %v2016 = vld [vmem:[#allocation9 + $0xd30] sm:$0xff]
    %v2017 = vld [vmem:[#allocation9 + $0xd38] sm:$0xff]
    %v2018 = vld [vmem:[#allocation9 + $0xd40] sm:$0xff]
    %v2019 = vld [vmem:[#allocation9 + $0xd48] sm:$0xff]
    %v2020 = vld [vmem:[#allocation9 + $0xd50] sm:$0xff]
    %v2021 = vld [vmem:[#allocation9 + $0xd58] sm:$0xff]
    %v2022 = vld [vmem:[#allocation9 + $0xd60] sm:$0xff]
    %v2023 = vld [vmem:[#allocation9 + $0xd68] sm:$0xff]
    %v2024 = vld [vmem:[#allocation9 + $0xd70] sm:$0xff]
    %v2025 = vld [vmem:[#allocation9 + $0xd78] sm:$0xff]
    %v2026 = vld [vmem:[#allocation9 + $0xd80] sm:$0xff]
    %v2027 = vld [vmem:[#allocation9 + $0xd88] sm:$0xff]
    %v2028 = vld [vmem:[#allocation9 + $0xd90] sm:$0xff]
    %v2029 = vld [vmem:[#allocation9 + $0xd98] sm:$0xff]
    %v2030 = vld [vmem:[#allocation9 + $0xda0] sm:$0xff]
    %v2031 = vld [vmem:[#allocation9 + $0xda8] sm:$0xff]
    %v2032 = vld [vmem:[#allocation9 + $0xdb0] sm:$0xff]
    %v2033 = vld [vmem:[#allocation9 + $0xdb8] sm:$0xff]
    %v2034 = vld [vmem:[#allocation9 + $0xdc0] sm:$0xff]
    %v2035 = vld [vmem:[#allocation9 + $0xdc8] sm:$0xff]
    %v2036 = vld [vmem:[#allocation9 + $0xdd0] sm:$0xff]
    %v2037 = vld [vmem:[#allocation9 + $0xdd8] sm:$0xff]
    %v2038 = vld [vmem:[#allocation9 + $0xde0] sm:$0xff]
    %v2039 = vld [vmem:[#allocation9 + $0xde8] sm:$0xff]
    %v2040 = vld [vmem:[#allocation9 + $0xdf0] sm:$0xff]
    %v2041 = vld [vmem:[#allocation9 + $0xdf8] sm:$0xff]
    %v2042 = vld [vmem:[#allocation9 + $0xe00] sm:$0xff]
    %v2043 = vld [vmem:[#allocation9 + $0xe08] sm:$0xff]
    %v2044 = vld [vmem:[#allocation9 + $0xe10] sm:$0xff]
    %v2045 = vld [vmem:[#allocation9 + $0xe18] sm:$0xff]
    %v2046 = vld [vmem:[#allocation9 + $0xe20] sm:$0xff]
    %v2047 = vld [vmem:[#allocation9 + $0xe28] sm:$0xff]
    %v2048 = vld [vmem:[#allocation9 + $0xe30] sm:$0xff]
    %v2049 = vld [vmem:[#allocation9 + $0xe38] sm:$0xff]
    %v2050 = vld [vmem:[#allocation9 + $0xe40] sm:$0xff]
    %v2051 = vld [vmem:[#allocation9 + $0xe48] sm:$0xff]
    %v2052 = vld [vmem:[#allocation9 + $0xe50] sm:$0xff]
    %v2053 = vld [vmem:[#allocation9 + $0xe58] sm:$0xff]
    %v2054 = vld [vmem:[#allocation9 + $0xe60] sm:$0xff]
    %v2055 = vld [vmem:[#allocation9 + $0xe68] sm:$0xff]
    %v2056 = vld [vmem:[#allocation9 + $0xe70] sm:$0xff]
    %v2057 = vld [vmem:[#allocation9 + $0xe78] sm:$0xff]
    %v2058 = vld [vmem:[#allocation9 + $0xe80] sm:$0xff]
    %v2059 = vld [vmem:[#allocation9 + $0xe88] sm:$0xff]
    %v2060 = vld [vmem:[#allocation9 + $0xe90] sm:$0xff]
    %v2061 = vld [vmem:[#allocation9 + $0xe98] sm:$0xff]
    %v2062 = vld [vmem:[#allocation9 + $0xea0] sm:$0xff]
    %v2063 = vld [vmem:[#allocation9 + $0xea8] sm:$0xff]
    %v2064 = vld [vmem:[#allocation9 + $0xeb0] sm:$0xff]
    %v2065 = vld [vmem:[#allocation9 + $0xeb8] sm:$0xff]
    %v2066 = vld [vmem:[#allocation9 + $0xec0] sm:$0xff]
    %v2067 = vld [vmem:[#allocation9 + $0xec8] sm:$0xff]
    %v2068 = vld [vmem:[#allocation9 + $0xed0] sm:$0xff]
    %v2069 = vld [vmem:[#allocation9 + $0xed8] sm:$0xff]
    %v2070 = vld [vmem:[#allocation9 + $0xee0] sm:$0xff]
    %v2071 = vld [vmem:[#allocation9 + $0xee8] sm:$0xff]
    %v2072 = vld [vmem:[#allocation9 + $0xef0] sm:$0xff]
    %v2073 = vld [vmem:[#allocation9 + $0xef8] sm:$0xff]
    %v2074 = vld [vmem:[#allocation9 + $0xf00] sm:$0xff]
    %v2075 = vld [vmem:[#allocation9 + $0xf08] sm:$0xff]
    %v2076 = vld [vmem:[#allocation9 + $0xf10] sm:$0xff]
    %v2077 = vld [vmem:[#allocation9 + $0xf18] sm:$0xff]
    %v2078 = vld [vmem:[#allocation9 + $0xf20] sm:$0xff]
    %v2079 = vld [vmem:[#allocation9 + $0xf28] sm:$0xff]
    %v2080 = vld [vmem:[#allocation9 + $0xf30] sm:$0xff]
    %v2081 = vld [vmem:[#allocation9 + $0xf38] sm:$0xff]
    %v2082 = vld [vmem:[#allocation9 + $0xf40] sm:$0xff]
    %v2083 = vld [vmem:[#allocation9 + $0xf48] sm:$0xff]
    %v2084 = vld [vmem:[#allocation9 + $0xf50] sm:$0xff]
    %v2085 = vld [vmem:[#allocation9 + $0xf58] sm:$0xff]
    %v2086 = vld [vmem:[#allocation9 + $0xf60] sm:$0xff]
    %v2087 = vld [vmem:[#allocation9 + $0xf68] sm:$0xff]
    %v2088 = vld [vmem:[#allocation9 + $0xf70] sm:$0xff]
    %v2089 = vld [vmem:[#allocation9 + $0xf78] sm:$0xff]
    %v2090 = vld [vmem:[#allocation9 + $0xf80] sm:$0xff]
    %v2091 = vld [vmem:[#allocation9 + $0xf88] sm:$0xff]
    %v2092 = vld [vmem:[#allocation9 + $0xf90] sm:$0xff]
    %v2093 = vld [vmem:[#allocation9 + $0xf98] sm:$0xff]
    %v2094 = vld [vmem:[#allocation9 + $0xfa0] sm:$0xff]
    %v2095 = vld [vmem:[#allocation9 + $0xfa8] sm:$0xff]
    %v2096 = vld [vmem:[#allocation9 + $0xfb0] sm:$0xff]
    %v2097 = vld [vmem:[#allocation9 + $0xfb8] sm:$0xff]
    %v2098 = vld [vmem:[#allocation9 + $0xfc0] sm:$0xff]
    %v2099 = vld [vmem:[#allocation9 + $0xfc8] sm:$0xff]
    %v2100 = vld [vmem:[#allocation9 + $0xfd0] sm:$0xff]
    %v2101 = vld [vmem:[#allocation9 + $0xfd8] sm:$0xff]
    %v2102 = vld [vmem:[#allocation9 + $0xfe0] sm:$0xff]
    %v2103 = vld [vmem:[#allocation9 + $0xfe8] sm:$0xff]
    %v2104 = vld [vmem:[#allocation9 + $0xff0] sm:$0xff]
    %v2105 = vld [vmem:[#allocation9 + $0xff8] sm:$0xff]
    %v2106 = vld [vmem:[#allocation10] sm:$0xff]
    %v2107 = vld [vmem:[#allocation10 + $0x8] sm:$0xff]
    %v2110 = vlaneseq
    %v2111 = vshrl.u32 %v2110, 7
    %v2112 = vsub.s32 0, %v2111
    %v2113 = vrot.slane %v2106, %v2112
    %v2114 = vlaneseq
    %v2115 = vshrl.u32 %v2114, 7
    %v2116 = vsub.s32 1, %v2115
    %v2117 = vrot.slane %v2106, %v2116
    %v2118 = vlaneseq
    %v2119 = vshrl.u32 %v2118, 7
    %v2120 = vsub.s32 2, %v2119
    %v2121 = vrot.slane %v2106, %v2120
    %v2122 = vlaneseq
    %v2123 = vshrl.u32 %v2122, 7
    %v2124 = vsub.s32 3, %v2123
    %v2125 = vrot.slane %v2106, %v2124
    %v2126 = vlaneseq
    %v2127 = vshrl.u32 %v2126, 7
    %v2128 = vsub.s32 4, %v2127
    %v2129 = vrot.slane %v2106, %v2128
    %v2130 = vlaneseq
    %v2131 = vshrl.u32 %v2130, 7
    %v2132 = vsub.s32 5, %v2131
    %v2133 = vrot.slane %v2106, %v2132
    %v2134 = vlaneseq
    %v2135 = vshrl.u32 %v2134, 7
    %v2136 = vsub.s32 6, %v2135
    %v2137 = vrot.slane %v2106, %v2136
    %v2138 = vlaneseq
    %v2139 = vshrl.u32 %v2138, 7
    %v2140 = vsub.s32 7, %v2139
    %v2141 = vrot.slane %v2106, %v2140
    %v2142 = vlaneseq
    %v2143 = vshrl.u32 %v2142, 7
    %v2144 = vsub.s32 0, %v2143
    %v2145 = vrot.slane %v2107, %v2144
    %v2146 = vlaneseq
    %v2147 = vshrl.u32 %v2146, 7
    %v2148 = vsub.s32 1, %v2147
    %v2149 = vrot.slane %v2107, %v2148
    %v2150 = vlaneseq
    %v2151 = vshrl.u32 %v2150, 7
    %v2152 = vsub.s32 2, %v2151
    %v2153 = vrot.slane %v2107, %v2152
    %v2154 = vlaneseq
    %v2155 = vshrl.u32 %v2154, 7
    %v2156 = vsub.s32 3, %v2155
    %v2157 = vrot.slane %v2107, %v2156
    %v2158 = vlaneseq
    %v2159 = vshrl.u32 %v2158, 7
    %v2160 = vsub.s32 4, %v2159
    %v2161 = vrot.slane %v2107, %v2160
    %v2162 = vlaneseq
    %v2163 = vshrl.u32 %v2162, 7
    %v2164 = vsub.s32 5, %v2163
    %v2165 = vrot.slane %v2107, %v2164
    %v2166 = vlaneseq
    %v2167 = vshrl.u32 %v2166, 7
    %v2168 = vsub.s32 6, %v2167
    %v2169 = vrot.slane %v2107, %v2168
    %v2170 = vlaneseq
    %v2171 = vshrl.u32 %v2170, 7
    %v2172 = vsub.s32 7, %v2171
    %v2173 = vrot.slane %v2107, %v2172
    %v2702 = vunpack.c.l.b16 %v1594
    %v2703 = vunpack.c.h.b16 %v1594
    %v2704 = vunpack.c.l.b16 %v1595
    %v2705 = vunpack.c.h.b16 %v1595
    %v2706 = vunpack.c.l.b16 %v1596
    %v2707 = vunpack.c.h.b16 %v1596
    %v2708 = vunpack.c.l.b16 %v1597
    %v2709 = vunpack.c.h.b16 %v1597
    %v2710 = vunpack.c.l.b16 %v1598
    %v2711 = vunpack.c.h.b16 %v1598
    %v2712 = vunpack.c.l.b16 %v1599
    %v2713 = vunpack.c.h.b16 %v1599
    %v2714 = vunpack.c.l.b16 %v1600
    %v2715 = vunpack.c.h.b16 %v1600
    %v2716 = vunpack.c.l.b16 %v1601
    %v2717 = vunpack.c.h.b16 %v1601
    %v2718 = vunpack.c.l.b16 %v1602
    %v2719 = vunpack.c.h.b16 %v1602
    %v2720 = vunpack.c.l.b16 %v1603
    %v2721 = vunpack.c.h.b16 %v1603
    %v2722 = vunpack.c.l.b16 %v1604
    %v2723 = vunpack.c.h.b16 %v1604
    %v2724 = vunpack.c.l.b16 %v1605
    %v2725 = vunpack.c.h.b16 %v1605
    %v2726 = vunpack.c.l.b16 %v1606
    %v2727 = vunpack.c.h.b16 %v1606
    %v2728 = vunpack.c.l.b16 %v1607
    %v2729 = vunpack.c.h.b16 %v1607
    %v2730 = vunpack.c.l.b16 %v1608
    %v2731 = vunpack.c.h.b16 %v1608
    %v2732 = vunpack.c.l.b16 %v1609
    %v2733 = vunpack.c.h.b16 %v1609
    %v2734 = vunpack.c.l.b16 %v1610
    %v2735 = vunpack.c.h.b16 %v1610
    %v2736 = vunpack.c.l.b16 %v1611
    %v2737 = vunpack.c.h.b16 %v1611
    %v2738 = vunpack.c.l.b16 %v1612
    %v2739 = vunpack.c.h.b16 %v1612
    %v2740 = vunpack.c.l.b16 %v1613
    %v2741 = vunpack.c.h.b16 %v1613
    %v2742 = vunpack.c.l.b16 %v1614
    %v2743 = vunpack.c.h.b16 %v1614
    %v2744 = vunpack.c.l.b16 %v1615
    %v2745 = vunpack.c.h.b16 %v1615
    %v2746 = vunpack.c.l.b16 %v1616
    %v2747 = vunpack.c.h.b16 %v1616
    %v2748 = vunpack.c.l.b16 %v1617
    %v2749 = vunpack.c.h.b16 %v1617
    %v2750 = vunpack.c.l.b16 %v1618
    %v2751 = vunpack.c.h.b16 %v1618
    %v2752 = vunpack.c.l.b16 %v1619
    %v2753 = vunpack.c.h.b16 %v1619
    %v2754 = vunpack.c.l.b16 %v1620
    %v2755 = vunpack.c.h.b16 %v1620
    %v2756 = vunpack.c.l.b16 %v1621
    %v2757 = vunpack.c.h.b16 %v1621
    %v2758 = vunpack.c.l.b16 %v1622
    %v2759 = vunpack.c.h.b16 %v1622
    %v2760 = vunpack.c.l.b16 %v1623
    %v2761 = vunpack.c.h.b16 %v1623
    %v2762 = vunpack.c.l.b16 %v1624
    %v2763 = vunpack.c.h.b16 %v1624
    %v2764 = vunpack.c.l.b16 %v1625
    %v2765 = vunpack.c.h.b16 %v1625
    %v2766 = vunpack.c.l.b16 %v1626
    %v2767 = vunpack.c.h.b16 %v1626
    %v2768 = vunpack.c.l.b16 %v1627
    %v2769 = vunpack.c.h.b16 %v1627
    %v2770 = vunpack.c.l.b16 %v1628
    %v2771 = vunpack.c.h.b16 %v1628
    %v2772 = vunpack.c.l.b16 %v1629
    %v2773 = vunpack.c.h.b16 %v1629
    %v2774 = vunpack.c.l.b16 %v1630
    %v2775 = vunpack.c.h.b16 %v1630
    %v2776 = vunpack.c.l.b16 %v1631
    %v2777 = vunpack.c.h.b16 %v1631
    %v2778 = vunpack.c.l.b16 %v1632
    %v2779 = vunpack.c.h.b16 %v1632
    %v2780 = vunpack.c.l.b16 %v1633
    %v2781 = vunpack.c.h.b16 %v1633
    %v2782 = vunpack.c.l.b16 %v1634
    %v2783 = vunpack.c.h.b16 %v1634
    %v2784 = vunpack.c.l.b16 %v1635
    %v2785 = vunpack.c.h.b16 %v1635
    %v2786 = vunpack.c.l.b16 %v1636
    %v2787 = vunpack.c.h.b16 %v1636
    %v2788 = vunpack.c.l.b16 %v1637
    %v2789 = vunpack.c.h.b16 %v1637
    %v2790 = vunpack.c.l.b16 %v1638
    %v2791 = vunpack.c.h.b16 %v1638
    %v2792 = vunpack.c.l.b16 %v1639
    %v2793 = vunpack.c.h.b16 %v1639
    %v2794 = vunpack.c.l.b16 %v1640
    %v2795 = vunpack.c.h.b16 %v1640
    %v2796 = vunpack.c.l.b16 %v1641
    %v2797 = vunpack.c.h.b16 %v1641
    %v2798 = vunpack.c.l.b16 %v1642
    %v2799 = vunpack.c.h.b16 %v1642
    %v2800 = vunpack.c.l.b16 %v1643
    %v2801 = vunpack.c.h.b16 %v1643
    %v2802 = vunpack.c.l.b16 %v1644
    %v2803 = vunpack.c.h.b16 %v1644
    %v2804 = vunpack.c.l.b16 %v1645
    %v2805 = vunpack.c.h.b16 %v1645
    %v2806 = vunpack.c.l.b16 %v1646
    %v2807 = vunpack.c.h.b16 %v1646
    %v2808 = vunpack.c.l.b16 %v1647
    %v2809 = vunpack.c.h.b16 %v1647
    %v2810 = vunpack.c.l.b16 %v1648
    %v2811 = vunpack.c.h.b16 %v1648
    %v2812 = vunpack.c.l.b16 %v1649
    %v2813 = vunpack.c.h.b16 %v1649
    %v2814 = vunpack.c.l.b16 %v1650
    %v2815 = vunpack.c.h.b16 %v1650
    %v2816 = vunpack.c.l.b16 %v1651
    %v2817 = vunpack.c.h.b16 %v1651
    %v2818 = vunpack.c.l.b16 %v1652
    %v2819 = vunpack.c.h.b16 %v1652
    %v2820 = vunpack.c.l.b16 %v1653
    %v2821 = vunpack.c.h.b16 %v1653
    %v2822 = vunpack.c.l.b16 %v1654
    %v2823 = vunpack.c.h.b16 %v1654
    %v2824 = vunpack.c.l.b16 %v1655
    %v2825 = vunpack.c.h.b16 %v1655
    %v2826 = vunpack.c.l.b16 %v1656
    %v2827 = vunpack.c.h.b16 %v1656
    %v2828 = vunpack.c.l.b16 %v1657
    %v2829 = vunpack.c.h.b16 %v1657
    %v2830 = vunpack.c.l.b16 %v1658
    %v2831 = vunpack.c.h.b16 %v1658
    %v2832 = vunpack.c.l.b16 %v1659
    %v2833 = vunpack.c.h.b16 %v1659
    %v2834 = vunpack.c.l.b16 %v1660
    %v2835 = vunpack.c.h.b16 %v1660
    %v2836 = vunpack.c.l.b16 %v1661
    %v2837 = vunpack.c.h.b16 %v1661
    %v2838 = vunpack.c.l.b16 %v1662
    %v2839 = vunpack.c.h.b16 %v1662
    %v2840 = vunpack.c.l.b16 %v1663
    %v2841 = vunpack.c.h.b16 %v1663
    %v2842 = vunpack.c.l.b16 %v1664
    %v2843 = vunpack.c.h.b16 %v1664
    %v2844 = vunpack.c.l.b16 %v1665
    %v2845 = vunpack.c.h.b16 %v1665
    %v2846 = vunpack.c.l.b16 %v1666
    %v2847 = vunpack.c.h.b16 %v1666
    %v2848 = vunpack.c.l.b16 %v1667
    %v2849 = vunpack.c.h.b16 %v1667
    %v2850 = vunpack.c.l.b16 %v1668
    %v2851 = vunpack.c.h.b16 %v1668
    %v2852 = vunpack.c.l.b16 %v1669
    %v2853 = vunpack.c.h.b16 %v1669
    %v2854 = vunpack.c.l.b16 %v1670
    %v2855 = vunpack.c.h.b16 %v1670
    %v2856 = vunpack.c.l.b16 %v1671
    %v2857 = vunpack.c.h.b16 %v1671
    %v2858 = vunpack.c.l.b16 %v1672
    %v2859 = vunpack.c.h.b16 %v1672
    %v2860 = vunpack.c.l.b16 %v1673
    %v2861 = vunpack.c.h.b16 %v1673
    %v2862 = vunpack.c.l.b16 %v1674
    %v2863 = vunpack.c.h.b16 %v1674
    %v2864 = vunpack.c.l.b16 %v1675
    %v2865 = vunpack.c.h.b16 %v1675
    %v2866 = vunpack.c.l.b16 %v1676
    %v2867 = vunpack.c.h.b16 %v1676
    %v2868 = vunpack.c.l.b16 %v1677
    %v2869 = vunpack.c.h.b16 %v1677
    %v2870 = vunpack.c.l.b16 %v1678
    %v2871 = vunpack.c.h.b16 %v1678
    %v2872 = vunpack.c.l.b16 %v1679
    %v2873 = vunpack.c.h.b16 %v1679
    %v2874 = vunpack.c.l.b16 %v1680
    %v2875 = vunpack.c.h.b16 %v1680
    %v2876 = vunpack.c.l.b16 %v1681
    %v2877 = vunpack.c.h.b16 %v1681
    %v2878 = vunpack.c.l.b16 %v1682
    %v2879 = vunpack.c.h.b16 %v1682
    %v2880 = vunpack.c.l.b16 %v1683
    %v2881 = vunpack.c.h.b16 %v1683
    %v2882 = vunpack.c.l.b16 %v1684
    %v2883 = vunpack.c.h.b16 %v1684
    %v2884 = vunpack.c.l.b16 %v1685
    %v2885 = vunpack.c.h.b16 %v1685
    %v2886 = vunpack.c.l.b16 %v1686
    %v2887 = vunpack.c.h.b16 %v1686
    %v2888 = vunpack.c.l.b16 %v1687
    %v2889 = vunpack.c.h.b16 %v1687
    %v2890 = vunpack.c.l.b16 %v1688
    %v2891 = vunpack.c.h.b16 %v1688
    %v2892 = vunpack.c.l.b16 %v1689
    %v2893 = vunpack.c.h.b16 %v1689
    %v2894 = vunpack.c.l.b16 %v1690
    %v2895 = vunpack.c.h.b16 %v1690
    %v2896 = vunpack.c.l.b16 %v1691
    %v2897 = vunpack.c.h.b16 %v1691
    %v2898 = vunpack.c.l.b16 %v1692
    %v2899 = vunpack.c.h.b16 %v1692
    %v2900 = vunpack.c.l.b16 %v1693
    %v2901 = vunpack.c.h.b16 %v1693
    %v2902 = vunpack.c.l.b16 %v1694
    %v2903 = vunpack.c.h.b16 %v1694
    %v2904 = vunpack.c.l.b16 %v1695
    %v2905 = vunpack.c.h.b16 %v1695
    %v2906 = vunpack.c.l.b16 %v1696
    %v2907 = vunpack.c.h.b16 %v1696
    %v2908 = vunpack.c.l.b16 %v1697
    %v2909 = vunpack.c.h.b16 %v1697
    %v2910 = vunpack.c.l.b16 %v1698
    %v2911 = vunpack.c.h.b16 %v1698
    %v2912 = vunpack.c.l.b16 %v1699
    %v2913 = vunpack.c.h.b16 %v1699
    %v2914 = vunpack.c.l.b16 %v1700
    %v2915 = vunpack.c.h.b16 %v1700
    %v2916 = vunpack.c.l.b16 %v1701
    %v2917 = vunpack.c.h.b16 %v1701
    %v2918 = vunpack.c.l.b16 %v1702
    %v2919 = vunpack.c.h.b16 %v1702
    %v2920 = vunpack.c.l.b16 %v1703
    %v2921 = vunpack.c.h.b16 %v1703
    %v2922 = vunpack.c.l.b16 %v1704
    %v2923 = vunpack.c.h.b16 %v1704
    %v2924 = vunpack.c.l.b16 %v1705
    %v2925 = vunpack.c.h.b16 %v1705
    %v2926 = vunpack.c.l.b16 %v1706
    %v2927 = vunpack.c.h.b16 %v1706
    %v2928 = vunpack.c.l.b16 %v1707
    %v2929 = vunpack.c.h.b16 %v1707
    %v2930 = vunpack.c.l.b16 %v1708
    %v2931 = vunpack.c.h.b16 %v1708
    %v2932 = vunpack.c.l.b16 %v1709
    %v2933 = vunpack.c.h.b16 %v1709
    %v2934 = vunpack.c.l.b16 %v1710
    %v2935 = vunpack.c.h.b16 %v1710
    %v2936 = vunpack.c.l.b16 %v1711
    %v2937 = vunpack.c.h.b16 %v1711
    %v2938 = vunpack.c.l.b16 %v1712
    %v2939 = vunpack.c.h.b16 %v1712
    %v2940 = vunpack.c.l.b16 %v1713
    %v2941 = vunpack.c.h.b16 %v1713
    %v2942 = vunpack.c.l.b16 %v1714
    %v2943 = vunpack.c.h.b16 %v1714
    %v2944 = vunpack.c.l.b16 %v1715
    %v2945 = vunpack.c.h.b16 %v1715
    %v2946 = vunpack.c.l.b16 %v1716
    %v2947 = vunpack.c.h.b16 %v1716
    %v2948 = vunpack.c.l.b16 %v1717
    %v2949 = vunpack.c.h.b16 %v1717
    %v2950 = vunpack.c.l.b16 %v1718
    %v2951 = vunpack.c.h.b16 %v1718
    %v2952 = vunpack.c.l.b16 %v1719
    %v2953 = vunpack.c.h.b16 %v1719
    %v2954 = vunpack.c.l.b16 %v1720
    %v2955 = vunpack.c.h.b16 %v1720
    %v2956 = vunpack.c.l.b16 %v1721
    %v2957 = vunpack.c.h.b16 %v1721
    %v2958 = vunpack.c.l.b16 %v1722
    %v2959 = vunpack.c.h.b16 %v1722
    %v2960 = vunpack.c.l.b16 %v1723
    %v2961 = vunpack.c.h.b16 %v1723
    %v2962 = vunpack.c.l.b16 %v1724
    %v2963 = vunpack.c.h.b16 %v1724
    %v2964 = vunpack.c.l.b16 %v1725
    %v2965 = vunpack.c.h.b16 %v1725
    %v2966 = vunpack.c.l.b16 %v1726
    %v2967 = vunpack.c.h.b16 %v1726
    %v2968 = vunpack.c.l.b16 %v1727
    %v2969 = vunpack.c.h.b16 %v1727
    %v2970 = vunpack.c.l.b16 %v1728
    %v2971 = vunpack.c.h.b16 %v1728
    %v2972 = vunpack.c.l.b16 %v1729
    %v2973 = vunpack.c.h.b16 %v1729
    %v2974 = vunpack.c.l.b16 %v1730
    %v2975 = vunpack.c.h.b16 %v1730
    %v2976 = vunpack.c.l.b16 %v1731
    %v2977 = vunpack.c.h.b16 %v1731
    %v2978 = vunpack.c.l.b16 %v1732
    %v2979 = vunpack.c.h.b16 %v1732
    %v2980 = vunpack.c.l.b16 %v1733
    %v2981 = vunpack.c.h.b16 %v1733
    %v2982 = vunpack.c.l.b16 %v1734
    %v2983 = vunpack.c.h.b16 %v1734
    %v2984 = vunpack.c.l.b16 %v1735
    %v2985 = vunpack.c.h.b16 %v1735
    %v2986 = vunpack.c.l.b16 %v1736
    %v2987 = vunpack.c.h.b16 %v1736
    %v2988 = vunpack.c.l.b16 %v1737
    %v2989 = vunpack.c.h.b16 %v1737
    %v2990 = vunpack.c.l.b16 %v1738
    %v2991 = vunpack.c.h.b16 %v1738
    %v2992 = vunpack.c.l.b16 %v1739
    %v2993 = vunpack.c.h.b16 %v1739
    %v2994 = vunpack.c.l.b16 %v1740
    %v2995 = vunpack.c.h.b16 %v1740
    %v2996 = vunpack.c.l.b16 %v1741
    %v2997 = vunpack.c.h.b16 %v1741
    %v2998 = vunpack.c.l.b16 %v1742
    %v2999 = vunpack.c.h.b16 %v1742
    %v3000 = vunpack.c.l.b16 %v1743
    %v3001 = vunpack.c.h.b16 %v1743
    %v3002 = vunpack.c.l.b16 %v1744
    %v3003 = vunpack.c.h.b16 %v1744
    %v3004 = vunpack.c.l.b16 %v1745
    %v3005 = vunpack.c.h.b16 %v1745
    %v3006 = vunpack.c.l.b16 %v1746
    %v3007 = vunpack.c.h.b16 %v1746
    %v3008 = vunpack.c.l.b16 %v1747
    %v3009 = vunpack.c.h.b16 %v1747
    %v3010 = vunpack.c.l.b16 %v1748
    %v3011 = vunpack.c.h.b16 %v1748
    %v3012 = vunpack.c.l.b16 %v1749
    %v3013 = vunpack.c.h.b16 %v1749
    %v3014 = vunpack.c.l.b16 %v1750
    %v3015 = vunpack.c.h.b16 %v1750
    %v3016 = vunpack.c.l.b16 %v1751
    %v3017 = vunpack.c.h.b16 %v1751
    %v3018 = vunpack.c.l.b16 %v1752
    %v3019 = vunpack.c.h.b16 %v1752
    %v3020 = vunpack.c.l.b16 %v1753
    %v3021 = vunpack.c.h.b16 %v1753
    %v3022 = vunpack.c.l.b16 %v1754
    %v3023 = vunpack.c.h.b16 %v1754
    %v3024 = vunpack.c.l.b16 %v1755
    %v3025 = vunpack.c.h.b16 %v1755
    %v3026 = vunpack.c.l.b16 %v1756
    %v3027 = vunpack.c.h.b16 %v1756
    %v3028 = vunpack.c.l.b16 %v1757
    %v3029 = vunpack.c.h.b16 %v1757
    %v3030 = vunpack.c.l.b16 %v1758
    %v3031 = vunpack.c.h.b16 %v1758
    %v3032 = vunpack.c.l.b16 %v1759
    %v3033 = vunpack.c.h.b16 %v1759
    %v3034 = vunpack.c.l.b16 %v1760
    %v3035 = vunpack.c.h.b16 %v1760
    %v3036 = vunpack.c.l.b16 %v1761
    %v3037 = vunpack.c.h.b16 %v1761
    %v3038 = vunpack.c.l.b16 %v1762
    %v3039 = vunpack.c.h.b16 %v1762
    %v3040 = vunpack.c.l.b16 %v1763
    %v3041 = vunpack.c.h.b16 %v1763
    %v3042 = vunpack.c.l.b16 %v1764
    %v3043 = vunpack.c.h.b16 %v1764
    %v3044 = vunpack.c.l.b16 %v1765
    %v3045 = vunpack.c.h.b16 %v1765
    %v3046 = vunpack.c.l.b16 %v1766
    %v3047 = vunpack.c.h.b16 %v1766
    %v3048 = vunpack.c.l.b16 %v1767
    %v3049 = vunpack.c.h.b16 %v1767
    %v3050 = vunpack.c.l.b16 %v1768
    %v3051 = vunpack.c.h.b16 %v1768
    %v3052 = vunpack.c.l.b16 %v1769
    %v3053 = vunpack.c.h.b16 %v1769
    %v3054 = vunpack.c.l.b16 %v1770
    %v3055 = vunpack.c.h.b16 %v1770
    %v3056 = vunpack.c.l.b16 %v1771
    %v3057 = vunpack.c.h.b16 %v1771
    %v3058 = vunpack.c.l.b16 %v1772
    %v3059 = vunpack.c.h.b16 %v1772
    %v3060 = vunpack.c.l.b16 %v1773
    %v3061 = vunpack.c.h.b16 %v1773
    %v3062 = vunpack.c.l.b16 %v1774
    %v3063 = vunpack.c.h.b16 %v1774
    %v3064 = vunpack.c.l.b16 %v1775
    %v3065 = vunpack.c.h.b16 %v1775
    %v3066 = vunpack.c.l.b16 %v1776
    %v3067 = vunpack.c.h.b16 %v1776
    %v3068 = vunpack.c.l.b16 %v1777
    %v3069 = vunpack.c.h.b16 %v1777
    %v3070 = vunpack.c.l.b16 %v1778
    %v3071 = vunpack.c.h.b16 %v1778
    %v3072 = vunpack.c.l.b16 %v1779
    %v3073 = vunpack.c.h.b16 %v1779
    %v3074 = vunpack.c.l.b16 %v1780
    %v3075 = vunpack.c.h.b16 %v1780
    %v3076 = vunpack.c.l.b16 %v1781
    %v3077 = vunpack.c.h.b16 %v1781
    %v3078 = vunpack.c.l.b16 %v1782
    %v3079 = vunpack.c.h.b16 %v1782
    %v3080 = vunpack.c.l.b16 %v1783
    %v3081 = vunpack.c.h.b16 %v1783
    %v3082 = vunpack.c.l.b16 %v1784
    %v3083 = vunpack.c.h.b16 %v1784
    %v3084 = vunpack.c.l.b16 %v1785
    %v3085 = vunpack.c.h.b16 %v1785
    %v3086 = vunpack.c.l.b16 %v1786
    %v3087 = vunpack.c.h.b16 %v1786
    %v3088 = vunpack.c.l.b16 %v1787
    %v3089 = vunpack.c.h.b16 %v1787
    %v3090 = vunpack.c.l.b16 %v1788
    %v3091 = vunpack.c.h.b16 %v1788
    %v3092 = vunpack.c.l.b16 %v1789
    %v3093 = vunpack.c.h.b16 %v1789
    %v3094 = vunpack.c.l.b16 %v1790
    %v3095 = vunpack.c.h.b16 %v1790
    %v3096 = vunpack.c.l.b16 %v1791
    %v3097 = vunpack.c.h.b16 %v1791
    %v3098 = vunpack.c.l.b16 %v1792
    %v3099 = vunpack.c.h.b16 %v1792
    %v3100 = vunpack.c.l.b16 %v1793
    %v3101 = vunpack.c.h.b16 %v1793
    %v3102 = vunpack.c.l.b16 %v1794
    %v3103 = vunpack.c.h.b16 %v1794
    %v3104 = vunpack.c.l.b16 %v1795
    %v3105 = vunpack.c.h.b16 %v1795
    %v3106 = vunpack.c.l.b16 %v1796
    %v3107 = vunpack.c.h.b16 %v1796
    %v3108 = vunpack.c.l.b16 %v1797
    %v3109 = vunpack.c.h.b16 %v1797
    %v3110 = vunpack.c.l.b16 %v1798
    %v3111 = vunpack.c.h.b16 %v1798
    %v3112 = vunpack.c.l.b16 %v1799
    %v3113 = vunpack.c.h.b16 %v1799
    %v3114 = vunpack.c.l.b16 %v1800
    %v3115 = vunpack.c.h.b16 %v1800
    %v3116 = vunpack.c.l.b16 %v1801
    %v3117 = vunpack.c.h.b16 %v1801
    %v3118 = vunpack.c.l.b16 %v1802
    %v3119 = vunpack.c.h.b16 %v1802
    %v3120 = vunpack.c.l.b16 %v1803
    %v3121 = vunpack.c.h.b16 %v1803
    %v3122 = vunpack.c.l.b16 %v1804
    %v3123 = vunpack.c.h.b16 %v1804
    %v3124 = vunpack.c.l.b16 %v1805
    %v3125 = vunpack.c.h.b16 %v1805
    %v3126 = vunpack.c.l.b16 %v1806
    %v3127 = vunpack.c.h.b16 %v1806
    %v3128 = vunpack.c.l.b16 %v1807
    %v3129 = vunpack.c.h.b16 %v1807
    %v3130 = vunpack.c.l.b16 %v1808
    %v3131 = vunpack.c.h.b16 %v1808
    %v3132 = vunpack.c.l.b16 %v1809
    %v3133 = vunpack.c.h.b16 %v1809
    %v3134 = vunpack.c.l.b16 %v1810
    %v3135 = vunpack.c.h.b16 %v1810
    %v3136 = vunpack.c.l.b16 %v1811
    %v3137 = vunpack.c.h.b16 %v1811
    %v3138 = vunpack.c.l.b16 %v1812
    %v3139 = vunpack.c.h.b16 %v1812
    %v3140 = vunpack.c.l.b16 %v1813
    %v3141 = vunpack.c.h.b16 %v1813
    %v3142 = vunpack.c.l.b16 %v1814
    %v3143 = vunpack.c.h.b16 %v1814
    %v3144 = vunpack.c.l.b16 %v1815
    %v3145 = vunpack.c.h.b16 %v1815
    %v3146 = vunpack.c.l.b16 %v1816
    %v3147 = vunpack.c.h.b16 %v1816
    %v3148 = vunpack.c.l.b16 %v1817
    %v3149 = vunpack.c.h.b16 %v1817
    %v3150 = vunpack.c.l.b16 %v1818
    %v3151 = vunpack.c.h.b16 %v1818
    %v3152 = vunpack.c.l.b16 %v1819
    %v3153 = vunpack.c.h.b16 %v1819
    %v3154 = vunpack.c.l.b16 %v1820
    %v3155 = vunpack.c.h.b16 %v1820
    %v3156 = vunpack.c.l.b16 %v1821
    %v3157 = vunpack.c.h.b16 %v1821
    %v3158 = vunpack.c.l.b16 %v1822
    %v3159 = vunpack.c.h.b16 %v1822
    %v3160 = vunpack.c.l.b16 %v1823
    %v3161 = vunpack.c.h.b16 %v1823
    %v3162 = vunpack.c.l.b16 %v1824
    %v3163 = vunpack.c.h.b16 %v1824
    %v3164 = vunpack.c.l.b16 %v1825
    %v3165 = vunpack.c.h.b16 %v1825
    %v3166 = vunpack.c.l.b16 %v1826
    %v3167 = vunpack.c.h.b16 %v1826
    %v3168 = vunpack.c.l.b16 %v1827
    %v3169 = vunpack.c.h.b16 %v1827
    %v3170 = vunpack.c.l.b16 %v1828
    %v3171 = vunpack.c.h.b16 %v1828
    %v3172 = vunpack.c.l.b16 %v1829
    %v3173 = vunpack.c.h.b16 %v1829
    %v3174 = vunpack.c.l.b16 %v1830
    %v3175 = vunpack.c.h.b16 %v1830
    %v3176 = vunpack.c.l.b16 %v1831
    %v3177 = vunpack.c.h.b16 %v1831
    %v3178 = vunpack.c.l.b16 %v1832
    %v3179 = vunpack.c.h.b16 %v1832
    %v3180 = vunpack.c.l.b16 %v1833
    %v3181 = vunpack.c.h.b16 %v1833
    %v3182 = vunpack.c.l.b16 %v1834
    %v3183 = vunpack.c.h.b16 %v1834
    %v3184 = vunpack.c.l.b16 %v1835
    %v3185 = vunpack.c.h.b16 %v1835
    %v3186 = vunpack.c.l.b16 %v1836
    %v3187 = vunpack.c.h.b16 %v1836
    %v3188 = vunpack.c.l.b16 %v1837
    %v3189 = vunpack.c.h.b16 %v1837
    %v3190 = vunpack.c.l.b16 %v1838
    %v3191 = vunpack.c.h.b16 %v1838
    %v3192 = vunpack.c.l.b16 %v1839
    %v3193 = vunpack.c.h.b16 %v1839
    %v3194 = vunpack.c.l.b16 %v1840
    %v3195 = vunpack.c.h.b16 %v1840
    %v3196 = vunpack.c.l.b16 %v1841
    %v3197 = vunpack.c.h.b16 %v1841
    %v3198 = vunpack.c.l.b16 %v1842
    %v3199 = vunpack.c.h.b16 %v1842
    %v3200 = vunpack.c.l.b16 %v1843
    %v3201 = vunpack.c.h.b16 %v1843
    %v3202 = vunpack.c.l.b16 %v1844
    %v3203 = vunpack.c.h.b16 %v1844
    %v3204 = vunpack.c.l.b16 %v1845
    %v3205 = vunpack.c.h.b16 %v1845
    %v3206 = vunpack.c.l.b16 %v1846
    %v3207 = vunpack.c.h.b16 %v1846
    %v3208 = vunpack.c.l.b16 %v1847
    %v3209 = vunpack.c.h.b16 %v1847
    %v3210 = vunpack.c.l.b16 %v1848
    %v3211 = vunpack.c.h.b16 %v1848
    %v3212 = vunpack.c.l.b16 %v1849
    %v3213 = vunpack.c.h.b16 %v1849
    %v3214 = vunpack.c.l.b16 %v1850
    %v3215 = vunpack.c.h.b16 %v1850
    %v3216 = vunpack.c.l.b16 %v1851
    %v3217 = vunpack.c.h.b16 %v1851
    %v3218 = vunpack.c.l.b16 %v1852
    %v3219 = vunpack.c.h.b16 %v1852
    %v3220 = vunpack.c.l.b16 %v1853
    %v3221 = vunpack.c.h.b16 %v1853
    %v3222 = vunpack.c.l.b16 %v1854
    %v3223 = vunpack.c.h.b16 %v1854
    %v3224 = vunpack.c.l.b16 %v1855
    %v3225 = vunpack.c.h.b16 %v1855
    %v3226 = vunpack.c.l.b16 %v1856
    %v3227 = vunpack.c.h.b16 %v1856
    %v3228 = vunpack.c.l.b16 %v1857
    %v3229 = vunpack.c.h.b16 %v1857
    %v3230 = vunpack.c.l.b16 %v1858
    %v3231 = vunpack.c.h.b16 %v1858
    %v3232 = vunpack.c.l.b16 %v1859
    %v3233 = vunpack.c.h.b16 %v1859
    %v3234 = vunpack.c.l.b16 %v1860
    %v3235 = vunpack.c.h.b16 %v1860
    %v3236 = vunpack.c.l.b16 %v1861
    %v3237 = vunpack.c.h.b16 %v1861
    %v3238 = vunpack.c.l.b16 %v1862
    %v3239 = vunpack.c.h.b16 %v1862
    %v3240 = vunpack.c.l.b16 %v1863
    %v3241 = vunpack.c.h.b16 %v1863
    %v3242 = vunpack.c.l.b16 %v1864
    %v3243 = vunpack.c.h.b16 %v1864
    %v3244 = vunpack.c.l.b16 %v1865
    %v3245 = vunpack.c.h.b16 %v1865
    %v3246 = vunpack.c.l.b16 %v1866
    %v3247 = vunpack.c.h.b16 %v1866
    %v3248 = vunpack.c.l.b16 %v1867
    %v3249 = vunpack.c.h.b16 %v1867
    %v3250 = vunpack.c.l.b16 %v1868
    %v3251 = vunpack.c.h.b16 %v1868
    %v3252 = vunpack.c.l.b16 %v1869
    %v3253 = vunpack.c.h.b16 %v1869
    %v3254 = vunpack.c.l.b16 %v1870
    %v3255 = vunpack.c.h.b16 %v1870
    %v3256 = vunpack.c.l.b16 %v1871
    %v3257 = vunpack.c.h.b16 %v1871
    %v3258 = vunpack.c.l.b16 %v1872
    %v3259 = vunpack.c.h.b16 %v1872
    %v3260 = vunpack.c.l.b16 %v1873
    %v3261 = vunpack.c.h.b16 %v1873
    %v3262 = vunpack.c.l.b16 %v1874
    %v3263 = vunpack.c.h.b16 %v1874
    %v3264 = vunpack.c.l.b16 %v1875
    %v3265 = vunpack.c.h.b16 %v1875
    %v3266 = vunpack.c.l.b16 %v1876
    %v3267 = vunpack.c.h.b16 %v1876
    %v3268 = vunpack.c.l.b16 %v1877
    %v3269 = vunpack.c.h.b16 %v1877
    %v3270 = vunpack.c.l.b16 %v1878
    %v3271 = vunpack.c.h.b16 %v1878
    %v3272 = vunpack.c.l.b16 %v1879
    %v3273 = vunpack.c.h.b16 %v1879
    %v3274 = vunpack.c.l.b16 %v1880
    %v3275 = vunpack.c.h.b16 %v1880
    %v3276 = vunpack.c.l.b16 %v1881
    %v3277 = vunpack.c.h.b16 %v1881
    %v3278 = vunpack.c.l.b16 %v1882
    %v3279 = vunpack.c.h.b16 %v1882
    %v3280 = vunpack.c.l.b16 %v1883
    %v3281 = vunpack.c.h.b16 %v1883
    %v3282 = vunpack.c.l.b16 %v1884
    %v3283 = vunpack.c.h.b16 %v1884
    %v3284 = vunpack.c.l.b16 %v1885
    %v3285 = vunpack.c.h.b16 %v1885
    %v3286 = vunpack.c.l.b16 %v1886
    %v3287 = vunpack.c.h.b16 %v1886
    %v3288 = vunpack.c.l.b16 %v1887
    %v3289 = vunpack.c.h.b16 %v1887
    %v3290 = vunpack.c.l.b16 %v1888
    %v3291 = vunpack.c.h.b16 %v1888
    %v3292 = vunpack.c.l.b16 %v1889
    %v3293 = vunpack.c.h.b16 %v1889
    %v3294 = vunpack.c.l.b16 %v1890
    %v3295 = vunpack.c.h.b16 %v1890
    %v3296 = vunpack.c.l.b16 %v1891
    %v3297 = vunpack.c.h.b16 %v1891
    %v3298 = vunpack.c.l.b16 %v1892
    %v3299 = vunpack.c.h.b16 %v1892
    %v3300 = vunpack.c.l.b16 %v1893
    %v3301 = vunpack.c.h.b16 %v1893
    %v3302 = vunpack.c.l.b16 %v1894
    %v3303 = vunpack.c.h.b16 %v1894
    %v3304 = vunpack.c.l.b16 %v1895
    %v3305 = vunpack.c.h.b16 %v1895
    %v3306 = vunpack.c.l.b16 %v1896
    %v3307 = vunpack.c.h.b16 %v1896
    %v3308 = vunpack.c.l.b16 %v1897
    %v3309 = vunpack.c.h.b16 %v1897
    %v3310 = vunpack.c.l.b16 %v1898
    %v3311 = vunpack.c.h.b16 %v1898
    %v3312 = vunpack.c.l.b16 %v1899
    %v3313 = vunpack.c.h.b16 %v1899
    %v3314 = vunpack.c.l.b16 %v1900
    %v3315 = vunpack.c.h.b16 %v1900
    %v3316 = vunpack.c.l.b16 %v1901
    %v3317 = vunpack.c.h.b16 %v1901
    %v3318 = vunpack.c.l.b16 %v1902
    %v3319 = vunpack.c.h.b16 %v1902
    %v3320 = vunpack.c.l.b16 %v1903
    %v3321 = vunpack.c.h.b16 %v1903
    %v3322 = vunpack.c.l.b16 %v1904
    %v3323 = vunpack.c.h.b16 %v1904
    %v3324 = vunpack.c.l.b16 %v1905
    %v3325 = vunpack.c.h.b16 %v1905
    %v3326 = vunpack.c.l.b16 %v1906
    %v3327 = vunpack.c.h.b16 %v1906
    %v3328 = vunpack.c.l.b16 %v1907
    %v3329 = vunpack.c.h.b16 %v1907
    %v3330 = vunpack.c.l.b16 %v1908
    %v3331 = vunpack.c.h.b16 %v1908
    %v3332 = vunpack.c.l.b16 %v1909
    %v3333 = vunpack.c.h.b16 %v1909
    %v3334 = vunpack.c.l.b16 %v1910
    %v3335 = vunpack.c.h.b16 %v1910
    %v3336 = vunpack.c.l.b16 %v1911
    %v3337 = vunpack.c.h.b16 %v1911
    %v3338 = vunpack.c.l.b16 %v1912
    %v3339 = vunpack.c.h.b16 %v1912
    %v3340 = vunpack.c.l.b16 %v1913
    %v3341 = vunpack.c.h.b16 %v1913
    %v3342 = vunpack.c.l.b16 %v1914
    %v3343 = vunpack.c.h.b16 %v1914
    %v3344 = vunpack.c.l.b16 %v1915
    %v3345 = vunpack.c.h.b16 %v1915
    %v3346 = vunpack.c.l.b16 %v1916
    %v3347 = vunpack.c.h.b16 %v1916
    %v3348 = vunpack.c.l.b16 %v1917
    %v3349 = vunpack.c.h.b16 %v1917
    %v3350 = vunpack.c.l.b16 %v1918
    %v3351 = vunpack.c.h.b16 %v1918
    %v3352 = vunpack.c.l.b16 %v1919
    %v3353 = vunpack.c.h.b16 %v1919
    %v3354 = vunpack.c.l.b16 %v1920
    %v3355 = vunpack.c.h.b16 %v1920
    %v3356 = vunpack.c.l.b16 %v1921
    %v3357 = vunpack.c.h.b16 %v1921
    %v3358 = vunpack.c.l.b16 %v1922
    %v3359 = vunpack.c.h.b16 %v1922
    %v3360 = vunpack.c.l.b16 %v1923
    %v3361 = vunpack.c.h.b16 %v1923
    %v3362 = vunpack.c.l.b16 %v1924
    %v3363 = vunpack.c.h.b16 %v1924
    %v3364 = vunpack.c.l.b16 %v1925
    %v3365 = vunpack.c.h.b16 %v1925
    %v3366 = vunpack.c.l.b16 %v1926
    %v3367 = vunpack.c.h.b16 %v1926
    %v3368 = vunpack.c.l.b16 %v1927
    %v3369 = vunpack.c.h.b16 %v1927
    %v3370 = vunpack.c.l.b16 %v1928
    %v3371 = vunpack.c.h.b16 %v1928
    %v3372 = vunpack.c.l.b16 %v1929
    %v3373 = vunpack.c.h.b16 %v1929
    %v3374 = vunpack.c.l.b16 %v1930
    %v3375 = vunpack.c.h.b16 %v1930
    %v3376 = vunpack.c.l.b16 %v1931
    %v3377 = vunpack.c.h.b16 %v1931
    %v3378 = vunpack.c.l.b16 %v1932
    %v3379 = vunpack.c.h.b16 %v1932
    %v3380 = vunpack.c.l.b16 %v1933
    %v3381 = vunpack.c.h.b16 %v1933
    %v3382 = vunpack.c.l.b16 %v1934
    %v3383 = vunpack.c.h.b16 %v1934
    %v3384 = vunpack.c.l.b16 %v1935
    %v3385 = vunpack.c.h.b16 %v1935
    %v3386 = vunpack.c.l.b16 %v1936
    %v3387 = vunpack.c.h.b16 %v1936
    %v3388 = vunpack.c.l.b16 %v1937
    %v3389 = vunpack.c.h.b16 %v1937
    %v3390 = vunpack.c.l.b16 %v1938
    %v3391 = vunpack.c.h.b16 %v1938
    %v3392 = vunpack.c.l.b16 %v1939
    %v3393 = vunpack.c.h.b16 %v1939
    %v3394 = vunpack.c.l.b16 %v1940
    %v3395 = vunpack.c.h.b16 %v1940
    %v3396 = vunpack.c.l.b16 %v1941
    %v3397 = vunpack.c.h.b16 %v1941
    %v3398 = vunpack.c.l.b16 %v1942
    %v3399 = vunpack.c.h.b16 %v1942
    %v3400 = vunpack.c.l.b16 %v1943
    %v3401 = vunpack.c.h.b16 %v1943
    %v3402 = vunpack.c.l.b16 %v1944
    %v3403 = vunpack.c.h.b16 %v1944
    %v3404 = vunpack.c.l.b16 %v1945
    %v3405 = vunpack.c.h.b16 %v1945
    %v3406 = vunpack.c.l.b16 %v1946
    %v3407 = vunpack.c.h.b16 %v1946
    %v3408 = vunpack.c.l.b16 %v1947
    %v3409 = vunpack.c.h.b16 %v1947
    %v3410 = vunpack.c.l.b16 %v1948
    %v3411 = vunpack.c.h.b16 %v1948
    %v3412 = vunpack.c.l.b16 %v1949
    %v3413 = vunpack.c.h.b16 %v1949
    %v3414 = vunpack.c.l.b16 %v1950
    %v3415 = vunpack.c.h.b16 %v1950
    %v3416 = vunpack.c.l.b16 %v1951
    %v3417 = vunpack.c.h.b16 %v1951
    %v3418 = vunpack.c.l.b16 %v1952
    %v3419 = vunpack.c.h.b16 %v1952
    %v3420 = vunpack.c.l.b16 %v1953
    %v3421 = vunpack.c.h.b16 %v1953
    %v3422 = vunpack.c.l.b16 %v1954
    %v3423 = vunpack.c.h.b16 %v1954
    %v3424 = vunpack.c.l.b16 %v1955
    %v3425 = vunpack.c.h.b16 %v1955
    %v3426 = vunpack.c.l.b16 %v1956
    %v3427 = vunpack.c.h.b16 %v1956
    %v3428 = vunpack.c.l.b16 %v1957
    %v3429 = vunpack.c.h.b16 %v1957
    %v3430 = vunpack.c.l.b16 %v1958
    %v3431 = vunpack.c.h.b16 %v1958
    %v3432 = vunpack.c.l.b16 %v1959
    %v3433 = vunpack.c.h.b16 %v1959
    %v3434 = vunpack.c.l.b16 %v1960
    %v3435 = vunpack.c.h.b16 %v1960
    %v3436 = vunpack.c.l.b16 %v1961
    %v3437 = vunpack.c.h.b16 %v1961
    %v3438 = vunpack.c.l.b16 %v1962
    %v3439 = vunpack.c.h.b16 %v1962
    %v3440 = vunpack.c.l.b16 %v1963
    %v3441 = vunpack.c.h.b16 %v1963
    %v3442 = vunpack.c.l.b16 %v1964
    %v3443 = vunpack.c.h.b16 %v1964
    %v3444 = vunpack.c.l.b16 %v1965
    %v3445 = vunpack.c.h.b16 %v1965
    %v3446 = vunpack.c.l.b16 %v1966
    %v3447 = vunpack.c.h.b16 %v1966
    %v3448 = vunpack.c.l.b16 %v1967
    %v3449 = vunpack.c.h.b16 %v1967
    %v3450 = vunpack.c.l.b16 %v1968
    %v3451 = vunpack.c.h.b16 %v1968
    %v3452 = vunpack.c.l.b16 %v1969
    %v3453 = vunpack.c.h.b16 %v1969
    %v3454 = vunpack.c.l.b16 %v1970
    %v3455 = vunpack.c.h.b16 %v1970
    %v3456 = vunpack.c.l.b16 %v1971
    %v3457 = vunpack.c.h.b16 %v1971
    %v3458 = vunpack.c.l.b16 %v1972
    %v3459 = vunpack.c.h.b16 %v1972
    %v3460 = vunpack.c.l.b16 %v1973
    %v3461 = vunpack.c.h.b16 %v1973
    %v3462 = vunpack.c.l.b16 %v1974
    %v3463 = vunpack.c.h.b16 %v1974
    %v3464 = vunpack.c.l.b16 %v1975
    %v3465 = vunpack.c.h.b16 %v1975
    %v3466 = vunpack.c.l.b16 %v1976
    %v3467 = vunpack.c.h.b16 %v1976
    %v3468 = vunpack.c.l.b16 %v1977
    %v3469 = vunpack.c.h.b16 %v1977
    %v3470 = vunpack.c.l.b16 %v1978
    %v3471 = vunpack.c.h.b16 %v1978
    %v3472 = vunpack.c.l.b16 %v1979
    %v3473 = vunpack.c.h.b16 %v1979
    %v3474 = vunpack.c.l.b16 %v1980
    %v3475 = vunpack.c.h.b16 %v1980
    %v3476 = vunpack.c.l.b16 %v1981
    %v3477 = vunpack.c.h.b16 %v1981
    %v3478 = vunpack.c.l.b16 %v1982
    %v3479 = vunpack.c.h.b16 %v1982
    %v3480 = vunpack.c.l.b16 %v1983
    %v3481 = vunpack.c.h.b16 %v1983
    %v3482 = vunpack.c.l.b16 %v1984
    %v3483 = vunpack.c.h.b16 %v1984
    %v3484 = vunpack.c.l.b16 %v1985
    %v3485 = vunpack.c.h.b16 %v1985
    %v3486 = vunpack.c.l.b16 %v1986
    %v3487 = vunpack.c.h.b16 %v1986
    %v3488 = vunpack.c.l.b16 %v1987
    %v3489 = vunpack.c.h.b16 %v1987
    %v3490 = vunpack.c.l.b16 %v1988
    %v3491 = vunpack.c.h.b16 %v1988
    %v3492 = vunpack.c.l.b16 %v1989
    %v3493 = vunpack.c.h.b16 %v1989
    %v3494 = vunpack.c.l.b16 %v1990
    %v3495 = vunpack.c.h.b16 %v1990
    %v3496 = vunpack.c.l.b16 %v1991
    %v3497 = vunpack.c.h.b16 %v1991
    %v3498 = vunpack.c.l.b16 %v1992
    %v3499 = vunpack.c.h.b16 %v1992
    %v3500 = vunpack.c.l.b16 %v1993
    %v3501 = vunpack.c.h.b16 %v1993
    %v3502 = vunpack.c.l.b16 %v1994
    %v3503 = vunpack.c.h.b16 %v1994
    %v3504 = vunpack.c.l.b16 %v1995
    %v3505 = vunpack.c.h.b16 %v1995
    %v3506 = vunpack.c.l.b16 %v1996
    %v3507 = vunpack.c.h.b16 %v1996
    %v3508 = vunpack.c.l.b16 %v1997
    %v3509 = vunpack.c.h.b16 %v1997
    %v3510 = vunpack.c.l.b16 %v1998
    %v3511 = vunpack.c.h.b16 %v1998
    %v3512 = vunpack.c.l.b16 %v1999
    %v3513 = vunpack.c.h.b16 %v1999
    %v3514 = vunpack.c.l.b16 %v2000
    %v3515 = vunpack.c.h.b16 %v2000
    %v3516 = vunpack.c.l.b16 %v2001
    %v3517 = vunpack.c.h.b16 %v2001
    %v3518 = vunpack.c.l.b16 %v2002
    %v3519 = vunpack.c.h.b16 %v2002
    %v3520 = vunpack.c.l.b16 %v2003
    %v3521 = vunpack.c.h.b16 %v2003
    %v3522 = vunpack.c.l.b16 %v2004
    %v3523 = vunpack.c.h.b16 %v2004
    %v3524 = vunpack.c.l.b16 %v2005
    %v3525 = vunpack.c.h.b16 %v2005
    %v3526 = vunpack.c.l.b16 %v2006
    %v3527 = vunpack.c.h.b16 %v2006
    %v3528 = vunpack.c.l.b16 %v2007
    %v3529 = vunpack.c.h.b16 %v2007
    %v3530 = vunpack.c.l.b16 %v2008
    %v3531 = vunpack.c.h.b16 %v2008
    %v3532 = vunpack.c.l.b16 %v2009
    %v3533 = vunpack.c.h.b16 %v2009
    %v3534 = vunpack.c.l.b16 %v2010
    %v3535 = vunpack.c.h.b16 %v2010
    %v3536 = vunpack.c.l.b16 %v2011
    %v3537 = vunpack.c.h.b16 %v2011
    %v3538 = vunpack.c.l.b16 %v2012
    %v3539 = vunpack.c.h.b16 %v2012
    %v3540 = vunpack.c.l.b16 %v2013
    %v3541 = vunpack.c.h.b16 %v2013
    %v3542 = vunpack.c.l.b16 %v2014
    %v3543 = vunpack.c.h.b16 %v2014
    %v3544 = vunpack.c.l.b16 %v2015
    %v3545 = vunpack.c.h.b16 %v2015
    %v3546 = vunpack.c.l.b16 %v2016
    %v3547 = vunpack.c.h.b16 %v2016
    %v3548 = vunpack.c.l.b16 %v2017
    %v3549 = vunpack.c.h.b16 %v2017
    %v3550 = vunpack.c.l.b16 %v2018
    %v3551 = vunpack.c.h.b16 %v2018
    %v3552 = vunpack.c.l.b16 %v2019
    %v3553 = vunpack.c.h.b16 %v2019
    %v3554 = vunpack.c.l.b16 %v2020
    %v3555 = vunpack.c.h.b16 %v2020
    %v3556 = vunpack.c.l.b16 %v2021
    %v3557 = vunpack.c.h.b16 %v2021
    %v3558 = vunpack.c.l.b16 %v2022
    %v3559 = vunpack.c.h.b16 %v2022
    %v3560 = vunpack.c.l.b16 %v2023
    %v3561 = vunpack.c.h.b16 %v2023
    %v3562 = vunpack.c.l.b16 %v2024
    %v3563 = vunpack.c.h.b16 %v2024
    %v3564 = vunpack.c.l.b16 %v2025
    %v3565 = vunpack.c.h.b16 %v2025
    %v3566 = vunpack.c.l.b16 %v2026
    %v3567 = vunpack.c.h.b16 %v2026
    %v3568 = vunpack.c.l.b16 %v2027
    %v3569 = vunpack.c.h.b16 %v2027
    %v3570 = vunpack.c.l.b16 %v2028
    %v3571 = vunpack.c.h.b16 %v2028
    %v3572 = vunpack.c.l.b16 %v2029
    %v3573 = vunpack.c.h.b16 %v2029
    %v3574 = vunpack.c.l.b16 %v2030
    %v3575 = vunpack.c.h.b16 %v2030
    %v3576 = vunpack.c.l.b16 %v2031
    %v3577 = vunpack.c.h.b16 %v2031
    %v3578 = vunpack.c.l.b16 %v2032
    %v3579 = vunpack.c.h.b16 %v2032
    %v3580 = vunpack.c.l.b16 %v2033
    %v3581 = vunpack.c.h.b16 %v2033
    %v3582 = vunpack.c.l.b16 %v2034
    %v3583 = vunpack.c.h.b16 %v2034
    %v3584 = vunpack.c.l.b16 %v2035
    %v3585 = vunpack.c.h.b16 %v2035
    %v3586 = vunpack.c.l.b16 %v2036
    %v3587 = vunpack.c.h.b16 %v2036
    %v3588 = vunpack.c.l.b16 %v2037
    %v3589 = vunpack.c.h.b16 %v2037
    %v3590 = vunpack.c.l.b16 %v2038
    %v3591 = vunpack.c.h.b16 %v2038
    %v3592 = vunpack.c.l.b16 %v2039
    %v3593 = vunpack.c.h.b16 %v2039
    %v3594 = vunpack.c.l.b16 %v2040
    %v3595 = vunpack.c.h.b16 %v2040
    %v3596 = vunpack.c.l.b16 %v2041
    %v3597 = vunpack.c.h.b16 %v2041
    %v3598 = vunpack.c.l.b16 %v2042
    %v3599 = vunpack.c.h.b16 %v2042
    %v3600 = vunpack.c.l.b16 %v2043
    %v3601 = vunpack.c.h.b16 %v2043
    %v3602 = vunpack.c.l.b16 %v2044
    %v3603 = vunpack.c.h.b16 %v2044
    %v3604 = vunpack.c.l.b16 %v2045
    %v3605 = vunpack.c.h.b16 %v2045
    %v3606 = vunpack.c.l.b16 %v2046
    %v3607 = vunpack.c.h.b16 %v2046
    %v3608 = vunpack.c.l.b16 %v2047
    %v3609 = vunpack.c.h.b16 %v2047
    %v3610 = vunpack.c.l.b16 %v2048
    %v3611 = vunpack.c.h.b16 %v2048
    %v3612 = vunpack.c.l.b16 %v2049
    %v3613 = vunpack.c.h.b16 %v2049
    %v3614 = vunpack.c.l.b16 %v2050
    %v3615 = vunpack.c.h.b16 %v2050
    %v3616 = vunpack.c.l.b16 %v2051
    %v3617 = vunpack.c.h.b16 %v2051
    %v3618 = vunpack.c.l.b16 %v2052
    %v3619 = vunpack.c.h.b16 %v2052
    %v3620 = vunpack.c.l.b16 %v2053
    %v3621 = vunpack.c.h.b16 %v2053
    %v3622 = vunpack.c.l.b16 %v2054
    %v3623 = vunpack.c.h.b16 %v2054
    %v3624 = vunpack.c.l.b16 %v2055
    %v3625 = vunpack.c.h.b16 %v2055
    %v3626 = vunpack.c.l.b16 %v2056
    %v3627 = vunpack.c.h.b16 %v2056
    %v3628 = vunpack.c.l.b16 %v2057
    %v3629 = vunpack.c.h.b16 %v2057
    %v3630 = vunpack.c.l.b16 %v2058
    %v3631 = vunpack.c.h.b16 %v2058
    %v3632 = vunpack.c.l.b16 %v2059
    %v3633 = vunpack.c.h.b16 %v2059
    %v3634 = vunpack.c.l.b16 %v2060
    %v3635 = vunpack.c.h.b16 %v2060
    %v3636 = vunpack.c.l.b16 %v2061
    %v3637 = vunpack.c.h.b16 %v2061
    %v3638 = vunpack.c.l.b16 %v2062
    %v3639 = vunpack.c.h.b16 %v2062
    %v3640 = vunpack.c.l.b16 %v2063
    %v3641 = vunpack.c.h.b16 %v2063
    %v3642 = vunpack.c.l.b16 %v2064
    %v3643 = vunpack.c.h.b16 %v2064
    %v3644 = vunpack.c.l.b16 %v2065
    %v3645 = vunpack.c.h.b16 %v2065
    %v3646 = vunpack.c.l.b16 %v2066
    %v3647 = vunpack.c.h.b16 %v2066
    %v3648 = vunpack.c.l.b16 %v2067
    %v3649 = vunpack.c.h.b16 %v2067
    %v3650 = vunpack.c.l.b16 %v2068
    %v3651 = vunpack.c.h.b16 %v2068
    %v3652 = vunpack.c.l.b16 %v2069
    %v3653 = vunpack.c.h.b16 %v2069
    %v3654 = vunpack.c.l.b16 %v2070
    %v3655 = vunpack.c.h.b16 %v2070
    %v3656 = vunpack.c.l.b16 %v2071
    %v3657 = vunpack.c.h.b16 %v2071
    %v3658 = vunpack.c.l.b16 %v2072
    %v3659 = vunpack.c.h.b16 %v2072
    %v3660 = vunpack.c.l.b16 %v2073
    %v3661 = vunpack.c.h.b16 %v2073
    %v3662 = vunpack.c.l.b16 %v2074
    %v3663 = vunpack.c.h.b16 %v2074
    %v3664 = vunpack.c.l.b16 %v2075
    %v3665 = vunpack.c.h.b16 %v2075
    %v3666 = vunpack.c.l.b16 %v2076
    %v3667 = vunpack.c.h.b16 %v2076
    %v3668 = vunpack.c.l.b16 %v2077
    %v3669 = vunpack.c.h.b16 %v2077
    %v3670 = vunpack.c.l.b16 %v2078
    %v3671 = vunpack.c.h.b16 %v2078
    %v3672 = vunpack.c.l.b16 %v2079
    %v3673 = vunpack.c.h.b16 %v2079
    %v3674 = vunpack.c.l.b16 %v2080
    %v3675 = vunpack.c.h.b16 %v2080
    %v3676 = vunpack.c.l.b16 %v2081
    %v3677 = vunpack.c.h.b16 %v2081
    %v3678 = vunpack.c.l.b16 %v2082
    %v3679 = vunpack.c.h.b16 %v2082
    %v3680 = vunpack.c.l.b16 %v2083
    %v3681 = vunpack.c.h.b16 %v2083
    %v3682 = vunpack.c.l.b16 %v2084
    %v3683 = vunpack.c.h.b16 %v2084
    %v3684 = vunpack.c.l.b16 %v2085
    %v3685 = vunpack.c.h.b16 %v2085
    %v3686 = vunpack.c.l.b16 %v2086
    %v3687 = vunpack.c.h.b16 %v2086
    %v3688 = vunpack.c.l.b16 %v2087
    %v3689 = vunpack.c.h.b16 %v2087
    %v3690 = vunpack.c.l.b16 %v2088
    %v3691 = vunpack.c.h.b16 %v2088
    %v3692 = vunpack.c.l.b16 %v2089
    %v3693 = vunpack.c.h.b16 %v2089
    %v3694 = vunpack.c.l.b16 %v2090
    %v3695 = vunpack.c.h.b16 %v2090
    %v3696 = vunpack.c.l.b16 %v2091
    %v3697 = vunpack.c.h.b16 %v2091
    %v3698 = vunpack.c.l.b16 %v2092
    %v3699 = vunpack.c.h.b16 %v2092
    %v3700 = vunpack.c.l.b16 %v2093
    %v3701 = vunpack.c.h.b16 %v2093
    %v3702 = vunpack.c.l.b16 %v2094
    %v3703 = vunpack.c.h.b16 %v2094
    %v3704 = vunpack.c.l.b16 %v2095
    %v3705 = vunpack.c.h.b16 %v2095
    %v3706 = vunpack.c.l.b16 %v2096
    %v3707 = vunpack.c.h.b16 %v2096
    %v3708 = vunpack.c.l.b16 %v2097
    %v3709 = vunpack.c.h.b16 %v2097
    %v3710 = vunpack.c.l.b16 %v2098
    %v3711 = vunpack.c.h.b16 %v2098
    %v3712 = vunpack.c.l.b16 %v2099
    %v3713 = vunpack.c.h.b16 %v2099
    %v3714 = vunpack.c.l.b16 %v2100
    %v3715 = vunpack.c.h.b16 %v2100
    %v3716 = vunpack.c.l.b16 %v2101
    %v3717 = vunpack.c.h.b16 %v2101
    %v3718 = vunpack.c.l.b16 %v2102
    %v3719 = vunpack.c.h.b16 %v2102
    %v3720 = vunpack.c.l.b16 %v2103
    %v3721 = vunpack.c.h.b16 %v2103
    %v3722 = vunpack.c.l.b16 %v2104
    %v3723 = vunpack.c.h.b16 %v2104
    %v3724 = vunpack.c.l.b16 %v2105
    %v3725 = vunpack.c.h.b16 %v2105
    %v3726 = vpack.c.b16 %v2718, %v2702
    %v3727 = vpack.c.b16 %v2719, %v2703
    %v3728 = vpack.c.b16 %v2720, %v2704
    %v3729 = vpack.c.b16 %v2721, %v2705
    %v3730 = vpack.c.b16 %v2722, %v2706
    %v3731 = vpack.c.b16 %v2723, %v2707
    %v3732 = vpack.c.b16 %v2724, %v2708
    %v3733 = vpack.c.b16 %v2725, %v2709
    %v3734 = vpack.c.b16 %v2726, %v2710
    %v3735 = vpack.c.b16 %v2727, %v2711
    %v3736 = vpack.c.b16 %v2728, %v2712
    %v3737 = vpack.c.b16 %v2729, %v2713
    %v3738 = vpack.c.b16 %v2730, %v2714
    %v3739 = vpack.c.b16 %v2731, %v2715
    %v3740 = vpack.c.b16 %v2732, %v2716
    %v3741 = vpack.c.b16 %v2733, %v2717
    %v3742 = vpack.c.b16 %v2750, %v2734
    %v3743 = vpack.c.b16 %v2751, %v2735
    %v3744 = vpack.c.b16 %v2752, %v2736
    %v3745 = vpack.c.b16 %v2753, %v2737
    %v3746 = vpack.c.b16 %v2754, %v2738
    %v3747 = vpack.c.b16 %v2755, %v2739
    %v3748 = vpack.c.b16 %v2756, %v2740
    %v3749 = vpack.c.b16 %v2757, %v2741
    %v3750 = vpack.c.b16 %v2758, %v2742
    %v3751 = vpack.c.b16 %v2759, %v2743
    %v3752 = vpack.c.b16 %v2760, %v2744
    %v3753 = vpack.c.b16 %v2761, %v2745
    %v3754 = vpack.c.b16 %v2762, %v2746
    %v3755 = vpack.c.b16 %v2763, %v2747
    %v3756 = vpack.c.b16 %v2764, %v2748
    %v3757 = vpack.c.b16 %v2765, %v2749
    %v3758 = vpack.c.b16 %v2782, %v2766
    %v3759 = vpack.c.b16 %v2783, %v2767
    %v3760 = vpack.c.b16 %v2784, %v2768
    %v3761 = vpack.c.b16 %v2785, %v2769
    %v3762 = vpack.c.b16 %v2786, %v2770
    %v3763 = vpack.c.b16 %v2787, %v2771
    %v3764 = vpack.c.b16 %v2788, %v2772
    %v3765 = vpack.c.b16 %v2789, %v2773
    %v3766 = vpack.c.b16 %v2790, %v2774
    %v3767 = vpack.c.b16 %v2791, %v2775
    %v3768 = vpack.c.b16 %v2792, %v2776
    %v3769 = vpack.c.b16 %v2793, %v2777
    %v3770 = vpack.c.b16 %v2794, %v2778
    %v3771 = vpack.c.b16 %v2795, %v2779
    %v3772 = vpack.c.b16 %v2796, %v2780
    %v3773 = vpack.c.b16 %v2797, %v2781
    %v3774 = vpack.c.b16 %v2814, %v2798
    %v3775 = vpack.c.b16 %v2815, %v2799
    %v3776 = vpack.c.b16 %v2816, %v2800
    %v3777 = vpack.c.b16 %v2817, %v2801
    %v3778 = vpack.c.b16 %v2818, %v2802
    %v3779 = vpack.c.b16 %v2819, %v2803
    %v3780 = vpack.c.b16 %v2820, %v2804
    %v3781 = vpack.c.b16 %v2821, %v2805
    %v3782 = vpack.c.b16 %v2822, %v2806
    %v3783 = vpack.c.b16 %v2823, %v2807
    %v3784 = vpack.c.b16 %v2824, %v2808
    %v3785 = vpack.c.b16 %v2825, %v2809
    %v3786 = vpack.c.b16 %v2826, %v2810
    %v3787 = vpack.c.b16 %v2827, %v2811
    %v3788 = vpack.c.b16 %v2828, %v2812
    %v3789 = vpack.c.b16 %v2829, %v2813
    %v3790 = vpack.c.b16 %v2846, %v2830
    %v3791 = vpack.c.b16 %v2847, %v2831
    %v3792 = vpack.c.b16 %v2848, %v2832
    %v3793 = vpack.c.b16 %v2849, %v2833
    %v3794 = vpack.c.b16 %v2850, %v2834
    %v3795 = vpack.c.b16 %v2851, %v2835
    %v3796 = vpack.c.b16 %v2852, %v2836
    %v3797 = vpack.c.b16 %v2853, %v2837
    %v3798 = vpack.c.b16 %v2854, %v2838
    %v3799 = vpack.c.b16 %v2855, %v2839
    %v3800 = vpack.c.b16 %v2856, %v2840
    %v3801 = vpack.c.b16 %v2857, %v2841
    %v3802 = vpack.c.b16 %v2858, %v2842
    %v3803 = vpack.c.b16 %v2859, %v2843
    %v3804 = vpack.c.b16 %v2860, %v2844
    %v3805 = vpack.c.b16 %v2861, %v2845
    %v3806 = vpack.c.b16 %v2878, %v2862
    %v3807 = vpack.c.b16 %v2879, %v2863
    %v3808 = vpack.c.b16 %v2880, %v2864
    %v3809 = vpack.c.b16 %v2881, %v2865
    %v3810 = vpack.c.b16 %v2882, %v2866
    %v3811 = vpack.c.b16 %v2883, %v2867
    %v3812 = vpack.c.b16 %v2884, %v2868
    %v3813 = vpack.c.b16 %v2885, %v2869
    %v3814 = vpack.c.b16 %v2886, %v2870
    %v3815 = vpack.c.b16 %v2887, %v2871
    %v3816 = vpack.c.b16 %v2888, %v2872
    %v3817 = vpack.c.b16 %v2889, %v2873
    %v3818 = vpack.c.b16 %v2890, %v2874
    %v3819 = vpack.c.b16 %v2891, %v2875
    %v3820 = vpack.c.b16 %v2892, %v2876
    %v3821 = vpack.c.b16 %v2893, %v2877
    %v3822 = vpack.c.b16 %v2910, %v2894
    %v3823 = vpack.c.b16 %v2911, %v2895
    %v3824 = vpack.c.b16 %v2912, %v2896
    %v3825 = vpack.c.b16 %v2913, %v2897
    %v3826 = vpack.c.b16 %v2914, %v2898
    %v3827 = vpack.c.b16 %v2915, %v2899
    %v3828 = vpack.c.b16 %v2916, %v2900
    %v3829 = vpack.c.b16 %v2917, %v2901
    %v3830 = vpack.c.b16 %v2918, %v2902
    %v3831 = vpack.c.b16 %v2919, %v2903
    %v3832 = vpack.c.b16 %v2920, %v2904
    %v3833 = vpack.c.b16 %v2921, %v2905
    %v3834 = vpack.c.b16 %v2922, %v2906
    %v3835 = vpack.c.b16 %v2923, %v2907
    %v3836 = vpack.c.b16 %v2924, %v2908
    %v3837 = vpack.c.b16 %v2925, %v2909
    %v3838 = vpack.c.b16 %v2942, %v2926
    %v3839 = vpack.c.b16 %v2943, %v2927
    %v3840 = vpack.c.b16 %v2944, %v2928
    %v3841 = vpack.c.b16 %v2945, %v2929
    %v3842 = vpack.c.b16 %v2946, %v2930
    %v3843 = vpack.c.b16 %v2947, %v2931
    %v3844 = vpack.c.b16 %v2948, %v2932
    %v3845 = vpack.c.b16 %v2949, %v2933
    %v3846 = vpack.c.b16 %v2950, %v2934
    %v3847 = vpack.c.b16 %v2951, %v2935
    %v3848 = vpack.c.b16 %v2952, %v2936
    %v3849 = vpack.c.b16 %v2953, %v2937
    %v3850 = vpack.c.b16 %v2954, %v2938
    %v3851 = vpack.c.b16 %v2955, %v2939
    %v3852 = vpack.c.b16 %v2956, %v2940
    %v3853 = vpack.c.b16 %v2957, %v2941
    %v3854 = vpack.c.b16 %v2974, %v2958
    %v3855 = vpack.c.b16 %v2975, %v2959
    %v3856 = vpack.c.b16 %v2976, %v2960
    %v3857 = vpack.c.b16 %v2977, %v2961
    %v3858 = vpack.c.b16 %v2978, %v2962
    %v3859 = vpack.c.b16 %v2979, %v2963
    %v3860 = vpack.c.b16 %v2980, %v2964
    %v3861 = vpack.c.b16 %v2981, %v2965
    %v3862 = vpack.c.b16 %v2982, %v2966
    %v3863 = vpack.c.b16 %v2983, %v2967
    %v3864 = vpack.c.b16 %v2984, %v2968
    %v3865 = vpack.c.b16 %v2985, %v2969
    %v3866 = vpack.c.b16 %v2986, %v2970
    %v3867 = vpack.c.b16 %v2987, %v2971
    %v3868 = vpack.c.b16 %v2988, %v2972
    %v3869 = vpack.c.b16 %v2989, %v2973
    %v3870 = vpack.c.b16 %v3006, %v2990
    %v3871 = vpack.c.b16 %v3007, %v2991
    %v3872 = vpack.c.b16 %v3008, %v2992
    %v3873 = vpack.c.b16 %v3009, %v2993
    %v3874 = vpack.c.b16 %v3010, %v2994
    %v3875 = vpack.c.b16 %v3011, %v2995
    %v3876 = vpack.c.b16 %v3012, %v2996
    %v3877 = vpack.c.b16 %v3013, %v2997
    %v3878 = vpack.c.b16 %v3014, %v2998
    %v3879 = vpack.c.b16 %v3015, %v2999
    %v3880 = vpack.c.b16 %v3016, %v3000
    %v3881 = vpack.c.b16 %v3017, %v3001
    %v3882 = vpack.c.b16 %v3018, %v3002
    %v3883 = vpack.c.b16 %v3019, %v3003
    %v3884 = vpack.c.b16 %v3020, %v3004
    %v3885 = vpack.c.b16 %v3021, %v3005
    %v3886 = vpack.c.b16 %v3038, %v3022
    %v3887 = vpack.c.b16 %v3039, %v3023
    %v3888 = vpack.c.b16 %v3040, %v3024
    %v3889 = vpack.c.b16 %v3041, %v3025
    %v3890 = vpack.c.b16 %v3042, %v3026
    %v3891 = vpack.c.b16 %v3043, %v3027
    %v3892 = vpack.c.b16 %v3044, %v3028
    %v3893 = vpack.c.b16 %v3045, %v3029
    %v3894 = vpack.c.b16 %v3046, %v3030
    %v3895 = vpack.c.b16 %v3047, %v3031
    %v3896 = vpack.c.b16 %v3048, %v3032
    %v3897 = vpack.c.b16 %v3049, %v3033
    %v3898 = vpack.c.b16 %v3050, %v3034
    %v3899 = vpack.c.b16 %v3051, %v3035
    %v3900 = vpack.c.b16 %v3052, %v3036
    %v3901 = vpack.c.b16 %v3053, %v3037
    %v3902 = vpack.c.b16 %v3070, %v3054
    %v3903 = vpack.c.b16 %v3071, %v3055
    %v3904 = vpack.c.b16 %v3072, %v3056
    %v3905 = vpack.c.b16 %v3073, %v3057
    %v3906 = vpack.c.b16 %v3074, %v3058
    %v3907 = vpack.c.b16 %v3075, %v3059
    %v3908 = vpack.c.b16 %v3076, %v3060
    %v3909 = vpack.c.b16 %v3077, %v3061
    %v3910 = vpack.c.b16 %v3078, %v3062
    %v3911 = vpack.c.b16 %v3079, %v3063
    %v3912 = vpack.c.b16 %v3080, %v3064
    %v3913 = vpack.c.b16 %v3081, %v3065
    %v3914 = vpack.c.b16 %v3082, %v3066
    %v3915 = vpack.c.b16 %v3083, %v3067
    %v3916 = vpack.c.b16 %v3084, %v3068
    %v3917 = vpack.c.b16 %v3085, %v3069
    %v3918 = vpack.c.b16 %v3102, %v3086
    %v3919 = vpack.c.b16 %v3103, %v3087
    %v3920 = vpack.c.b16 %v3104, %v3088
    %v3921 = vpack.c.b16 %v3105, %v3089
    %v3922 = vpack.c.b16 %v3106, %v3090
    %v3923 = vpack.c.b16 %v3107, %v3091
    %v3924 = vpack.c.b16 %v3108, %v3092
    %v3925 = vpack.c.b16 %v3109, %v3093
    %v3926 = vpack.c.b16 %v3110, %v3094
    %v3927 = vpack.c.b16 %v3111, %v3095
    %v3928 = vpack.c.b16 %v3112, %v3096
    %v3929 = vpack.c.b16 %v3113, %v3097
    %v3930 = vpack.c.b16 %v3114, %v3098
    %v3931 = vpack.c.b16 %v3115, %v3099
    %v3932 = vpack.c.b16 %v3116, %v3100
    %v3933 = vpack.c.b16 %v3117, %v3101
    %v3934 = vpack.c.b16 %v3134, %v3118
    %v3935 = vpack.c.b16 %v3135, %v3119
    %v3936 = vpack.c.b16 %v3136, %v3120
    %v3937 = vpack.c.b16 %v3137, %v3121
    %v3938 = vpack.c.b16 %v3138, %v3122
    %v3939 = vpack.c.b16 %v3139, %v3123
    %v3940 = vpack.c.b16 %v3140, %v3124
    %v3941 = vpack.c.b16 %v3141, %v3125
    %v3942 = vpack.c.b16 %v3142, %v3126
    %v3943 = vpack.c.b16 %v3143, %v3127
    %v3944 = vpack.c.b16 %v3144, %v3128
    %v3945 = vpack.c.b16 %v3145, %v3129
    %v3946 = vpack.c.b16 %v3146, %v3130
    %v3947 = vpack.c.b16 %v3147, %v3131
    %v3948 = vpack.c.b16 %v3148, %v3132
    %v3949 = vpack.c.b16 %v3149, %v3133
    %v3950 = vpack.c.b16 %v3166, %v3150
    %v3951 = vpack.c.b16 %v3167, %v3151
    %v3952 = vpack.c.b16 %v3168, %v3152
    %v3953 = vpack.c.b16 %v3169, %v3153
    %v3954 = vpack.c.b16 %v3170, %v3154
    %v3955 = vpack.c.b16 %v3171, %v3155
    %v3956 = vpack.c.b16 %v3172, %v3156
    %v3957 = vpack.c.b16 %v3173, %v3157
    %v3958 = vpack.c.b16 %v3174, %v3158
    %v3959 = vpack.c.b16 %v3175, %v3159
    %v3960 = vpack.c.b16 %v3176, %v3160
    %v3961 = vpack.c.b16 %v3177, %v3161
    %v3962 = vpack.c.b16 %v3178, %v3162
    %v3963 = vpack.c.b16 %v3179, %v3163
    %v3964 = vpack.c.b16 %v3180, %v3164
    %v3965 = vpack.c.b16 %v3181, %v3165
    %v3966 = vpack.c.b16 %v3198, %v3182
    %v3967 = vpack.c.b16 %v3199, %v3183
    %v3968 = vpack.c.b16 %v3200, %v3184
    %v3969 = vpack.c.b16 %v3201, %v3185
    %v3970 = vpack.c.b16 %v3202, %v3186
    %v3971 = vpack.c.b16 %v3203, %v3187
    %v3972 = vpack.c.b16 %v3204, %v3188
    %v3973 = vpack.c.b16 %v3205, %v3189
    %v3974 = vpack.c.b16 %v3206, %v3190
    %v3975 = vpack.c.b16 %v3207, %v3191
    %v3976 = vpack.c.b16 %v3208, %v3192
    %v3977 = vpack.c.b16 %v3209, %v3193
    %v3978 = vpack.c.b16 %v3210, %v3194
    %v3979 = vpack.c.b16 %v3211, %v3195
    %v3980 = vpack.c.b16 %v3212, %v3196
    %v3981 = vpack.c.b16 %v3213, %v3197
    %v3982 = vpack.c.b16 %v3230, %v3214
    %v3983 = vpack.c.b16 %v3231, %v3215
    %v3984 = vpack.c.b16 %v3232, %v3216
    %v3985 = vpack.c.b16 %v3233, %v3217
    %v3986 = vpack.c.b16 %v3234, %v3218
    %v3987 = vpack.c.b16 %v3235, %v3219
    %v3988 = vpack.c.b16 %v3236, %v3220
    %v3989 = vpack.c.b16 %v3237, %v3221
    %v3990 = vpack.c.b16 %v3238, %v3222
    %v3991 = vpack.c.b16 %v3239, %v3223
    %v3992 = vpack.c.b16 %v3240, %v3224
    %v3993 = vpack.c.b16 %v3241, %v3225
    %v3994 = vpack.c.b16 %v3242, %v3226
    %v3995 = vpack.c.b16 %v3243, %v3227
    %v3996 = vpack.c.b16 %v3244, %v3228
    %v3997 = vpack.c.b16 %v3245, %v3229
    %v3998 = vpack.c.b16 %v3262, %v3246
    %v3999 = vpack.c.b16 %v3263, %v3247
    %v4000 = vpack.c.b16 %v3264, %v3248
    %v4001 = vpack.c.b16 %v3265, %v3249
    %v4002 = vpack.c.b16 %v3266, %v3250
    %v4003 = vpack.c.b16 %v3267, %v3251
    %v4004 = vpack.c.b16 %v3268, %v3252
    %v4005 = vpack.c.b16 %v3269, %v3253
    %v4006 = vpack.c.b16 %v3270, %v3254
    %v4007 = vpack.c.b16 %v3271, %v3255
    %v4008 = vpack.c.b16 %v3272, %v3256
    %v4009 = vpack.c.b16 %v3273, %v3257
    %v4010 = vpack.c.b16 %v3274, %v3258
    %v4011 = vpack.c.b16 %v3275, %v3259
    %v4012 = vpack.c.b16 %v3276, %v3260
    %v4013 = vpack.c.b16 %v3277, %v3261
    %v4014 = vpack.c.b16 %v3294, %v3278
    %v4015 = vpack.c.b16 %v3295, %v3279
    %v4016 = vpack.c.b16 %v3296, %v3280
    %v4017 = vpack.c.b16 %v3297, %v3281
    %v4018 = vpack.c.b16 %v3298, %v3282
    %v4019 = vpack.c.b16 %v3299, %v3283
    %v4020 = vpack.c.b16 %v3300, %v3284
    %v4021 = vpack.c.b16 %v3301, %v3285
    %v4022 = vpack.c.b16 %v3302, %v3286
    %v4023 = vpack.c.b16 %v3303, %v3287
    %v4024 = vpack.c.b16 %v3304, %v3288
    %v4025 = vpack.c.b16 %v3305, %v3289
    %v4026 = vpack.c.b16 %v3306, %v3290
    %v4027 = vpack.c.b16 %v3307, %v3291
    %v4028 = vpack.c.b16 %v3308, %v3292
    %v4029 = vpack.c.b16 %v3309, %v3293
    %v4030 = vpack.c.b16 %v3326, %v3310
    %v4031 = vpack.c.b16 %v3327, %v3311
    %v4032 = vpack.c.b16 %v3328, %v3312
    %v4033 = vpack.c.b16 %v3329, %v3313
    %v4034 = vpack.c.b16 %v3330, %v3314
    %v4035 = vpack.c.b16 %v3331, %v3315
    %v4036 = vpack.c.b16 %v3332, %v3316
    %v4037 = vpack.c.b16 %v3333, %v3317
    %v4038 = vpack.c.b16 %v3334, %v3318
    %v4039 = vpack.c.b16 %v3335, %v3319
    %v4040 = vpack.c.b16 %v3336, %v3320
    %v4041 = vpack.c.b16 %v3337, %v3321
    %v4042 = vpack.c.b16 %v3338, %v3322
    %v4043 = vpack.c.b16 %v3339, %v3323
    %v4044 = vpack.c.b16 %v3340, %v3324
    %v4045 = vpack.c.b16 %v3341, %v3325
    %v4046 = vpack.c.b16 %v3358, %v3342
    %v4047 = vpack.c.b16 %v3359, %v3343
    %v4048 = vpack.c.b16 %v3360, %v3344
    %v4049 = vpack.c.b16 %v3361, %v3345
    %v4050 = vpack.c.b16 %v3362, %v3346
    %v4051 = vpack.c.b16 %v3363, %v3347
    %v4052 = vpack.c.b16 %v3364, %v3348
    %v4053 = vpack.c.b16 %v3365, %v3349
    %v4054 = vpack.c.b16 %v3366, %v3350
    %v4055 = vpack.c.b16 %v3367, %v3351
    %v4056 = vpack.c.b16 %v3368, %v3352
    %v4057 = vpack.c.b16 %v3369, %v3353
    %v4058 = vpack.c.b16 %v3370, %v3354
    %v4059 = vpack.c.b16 %v3371, %v3355
    %v4060 = vpack.c.b16 %v3372, %v3356
    %v4061 = vpack.c.b16 %v3373, %v3357
    %v4062 = vpack.c.b16 %v3390, %v3374
    %v4063 = vpack.c.b16 %v3391, %v3375
    %v4064 = vpack.c.b16 %v3392, %v3376
    %v4065 = vpack.c.b16 %v3393, %v3377
    %v4066 = vpack.c.b16 %v3394, %v3378
    %v4067 = vpack.c.b16 %v3395, %v3379
    %v4068 = vpack.c.b16 %v3396, %v3380
    %v4069 = vpack.c.b16 %v3397, %v3381
    %v4070 = vpack.c.b16 %v3398, %v3382
    %v4071 = vpack.c.b16 %v3399, %v3383
    %v4072 = vpack.c.b16 %v3400, %v3384
    %v4073 = vpack.c.b16 %v3401, %v3385
    %v4074 = vpack.c.b16 %v3402, %v3386
    %v4075 = vpack.c.b16 %v3403, %v3387
    %v4076 = vpack.c.b16 %v3404, %v3388
    %v4077 = vpack.c.b16 %v3405, %v3389
    %v4078 = vpack.c.b16 %v3422, %v3406
    %v4079 = vpack.c.b16 %v3423, %v3407
    %v4080 = vpack.c.b16 %v3424, %v3408
    %v4081 = vpack.c.b16 %v3425, %v3409
    %v4082 = vpack.c.b16 %v3426, %v3410
    %v4083 = vpack.c.b16 %v3427, %v3411
    %v4084 = vpack.c.b16 %v3428, %v3412
    %v4085 = vpack.c.b16 %v3429, %v3413
    %v4086 = vpack.c.b16 %v3430, %v3414
    %v4087 = vpack.c.b16 %v3431, %v3415
    %v4088 = vpack.c.b16 %v3432, %v3416
    %v4089 = vpack.c.b16 %v3433, %v3417
    %v4090 = vpack.c.b16 %v3434, %v3418
    %v4091 = vpack.c.b16 %v3435, %v3419
    %v4092 = vpack.c.b16 %v3436, %v3420
    %v4093 = vpack.c.b16 %v3437, %v3421
    %v4094 = vpack.c.b16 %v3454, %v3438
    %v4095 = vpack.c.b16 %v3455, %v3439
    %v4096 = vpack.c.b16 %v3456, %v3440
    %v4097 = vpack.c.b16 %v3457, %v3441
    %v4098 = vpack.c.b16 %v3458, %v3442
    %v4099 = vpack.c.b16 %v3459, %v3443
    %v4100 = vpack.c.b16 %v3460, %v3444
    %v4101 = vpack.c.b16 %v3461, %v3445
    %v4102 = vpack.c.b16 %v3462, %v3446
    %v4103 = vpack.c.b16 %v3463, %v3447
    %v4104 = vpack.c.b16 %v3464, %v3448
    %v4105 = vpack.c.b16 %v3465, %v3449
    %v4106 = vpack.c.b16 %v3466, %v3450
    %v4107 = vpack.c.b16 %v3467, %v3451
    %v4108 = vpack.c.b16 %v3468, %v3452
    %v4109 = vpack.c.b16 %v3469, %v3453
    %v4110 = vpack.c.b16 %v3486, %v3470
    %v4111 = vpack.c.b16 %v3487, %v3471
    %v4112 = vpack.c.b16 %v3488, %v3472
    %v4113 = vpack.c.b16 %v3489, %v3473
    %v4114 = vpack.c.b16 %v3490, %v3474
    %v4115 = vpack.c.b16 %v3491, %v3475
    %v4116 = vpack.c.b16 %v3492, %v3476
    %v4117 = vpack.c.b16 %v3493, %v3477
    %v4118 = vpack.c.b16 %v3494, %v3478
    %v4119 = vpack.c.b16 %v3495, %v3479
    %v4120 = vpack.c.b16 %v3496, %v3480
    %v4121 = vpack.c.b16 %v3497, %v3481
    %v4122 = vpack.c.b16 %v3498, %v3482
    %v4123 = vpack.c.b16 %v3499, %v3483
    %v4124 = vpack.c.b16 %v3500, %v3484
    %v4125 = vpack.c.b16 %v3501, %v3485
    %v4126 = vpack.c.b16 %v3518, %v3502
    %v4127 = vpack.c.b16 %v3519, %v3503
    %v4128 = vpack.c.b16 %v3520, %v3504
    %v4129 = vpack.c.b16 %v3521, %v3505
    %v4130 = vpack.c.b16 %v3522, %v3506
    %v4131 = vpack.c.b16 %v3523, %v3507
    %v4132 = vpack.c.b16 %v3524, %v3508
    %v4133 = vpack.c.b16 %v3525, %v3509
    %v4134 = vpack.c.b16 %v3526, %v3510
    %v4135 = vpack.c.b16 %v3527, %v3511
    %v4136 = vpack.c.b16 %v3528, %v3512
    %v4137 = vpack.c.b16 %v3529, %v3513
    %v4138 = vpack.c.b16 %v3530, %v3514
    %v4139 = vpack.c.b16 %v3531, %v3515
    %v4140 = vpack.c.b16 %v3532, %v3516
    %v4141 = vpack.c.b16 %v3533, %v3517
    %v4142 = vpack.c.b16 %v3550, %v3534
    %v4143 = vpack.c.b16 %v3551, %v3535
    %v4144 = vpack.c.b16 %v3552, %v3536
    %v4145 = vpack.c.b16 %v3553, %v3537
    %v4146 = vpack.c.b16 %v3554, %v3538
    %v4147 = vpack.c.b16 %v3555, %v3539
    %v4148 = vpack.c.b16 %v3556, %v3540
    %v4149 = vpack.c.b16 %v3557, %v3541
    %v4150 = vpack.c.b16 %v3558, %v3542
    %v4151 = vpack.c.b16 %v3559, %v3543
    %v4152 = vpack.c.b16 %v3560, %v3544
    %v4153 = vpack.c.b16 %v3561, %v3545
    %v4154 = vpack.c.b16 %v3562, %v3546
    %v4155 = vpack.c.b16 %v3563, %v3547
    %v4156 = vpack.c.b16 %v3564, %v3548
    %v4157 = vpack.c.b16 %v3565, %v3549
    %v4158 = vpack.c.b16 %v3582, %v3566
    %v4159 = vpack.c.b16 %v3583, %v3567
    %v4160 = vpack.c.b16 %v3584, %v3568
    %v4161 = vpack.c.b16 %v3585, %v3569
    %v4162 = vpack.c.b16 %v3586, %v3570
    %v4163 = vpack.c.b16 %v3587, %v3571
    %v4164 = vpack.c.b16 %v3588, %v3572
    %v4165 = vpack.c.b16 %v3589, %v3573
    %v4166 = vpack.c.b16 %v3590, %v3574
    %v4167 = vpack.c.b16 %v3591, %v3575
    %v4168 = vpack.c.b16 %v3592, %v3576
    %v4169 = vpack.c.b16 %v3593, %v3577
    %v4170 = vpack.c.b16 %v3594, %v3578
    %v4171 = vpack.c.b16 %v3595, %v3579
    %v4172 = vpack.c.b16 %v3596, %v3580
    %v4173 = vpack.c.b16 %v3597, %v3581
    %v4174 = vpack.c.b16 %v3614, %v3598
    %v4175 = vpack.c.b16 %v3615, %v3599
    %v4176 = vpack.c.b16 %v3616, %v3600
    %v4177 = vpack.c.b16 %v3617, %v3601
    %v4178 = vpack.c.b16 %v3618, %v3602
    %v4179 = vpack.c.b16 %v3619, %v3603
    %v4180 = vpack.c.b16 %v3620, %v3604
    %v4181 = vpack.c.b16 %v3621, %v3605
    %v4182 = vpack.c.b16 %v3622, %v3606
    %v4183 = vpack.c.b16 %v3623, %v3607
    %v4184 = vpack.c.b16 %v3624, %v3608
    %v4185 = vpack.c.b16 %v3625, %v3609
    %v4186 = vpack.c.b16 %v3626, %v3610
    %v4187 = vpack.c.b16 %v3627, %v3611
    %v4188 = vpack.c.b16 %v3628, %v3612
    %v4189 = vpack.c.b16 %v3629, %v3613
    %v4190 = vpack.c.b16 %v3646, %v3630
    %v4191 = vpack.c.b16 %v3647, %v3631
    %v4192 = vpack.c.b16 %v3648, %v3632
    %v4193 = vpack.c.b16 %v3649, %v3633
    %v4194 = vpack.c.b16 %v3650, %v3634
    %v4195 = vpack.c.b16 %v3651, %v3635
    %v4196 = vpack.c.b16 %v3652, %v3636
    %v4197 = vpack.c.b16 %v3653, %v3637
    %v4198 = vpack.c.b16 %v3654, %v3638
    %v4199 = vpack.c.b16 %v3655, %v3639
    %v4200 = vpack.c.b16 %v3656, %v3640
    %v4201 = vpack.c.b16 %v3657, %v3641
    %v4202 = vpack.c.b16 %v3658, %v3642
    %v4203 = vpack.c.b16 %v3659, %v3643
    %v4204 = vpack.c.b16 %v3660, %v3644
    %v4205 = vpack.c.b16 %v3661, %v3645
    %v4206 = vpack.c.b16 %v3678, %v3662
    %v4207 = vpack.c.b16 %v3679, %v3663
    %v4208 = vpack.c.b16 %v3680, %v3664
    %v4209 = vpack.c.b16 %v3681, %v3665
    %v4210 = vpack.c.b16 %v3682, %v3666
    %v4211 = vpack.c.b16 %v3683, %v3667
    %v4212 = vpack.c.b16 %v3684, %v3668
    %v4213 = vpack.c.b16 %v3685, %v3669
    %v4214 = vpack.c.b16 %v3686, %v3670
    %v4215 = vpack.c.b16 %v3687, %v3671
    %v4216 = vpack.c.b16 %v3688, %v3672
    %v4217 = vpack.c.b16 %v3689, %v3673
    %v4218 = vpack.c.b16 %v3690, %v3674
    %v4219 = vpack.c.b16 %v3691, %v3675
    %v4220 = vpack.c.b16 %v3692, %v3676
    %v4221 = vpack.c.b16 %v3693, %v3677
    %v4222 = vpack.c.b16 %v3710, %v3694
    %v4223 = vpack.c.b16 %v3711, %v3695
    %v4224 = vpack.c.b16 %v3712, %v3696
    %v4225 = vpack.c.b16 %v3713, %v3697
    %v4226 = vpack.c.b16 %v3714, %v3698
    %v4227 = vpack.c.b16 %v3715, %v3699
    %v4228 = vpack.c.b16 %v3716, %v3700
    %v4229 = vpack.c.b16 %v3717, %v3701
    %v4230 = vpack.c.b16 %v3718, %v3702
    %v4231 = vpack.c.b16 %v3719, %v3703
    %v4232 = vpack.c.b16 %v3720, %v3704
    %v4233 = vpack.c.b16 %v3721, %v3705
    %v4234 = vpack.c.b16 %v3722, %v3706
    %v4235 = vpack.c.b16 %v3723, %v3707
    %v4236 = vpack.c.b16 %v3724, %v3708
    %v4237 = vpack.c.b16 %v3725, %v3709
    %4750 = vmatprep.subr.bf16.mxu0 %v3727
    %4751 = vmatpush1.bf16.msra.mxu0 %v3726
    %4752 = vmatprep.subr.bf16.mxu0 %v3743
    %4753 = vmatpush1.bf16.msra.mxu0 %v3742
    %4754 = vmatprep.subr.bf16.mxu0 %v3759
    %4755 = vmatpush1.bf16.msra.mxu0 %v3758
    %4756 = vmatprep.subr.bf16.mxu0 %v3775
    %4757 = vmatpush1.bf16.msra.mxu0 %v3774
    %4758 = vmatprep.subr.bf16.mxu0 %v3791
    %4759 = vmatpush1.bf16.msra.mxu0 %v3790
    %4760 = vmatprep.subr.bf16.mxu0 %v3807
    %4761 = vmatpush1.bf16.msra.mxu0 %v3806
    %4762 = vmatprep.subr.bf16.mxu0 %v3823
    %4763 = vmatpush1.bf16.msra.mxu0 %v3822
    %4764 = vmatprep.subr.bf16.mxu0 %v3839
    %4765 = vmatpush1.bf16.msra.mxu0 %v3838
    %4766 = vmatprep.subr.bf16.mxu0 %v3855
    %4767 = vmatpush1.bf16.msra.mxu0 %v3854
    %4768 = vmatprep.subr.bf16.mxu0 %v3871
    %4769 = vmatpush1.bf16.msra.mxu0 %v3870
    %4770 = vmatprep.subr.bf16.mxu0 %v3887
    %4771 = vmatpush1.bf16.msra.mxu0 %v3886
    %4772 = vmatprep.subr.bf16.mxu0 %v3903
    %4773 = vmatpush1.bf16.msra.mxu0 %v3902
    %4774 = vmatprep.subr.bf16.mxu0 %v3919
    %4775 = vmatpush1.bf16.msra.mxu0 %v3918
    %4776 = vmatprep.subr.bf16.mxu0 %v3935
    %4777 = vmatpush1.bf16.msra.mxu0 %v3934
    %4778 = vmatprep.subr.bf16.mxu0 %v3951
    %4779 = vmatpush1.bf16.msra.mxu0 %v3950
    %4780 = vmatprep.subr.bf16.mxu0 %v3967
    %4781 = vmatpush1.bf16.msra.mxu0 %v3966
    %4782 = vmatprep.mubr.bf16.mxu0 %v1591
    %4783 = vmatmul.mubr.bf16.gmra.mrb[0].mxu0 %v1590
    %v4784 = vpop.f32.mrb[0].mxu0
    %v4785 = vadd.f32 %v2113, %v4784
    %v4786 = vpop.f32.mrb[0].mxu0
    %v4787 = vadd.f32 %v2117, %v4786
    %v4788 = vpop.f32.mrb[0].mxu0
    %v4789 = vpop.f32.mrb[0].mxu0
    %4790 = vdwg.mxu0
    %4791 = vmatprep.subr.bf16.mxu0 %v3983
    %4792 = vmatpush1.bf16.msra.mxu0 %v3982
    %4793 = vmatprep.subr.bf16.mxu0 %v3999
    %4794 = vmatpush1.bf16.msra.mxu0 %v3998
    %4795 = vmatprep.subr.bf16.mxu0 %v4015
    %4796 = vmatpush1.bf16.msra.mxu0 %v4014
    %4797 = vmatprep.subr.bf16.mxu0 %v4031
    %4798 = vmatpush1.bf16.msra.mxu0 %v4030
    %4799 = vmatprep.subr.bf16.mxu0 %v4047
    %4800 = vmatpush1.bf16.msra.mxu0 %v4046
    %4801 = vmatprep.subr.bf16.mxu0 %v4063
    %4802 = vmatpush1.bf16.msra.mxu0 %v4062
    %4803 = vmatprep.subr.bf16.mxu0 %v4079
    %4804 = vmatpush1.bf16.msra.mxu0 %v4078
    %4805 = vmatprep.subr.bf16.mxu0 %v4095
    %4806 = vmatpush1.bf16.msra.mxu0 %v4094
    %4807 = vmatprep.subr.bf16.mxu0 %v4111
    %4808 = vmatpush1.bf16.msra.mxu0 %v4110
    %4809 = vmatprep.subr.bf16.mxu0 %v4127
    %4810 = vmatpush1.bf16.msra.mxu0 %v4126
    %4811 = vmatprep.subr.bf16.mxu0 %v4143
    %4812 = vmatpush1.bf16.msra.mxu0 %v4142
    %4813 = vmatprep.subr.bf16.mxu0 %v4159
    %4814 = vmatpush1.bf16.msra.mxu0 %v4158
    %4815 = vmatprep.subr.bf16.mxu0 %v4175
    %4816 = vmatpush1.bf16.msra.mxu0 %v4174
    %4817 = vmatprep.subr.bf16.mxu0 %v4191
    %4818 = vmatpush1.bf16.msra.mxu0 %v4190
    %4819 = vmatprep.subr.bf16.mxu0 %v4207
    %4820 = vmatpush1.bf16.msra.mxu0 %v4206
    %4821 = vmatprep.subr.bf16.mxu0 %v4223
    %4822 = vmatpush1.bf16.msra.mxu0 %v4222
    %4823 = vmatprep.mubr.bf16.mxu0 %v1593
    %4824 = vmatmul.mubr.bf16.gmra.mrb[0].mxu0 %v1592
    %v4825 = vpop.f32.mrb[0].mxu0
    %v4826 = vadd.f32 %v4785, %v4825
    %v4827 = vpop.f32.mrb[0].mxu0
    %v4828 = vadd.f32 %v4787, %v4827
    %v4829 = vpop.f32.mrb[0].mxu0
    %v4830 = vpop.f32.mrb[0].mxu0
    %4831 = vdwg.mxu0
    %4832 = vmatprep.subr.bf16.mxu0 %v3729
    %4833 = vmatpush1.bf16.msra.mxu0 %v3728
    %4834 = vmatprep.subr.bf16.mxu0 %v3745
    %4835 = vmatpush1.bf16.msra.mxu0 %v3744
    %4836 = vmatprep.subr.bf16.mxu0 %v3761
    %4837 = vmatpush1.bf16.msra.mxu0 %v3760
    %4838 = vmatprep.subr.bf16.mxu0 %v3777
    %4839 = vmatpush1.bf16.msra.mxu0 %v3776
    %4840 = vmatprep.subr.bf16.mxu0 %v3793
    %4841 = vmatpush1.bf16.msra.mxu0 %v3792
    %4842 = vmatprep.subr.bf16.mxu0 %v3809
    %4843 = vmatpush1.bf16.msra.mxu0 %v3808
    %4844 = vmatprep.subr.bf16.mxu0 %v3825
    %4845 = vmatpush1.bf16.msra.mxu0 %v3824
    %4846 = vmatprep.subr.bf16.mxu0 %v3841
    %4847 = vmatpush1.bf16.msra.mxu0 %v3840
    %4848 = vmatprep.subr.bf16.mxu0 %v3857
    %4849 = vmatpush1.bf16.msra.mxu0 %v3856
    %4850 = vmatprep.subr.bf16.mxu0 %v3873
    %4851 = vmatpush1.bf16.msra.mxu0 %v3872
    %4852 = vmatprep.subr.bf16.mxu0 %v3889
    %4853 = vmatpush1.bf16.msra.mxu0 %v3888
    %4854 = vmatprep.subr.bf16.mxu0 %v3905
    %4855 = vmatpush1.bf16.msra.mxu0 %v3904
    %4856 = vmatprep.subr.bf16.mxu0 %v3921
    %4857 = vmatpush1.bf16.msra.mxu0 %v3920
    %4858 = vmatprep.subr.bf16.mxu0 %v3937
    %4859 = vmatpush1.bf16.msra.mxu0 %v3936
    %4860 = vmatprep.subr.bf16.mxu0 %v3953
    %4861 = vmatpush1.bf16.msra.mxu0 %v3952
    %4862 = vmatprep.subr.bf16.mxu0 %v3969
    %4863 = vmatpush1.bf16.msra.mxu0 %v3968
    %4864 = vmatprep.mubr.bf16.mxu0 %v1591
    %4865 = vmatmul.mubr.bf16.gmra.mrb[0].mxu0 %v1590
    %v4866 = vpop.f32.mrb[0].mxu0
    %v4867 = vadd.f32 %v2121, %v4866
    %v4868 = vpop.f32.mrb[0].mxu0
    %v4869 = vadd.f32 %v2125, %v4868
    %v4870 = vpop.f32.mrb[0].mxu0
    %v4871 = vpop.f32.mrb[0].mxu0
    %4872 = vdwg.mxu0
    %4873 = vmatprep.subr.bf16.mxu0 %v3985
    %4874 = vmatpush1.bf16.msra.mxu0 %v3984
    %4875 = vmatprep.subr.bf16.mxu0 %v4001
    %4876 = vmatpush1.bf16.msra.mxu0 %v4000
    %4877 = vmatprep.subr.bf16.mxu0 %v4017
    %4878 = vmatpush1.bf16.msra.mxu0 %v4016
    %4879 = vmatprep.subr.bf16.mxu0 %v4033
    %4880 = vmatpush1.bf16.msra.mxu0 %v4032
    %4881 = vmatprep.subr.bf16.mxu0 %v4049
    %4882 = vmatpush1.bf16.msra.mxu0 %v4048
    %4883 = vmatprep.subr.bf16.mxu0 %v4065
    %4884 = vmatpush1.bf16.msra.mxu0 %v4064
    %4885 = vmatprep.subr.bf16.mxu0 %v4081
    %4886 = vmatpush1.bf16.msra.mxu0 %v4080
    %4887 = vmatprep.subr.bf16.mxu0 %v4097
    %4888 = vmatpush1.bf16.msra.mxu0 %v4096
    %4889 = vmatprep.subr.bf16.mxu0 %v4113
    %4890 = vmatpush1.bf16.msra.mxu0 %v4112
    %4891 = vmatprep.subr.bf16.mxu0 %v4129
    %4892 = vmatpush1.bf16.msra.mxu0 %v4128
    %4893 = vmatprep.subr.bf16.mxu0 %v4145
    %4894 = vmatpush1.bf16.msra.mxu0 %v4144
    %4895 = vmatprep.subr.bf16.mxu0 %v4161
    %4896 = vmatpush1.bf16.msra.mxu0 %v4160
    %4897 = vmatprep.subr.bf16.mxu0 %v4177
    %4898 = vmatpush1.bf16.msra.mxu0 %v4176
    %4899 = vmatprep.subr.bf16.mxu0 %v4193
    %4900 = vmatpush1.bf16.msra.mxu0 %v4192
    %4901 = vmatprep.subr.bf16.mxu0 %v4209
    %4902 = vmatpush1.bf16.msra.mxu0 %v4208
    %4903 = vmatprep.subr.bf16.mxu0 %v4225
    %4904 = vmatpush1.bf16.msra.mxu0 %v4224
    %4905 = vmatprep.mubr.bf16.mxu0 %v1593
    %4906 = vmatmul.mubr.bf16.gmra.mrb[0].mxu0 %v1592
    %v4907 = vpop.f32.mrb[0].mxu0
    %v4908 = vadd.f32 %v4867, %v4907
    %v4909 = vpop.f32.mrb[0].mxu0
    %v4910 = vadd.f32 %v4869, %v4909
    %v4911 = vpop.f32.mrb[0].mxu0
    %v4912 = vpop.f32.mrb[0].mxu0
    %4913 = vdwg.mxu0
    %4914 = vmatprep.subr.bf16.mxu0 %v3731
    %4915 = vmatpush1.bf16.msra.mxu0 %v3730
    %4916 = vmatprep.subr.bf16.mxu0 %v3747
    %4917 = vmatpush1.bf16.msra.mxu0 %v3746
    %4918 = vmatprep.subr.bf16.mxu0 %v3763
    %4919 = vmatpush1.bf16.msra.mxu0 %v3762
    %4920 = vmatprep.subr.bf16.mxu0 %v3779
    %4921 = vmatpush1.bf16.msra.mxu0 %v3778
    %4922 = vmatprep.subr.bf16.mxu0 %v3795
    %4923 = vmatpush1.bf16.msra.mxu0 %v3794
    %4924 = vmatprep.subr.bf16.mxu0 %v3811
    %4925 = vmatpush1.bf16.msra.mxu0 %v3810
    %4926 = vmatprep.subr.bf16.mxu0 %v3827
    %4927 = vmatpush1.bf16.msra.mxu0 %v3826
    %4928 = vmatprep.subr.bf16.mxu0 %v3843
    %4929 = vmatpush1.bf16.msra.mxu0 %v3842
    %4930 = vmatprep.subr.bf16.mxu0 %v3859
    %4931 = vmatpush1.bf16.msra.mxu0 %v3858
    %4932 = vmatprep.subr.bf16.mxu0 %v3875
    %4933 = vmatpush1.bf16.msra.mxu0 %v3874
    %4934 = vmatprep.subr.bf16.mxu0 %v3891
    %4935 = vmatpush1.bf16.msra.mxu0 %v3890
    %4936 = vmatprep.subr.bf16.mxu0 %v3907
    %4937 = vmatpush1.bf16.msra.mxu0 %v3906
    %4938 = vmatprep.subr.bf16.mxu0 %v3923
    %4939 = vmatpush1.bf16.msra.mxu0 %v3922
    %4940 = vmatprep.subr.bf16.mxu0 %v3939
    %4941 = vmatpush1.bf16.msra.mxu0 %v3938
    %4942 = vmatprep.subr.bf16.mxu0 %v3955
    %4943 = vmatpush1.bf16.msra.mxu0 %v3954
    %4944 = vmatprep.subr.bf16.mxu0 %v3971
    %4945 = vmatpush1.bf16.msra.mxu0 %v3970
    %4946 = vmatprep.mubr.bf16.mxu0 %v1591
    %4947 = vmatmul.mubr.bf16.gmra.mrb[0].mxu0 %v1590
    %v4948 = vpop.f32.mrb[0].mxu0
    %v4949 = vadd.f32 %v2129, %v4948
    %v4950 = vpop.f32.mrb[0].mxu0
    %v4951 = vadd.f32 %v2133, %v4950
    %v4952 = vpop.f32.mrb[0].mxu0
    %v4953 = vpop.f32.mrb[0].mxu0
    %4954 = vdwg.mxu0
    %4955 = vmatprep.subr.bf16.mxu0 %v3987
    %4956 = vmatpush1.bf16.msra.mxu0 %v3986
    %4957 = vmatprep.subr.bf16.mxu0 %v4003
    %4958 = vmatpush1.bf16.msra.mxu0 %v4002
    %4959 = vmatprep.subr.bf16.mxu0 %v4019
    %4960 = vmatpush1.bf16.msra.mxu0 %v4018
    %4961 = vmatprep.subr.bf16.mxu0 %v4035
    %4962 = vmatpush1.bf16.msra.mxu0 %v4034
    %4963 = vmatprep.subr.bf16.mxu0 %v4051
    %4964 = vmatpush1.bf16.msra.mxu0 %v4050
    %4965 = vmatprep.subr.bf16.mxu0 %v4067
    %4966 = vmatpush1.bf16.msra.mxu0 %v4066
    %4967 = vmatprep.subr.bf16.mxu0 %v4083
    %4968 = vmatpush1.bf16.msra.mxu0 %v4082
    %4969 = vmatprep.subr.bf16.mxu0 %v4099
    %4970 = vmatpush1.bf16.msra.mxu0 %v4098
    %4971 = vmatprep.subr.bf16.mxu0 %v4115
    %4972 = vmatpush1.bf16.msra.mxu0 %v4114
    %4973 = vmatprep.subr.bf16.mxu0 %v4131
    %4974 = vmatpush1.bf16.msra.mxu0 %v4130
    %4975 = vmatprep.subr.bf16.mxu0 %v4147
    %4976 = vmatpush1.bf16.msra.mxu0 %v4146
    %4977 = vmatprep.subr.bf16.mxu0 %v4163
    %4978 = vmatpush1.bf16.msra.mxu0 %v4162
    %4979 = vmatprep.subr.bf16.mxu0 %v4179
    %4980 = vmatpush1.bf16.msra.mxu0 %v4178
    %4981 = vmatprep.subr.bf16.mxu0 %v4195
    %4982 = vmatpush1.bf16.msra.mxu0 %v4194
    %4983 = vmatprep.subr.bf16.mxu0 %v4211
    %4984 = vmatpush1.bf16.msra.mxu0 %v4210
    %4985 = vmatprep.subr.bf16.mxu0 %v4227
    %4986 = vmatpush1.bf16.msra.mxu0 %v4226
    %4987 = vmatprep.mubr.bf16.mxu0 %v1593
    %4988 = vmatmul.mubr.bf16.gmra.mrb[0].mxu0 %v1592
    %v4989 = vpop.f32.mrb[0].mxu0
    %v4990 = vadd.f32 %v4949, %v4989
    %v4991 = vpop.f32.mrb[0].mxu0
    %v4992 = vadd.f32 %v4951, %v4991
    %v4993 = vpop.f32.mrb[0].mxu0
    %v4994 = vpop.f32.mrb[0].mxu0
    %4995 = vdwg.mxu0
    %4996 = vmatprep.subr.bf16.mxu0 %v3733
    %4997 = vmatpush1.bf16.msra.mxu0 %v3732
    %4998 = vmatprep.subr.bf16.mxu0 %v3749
    %4999 = vmatpush1.bf16.msra.mxu0 %v3748
    %5000 = vmatprep.subr.bf16.mxu0 %v3765
    %5001 = vmatpush1.bf16.msra.mxu0 %v3764
    %5002 = vmatprep.subr.bf16.mxu0 %v3781
    %5003 = vmatpush1.bf16.msra.mxu0 %v3780
    %5004 = vmatprep.subr.bf16.mxu0 %v3797
    %5005 = vmatpush1.bf16.msra.mxu0 %v3796
    %5006 = vmatprep.subr.bf16.mxu0 %v3813
    %5007 = vmatpush1.bf16.msra.mxu0 %v3812
    %5008 = vmatprep.subr.bf16.mxu0 %v3829
    %5009 = vmatpush1.bf16.msra.mxu0 %v3828
    %5010 = vmatprep.subr.bf16.mxu0 %v3845
    %5011 = vmatpush1.bf16.msra.mxu0 %v3844
    %5012 = vmatprep.subr.bf16.mxu0 %v3861
    %5013 = vmatpush1.bf16.msra.mxu0 %v3860
    %5014 = vmatprep.subr.bf16.mxu0 %v3877
    %5015 = vmatpush1.bf16.msra.mxu0 %v3876
    %5016 = vmatprep.subr.bf16.mxu0 %v3893
    %5017 = vmatpush1.bf16.msra.mxu0 %v3892
    %5018 = vmatprep.subr.bf16.mxu0 %v3909
    %5019 = vmatpush1.bf16.msra.mxu0 %v3908
    %5020 = vmatprep.subr.bf16.mxu0 %v3925
    %5021 = vmatpush1.bf16.msra.mxu0 %v3924
    %5022 = vmatprep.subr.bf16.mxu0 %v3941
    %5023 = vmatpush1.bf16.msra.mxu0 %v3940
    %5024 = vmatprep.subr.bf16.mxu0 %v3957
    %5025 = vmatpush1.bf16.msra.mxu0 %v3956
    %5026 = vmatprep.subr.bf16.mxu0 %v3973
    %5027 = vmatpush1.bf16.msra.mxu0 %v3972
    %5028 = vmatprep.mubr.bf16.mxu0 %v1591
    %5029 = vmatmul.mubr.bf16.gmra.mrb[0].mxu0 %v1590
    %v5030 = vpop.f32.mrb[0].mxu0
    %v5031 = vadd.f32 %v2137, %v5030
    %v5032 = vpop.f32.mrb[0].mxu0
    %v5033 = vadd.f32 %v2141, %v5032
    %v5034 = vpop.f32.mrb[0].mxu0
    %v5035 = vpop.f32.mrb[0].mxu0
    %5036 = vdwg.mxu0
    %5037 = vmatprep.subr.bf16.mxu0 %v3989
    %5038 = vmatpush1.bf16.msra.mxu0 %v3988
    %5039 = vmatprep.subr.bf16.mxu0 %v4005
    %5040 = vmatpush1.bf16.msra.mxu0 %v4004
    %5041 = vmatprep.subr.bf16.mxu0 %v4021
    %5042 = vmatpush1.bf16.msra.mxu0 %v4020
    %5043 = vmatprep.subr.bf16.mxu0 %v4037
    %5044 = vmatpush1.bf16.msra.mxu0 %v4036
    %5045 = vmatprep.subr.bf16.mxu0 %v4053
    %5046 = vmatpush1.bf16.msra.mxu0 %v4052
    %5047 = vmatprep.subr.bf16.mxu0 %v4069
    %5048 = vmatpush1.bf16.msra.mxu0 %v4068
    %5049 = vmatprep.subr.bf16.mxu0 %v4085
    %5050 = vmatpush1.bf16.msra.mxu0 %v4084
    %5051 = vmatprep.subr.bf16.mxu0 %v4101
    %5052 = vmatpush1.bf16.msra.mxu0 %v4100
    %5053 = vmatprep.subr.bf16.mxu0 %v4117
    %5054 = vmatpush1.bf16.msra.mxu0 %v4116
    %5055 = vmatprep.subr.bf16.mxu0 %v4133
    %5056 = vmatpush1.bf16.msra.mxu0 %v4132
    %5057 = vmatprep.subr.bf16.mxu0 %v4149
    %5058 = vmatpush1.bf16.msra.mxu0 %v4148
    %5059 = vmatprep.subr.bf16.mxu0 %v4165
    %5060 = vmatpush1.bf16.msra.mxu0 %v4164
    %5061 = vmatprep.subr.bf16.mxu0 %v4181
    %5062 = vmatpush1.bf16.msra.mxu0 %v4180
    %5063 = vmatprep.subr.bf16.mxu0 %v4197
    %5064 = vmatpush1.bf16.msra.mxu0 %v4196
    %5065 = vmatprep.subr.bf16.mxu0 %v4213
    %5066 = vmatpush1.bf16.msra.mxu0 %v4212
    %5067 = vmatprep.subr.bf16.mxu0 %v4229
    %5068 = vmatpush1.bf16.msra.mxu0 %v4228
    %5069 = vmatprep.mubr.bf16.mxu0 %v1593
    %5070 = vmatmul.mubr.bf16.gmra.mrb[0].mxu0 %v1592
    %v5071 = vpop.f32.mrb[0].mxu0
    %v5072 = vadd.f32 %v5031, %v5071
    %v5073 = vpop.f32.mrb[0].mxu0
    %v5074 = vadd.f32 %v5033, %v5073
    %v5075 = vpop.f32.mrb[0].mxu0
    %v5076 = vpop.f32.mrb[0].mxu0
    %5077 = vdwg.mxu0
    %5078 = vmatprep.subr.bf16.mxu0 %v3735
    %5079 = vmatpush1.bf16.msra.mxu0 %v3734
    %5080 = vmatprep.subr.bf16.mxu0 %v3751
    %5081 = vmatpush1.bf16.msra.mxu0 %v3750
    %5082 = vmatprep.subr.bf16.mxu0 %v3767
    %5083 = vmatpush1.bf16.msra.mxu0 %v3766
    %5084 = vmatprep.subr.bf16.mxu0 %v3783
    %5085 = vmatpush1.bf16.msra.mxu0 %v3782
    %5086 = vmatprep.subr.bf16.mxu0 %v3799
    %5087 = vmatpush1.bf16.msra.mxu0 %v3798
    %5088 = vmatprep.subr.bf16.mxu0 %v3815
    %5089 = vmatpush1.bf16.msra.mxu0 %v3814
    %5090 = vmatprep.subr.bf16.mxu0 %v3831
    %5091 = vmatpush1.bf16.msra.mxu0 %v3830
    %5092 = vmatprep.subr.bf16.mxu0 %v3847
    %5093 = vmatpush1.bf16.msra.mxu0 %v3846
    %5094 = vmatprep.subr.bf16.mxu0 %v3863
    %5095 = vmatpush1.bf16.msra.mxu0 %v3862
    %5096 = vmatprep.subr.bf16.mxu0 %v3879
    %5097 = vmatpush1.bf16.msra.mxu0 %v3878
    %5098 = vmatprep.subr.bf16.mxu0 %v3895
    %5099 = vmatpush1.bf16.msra.mxu0 %v3894
    %5100 = vmatprep.subr.bf16.mxu0 %v3911
    %5101 = vmatpush1.bf16.msra.mxu0 %v3910
    %5102 = vmatprep.subr.bf16.mxu0 %v3927
    %5103 = vmatpush1.bf16.msra.mxu0 %v3926
    %5104 = vmatprep.subr.bf16.mxu0 %v3943
    %5105 = vmatpush1.bf16.msra.mxu0 %v3942
    %5106 = vmatprep.subr.bf16.mxu0 %v3959
    %5107 = vmatpush1.bf16.msra.mxu0 %v3958
    %5108 = vmatprep.subr.bf16.mxu0 %v3975
    %5109 = vmatpush1.bf16.msra.mxu0 %v3974
    %5110 = vmatprep.mubr.bf16.mxu0 %v1591
    %5111 = vmatmul.mubr.bf16.gmra.mrb[0].mxu0 %v1590
    %v5112 = vpop.f32.mrb[0].mxu0
    %v5113 = vadd.f32 %v2145, %v5112
    %v5114 = vpop.f32.mrb[0].mxu0
    %v5115 = vadd.f32 %v2149, %v5114
    %v5116 = vpop.f32.mrb[0].mxu0
    %v5117 = vpop.f32.mrb[0].mxu0
    %5118 = vdwg.mxu0
    %5119 = vmatprep.subr.bf16.mxu0 %v3991
    %5120 = vmatpush1.bf16.msra.mxu0 %v3990
    %5121 = vmatprep.subr.bf16.mxu0 %v4007
    %5122 = vmatpush1.bf16.msra.mxu0 %v4006
    %5123 = vmatprep.subr.bf16.mxu0 %v4023
    %5124 = vmatpush1.bf16.msra.mxu0 %v4022
    %5125 = vmatprep.subr.bf16.mxu0 %v4039
    %5126 = vmatpush1.bf16.msra.mxu0 %v4038
    %5127 = vmatprep.subr.bf16.mxu0 %v4055
    %5128 = vmatpush1.bf16.msra.mxu0 %v4054
    %5129 = vmatprep.subr.bf16.mxu0 %v4071
    %5130 = vmatpush1.bf16.msra.mxu0 %v4070
    %5131 = vmatprep.subr.bf16.mxu0 %v4087
    %5132 = vmatpush1.bf16.msra.mxu0 %v4086
    %5133 = vmatprep.subr.bf16.mxu0 %v4103
    %5134 = vmatpush1.bf16.msra.mxu0 %v4102
    %5135 = vmatprep.subr.bf16.mxu0 %v4119
    %5136 = vmatpush1.bf16.msra.mxu0 %v4118
    %5137 = vmatprep.subr.bf16.mxu0 %v4135
    %5138 = vmatpush1.bf16.msra.mxu0 %v4134
    %5139 = vmatprep.subr.bf16.mxu0 %v4151
    %5140 = vmatpush1.bf16.msra.mxu0 %v4150
    %5141 = vmatprep.subr.bf16.mxu0 %v4167
    %5142 = vmatpush1.bf16.msra.mxu0 %v4166
    %5143 = vmatprep.subr.bf16.mxu0 %v4183
    %5144 = vmatpush1.bf16.msra.mxu0 %v4182
    %5145 = vmatprep.subr.bf16.mxu0 %v4199
    %5146 = vmatpush1.bf16.msra.mxu0 %v4198
    %5147 = vmatprep.subr.bf16.mxu0 %v4215
    %5148 = vmatpush1.bf16.msra.mxu0 %v4214
    %5149 = vmatprep.subr.bf16.mxu0 %v4231
    %5150 = vmatpush1.bf16.msra.mxu0 %v4230
    %5151 = vmatprep.mubr.bf16.mxu0 %v1593
    %5152 = vmatmul.mubr.bf16.gmra.mrb[0].mxu0 %v1592
    %v5153 = vpop.f32.mrb[0].mxu0
    %v5154 = vadd.f32 %v5113, %v5153
    %v5155 = vpop.f32.mrb[0].mxu0
    %v5156 = vadd.f32 %v5115, %v5155
    %v5157 = vpop.f32.mrb[0].mxu0
    %v5158 = vpop.f32.mrb[0].mxu0
    %5159 = vdwg.mxu0
    %5160 = vmatprep.subr.bf16.mxu0 %v3737
    %5161 = vmatpush1.bf16.msra.mxu0 %v3736
    %5162 = vmatprep.subr.bf16.mxu0 %v3753
    %5163 = vmatpush1.bf16.msra.mxu0 %v3752
    %5164 = vmatprep.subr.bf16.mxu0 %v3769
    %5165 = vmatpush1.bf16.msra.mxu0 %v3768
    %5166 = vmatprep.subr.bf16.mxu0 %v3785
    %5167 = vmatpush1.bf16.msra.mxu0 %v3784
    %5168 = vmatprep.subr.bf16.mxu0 %v3801
    %5169 = vmatpush1.bf16.msra.mxu0 %v3800
    %5170 = vmatprep.subr.bf16.mxu0 %v3817
    %5171 = vmatpush1.bf16.msra.mxu0 %v3816
    %5172 = vmatprep.subr.bf16.mxu0 %v3833
    %5173 = vmatpush1.bf16.msra.mxu0 %v3832
    %5174 = vmatprep.subr.bf16.mxu0 %v3849
    %5175 = vmatpush1.bf16.msra.mxu0 %v3848
    %5176 = vmatprep.subr.bf16.mxu0 %v3865
    %5177 = vmatpush1.bf16.msra.mxu0 %v3864
    %5178 = vmatprep.subr.bf16.mxu0 %v3881
    %5179 = vmatpush1.bf16.msra.mxu0 %v3880
    %5180 = vmatprep.subr.bf16.mxu0 %v3897
    %5181 = vmatpush1.bf16.msra.mxu0 %v3896
    %5182 = vmatprep.subr.bf16.mxu0 %v3913
    %5183 = vmatpush1.bf16.msra.mxu0 %v3912
    %5184 = vmatprep.subr.bf16.mxu0 %v3929
    %5185 = vmatpush1.bf16.msra.mxu0 %v3928
    %5186 = vmatprep.subr.bf16.mxu0 %v3945
    %5187 = vmatpush1.bf16.msra.mxu0 %v3944
    %5188 = vmatprep.subr.bf16.mxu0 %v3961
    %5189 = vmatpush1.bf16.msra.mxu0 %v3960
    %5190 = vmatprep.subr.bf16.mxu0 %v3977
    %5191 = vmatpush1.bf16.msra.mxu0 %v3976
    %5192 = vmatprep.mubr.bf16.mxu0 %v1591
    %5193 = vmatmul.mubr.bf16.gmra.mrb[0].mxu0 %v1590
    %v5194 = vpop.f32.mrb[0].mxu0
    %v5195 = vadd.f32 %v2153, %v5194
    %v5196 = vpop.f32.mrb[0].mxu0
    %v5197 = vadd.f32 %v2157, %v5196
    %v5198 = vpop.f32.mrb[0].mxu0
    %v5199 = vpop.f32.mrb[0].mxu0
    %5200 = vdwg.mxu0
    %5201 = vmatprep.subr.bf16.mxu0 %v3993
    %5202 = vmatpush1.bf16.msra.mxu0 %v3992
    %5203 = vmatprep.subr.bf16.mxu0 %v4009
    %5204 = vmatpush1.bf16.msra.mxu0 %v4008
    %5205 = vmatprep.subr.bf16.mxu0 %v4025
    %5206 = vmatpush1.bf16.msra.mxu0 %v4024
    %5207 = vmatprep.subr.bf16.mxu0 %v4041
    %5208 = vmatpush1.bf16.msra.mxu0 %v4040
    %5209 = vmatprep.subr.bf16.mxu0 %v4057
    %5210 = vmatpush1.bf16.msra.mxu0 %v4056
    %5211 = vmatprep.subr.bf16.mxu0 %v4073
    %5212 = vmatpush1.bf16.msra.mxu0 %v4072
    %5213 = vmatprep.subr.bf16.mxu0 %v4089
    %5214 = vmatpush1.bf16.msra.mxu0 %v4088
    %5215 = vmatprep.subr.bf16.mxu0 %v4105
    %5216 = vmatpush1.bf16.msra.mxu0 %v4104
    %5217 = vmatprep.subr.bf16.mxu0 %v4121
    %5218 = vmatpush1.bf16.msra.mxu0 %v4120
    %5219 = vmatprep.subr.bf16.mxu0 %v4137
    %5220 = vmatpush1.bf16.msra.mxu0 %v4136
    %5221 = vmatprep.subr.bf16.mxu0 %v4153
    %5222 = vmatpush1.bf16.msra.mxu0 %v4152
    %5223 = vmatprep.subr.bf16.mxu0 %v4169
    %5224 = vmatpush1.bf16.msra.mxu0 %v4168
    %5225 = vmatprep.subr.bf16.mxu0 %v4185
    %5226 = vmatpush1.bf16.msra.mxu0 %v4184
    %5227 = vmatprep.subr.bf16.mxu0 %v4201
    %5228 = vmatpush1.bf16.msra.mxu0 %v4200
    %5229 = vmatprep.subr.bf16.mxu0 %v4217
    %5230 = vmatpush1.bf16.msra.mxu0 %v4216
    %5231 = vmatprep.subr.bf16.mxu0 %v4233
    %5232 = vmatpush1.bf16.msra.mxu0 %v4232
    %5233 = vmatprep.mubr.bf16.mxu0 %v1593
    %5234 = vmatmul.mubr.bf16.gmra.mrb[0].mxu0 %v1592
    %v5235 = vpop.f32.mrb[0].mxu0
    %v5236 = vadd.f32 %v5195, %v5235
    %v5237 = vpop.f32.mrb[0].mxu0
    %v5238 = vadd.f32 %v5197, %v5237
    %v5239 = vpop.f32.mrb[0].mxu0
    %v5240 = vpop.f32.mrb[0].mxu0
    %5241 = vdwg.mxu0
    %5242 = vmatprep.subr.bf16.mxu0 %v3739
    %5243 = vmatpush1.bf16.msra.mxu0 %v3738
    %5244 = vmatprep.subr.bf16.mxu0 %v3755
    %5245 = vmatpush1.bf16.msra.mxu0 %v3754
    %5246 = vmatprep.subr.bf16.mxu0 %v3771
    %5247 = vmatpush1.bf16.msra.mxu0 %v3770
    %5248 = vmatprep.subr.bf16.mxu0 %v3787
    %5249 = vmatpush1.bf16.msra.mxu0 %v3786
    %5250 = vmatprep.subr.bf16.mxu0 %v3803
    %5251 = vmatpush1.bf16.msra.mxu0 %v3802
    %5252 = vmatprep.subr.bf16.mxu0 %v3819
    %5253 = vmatpush1.bf16.msra.mxu0 %v3818
    %5254 = vmatprep.subr.bf16.mxu0 %v3835
    %5255 = vmatpush1.bf16.msra.mxu0 %v3834
    %5256 = vmatprep.subr.bf16.mxu0 %v3851
    %5257 = vmatpush1.bf16.msra.mxu0 %v3850
    %5258 = vmatprep.subr.bf16.mxu0 %v3867
    %5259 = vmatpush1.bf16.msra.mxu0 %v3866
    %5260 = vmatprep.subr.bf16.mxu0 %v3883
    %5261 = vmatpush1.bf16.msra.mxu0 %v3882
    %5262 = vmatprep.subr.bf16.mxu0 %v3899
    %5263 = vmatpush1.bf16.msra.mxu0 %v3898
    %5264 = vmatprep.subr.bf16.mxu0 %v3915
    %5265 = vmatpush1.bf16.msra.mxu0 %v3914
    %5266 = vmatprep.subr.bf16.mxu0 %v3931
    %5267 = vmatpush1.bf16.msra.mxu0 %v3930
    %5268 = vmatprep.subr.bf16.mxu0 %v3947
    %5269 = vmatpush1.bf16.msra.mxu0 %v3946
    %5270 = vmatprep.subr.bf16.mxu0 %v3963
    %5271 = vmatpush1.bf16.msra.mxu0 %v3962
    %5272 = vmatprep.subr.bf16.mxu0 %v3979
    %5273 = vmatpush1.bf16.msra.mxu0 %v3978
    %5274 = vmatprep.mubr.bf16.mxu0 %v1591
    %5275 = vmatmul.mubr.bf16.gmra.mrb[0].mxu0 %v1590
    %v5276 = vpop.f32.mrb[0].mxu0
    %v5277 = vadd.f32 %v2161, %v5276
    %v5278 = vpop.f32.mrb[0].mxu0
    %v5279 = vadd.f32 %v2165, %v5278
    %v5280 = vpop.f32.mrb[0].mxu0
    %v5281 = vpop.f32.mrb[0].mxu0
    %5282 = vdwg.mxu0
    %5283 = vmatprep.subr.bf16.mxu0 %v3995
    %5284 = vmatpush1.bf16.msra.mxu0 %v3994
    %5285 = vmatprep.subr.bf16.mxu0 %v4011
    %5286 = vmatpush1.bf16.msra.mxu0 %v4010
    %5287 = vmatprep.subr.bf16.mxu0 %v4027
    %5288 = vmatpush1.bf16.msra.mxu0 %v4026
    %5289 = vmatprep.subr.bf16.mxu0 %v4043
    %5290 = vmatpush1.bf16.msra.mxu0 %v4042
    %5291 = vmatprep.subr.bf16.mxu0 %v4059
    %5292 = vmatpush1.bf16.msra.mxu0 %v4058
    %5293 = vmatprep.subr.bf16.mxu0 %v4075
    %5294 = vmatpush1.bf16.msra.mxu0 %v4074
    %5295 = vmatprep.subr.bf16.mxu0 %v4091
    %5296 = vmatpush1.bf16.msra.mxu0 %v4090
    %5297 = vmatprep.subr.bf16.mxu0 %v4107
    %5298 = vmatpush1.bf16.msra.mxu0 %v4106
    %5299 = vmatprep.subr.bf16.mxu0 %v4123
    %5300 = vmatpush1.bf16.msra.mxu0 %v4122
    %5301 = vmatprep.subr.bf16.mxu0 %v4139
    %5302 = vmatpush1.bf16.msra.mxu0 %v4138
    %5303 = vmatprep.subr.bf16.mxu0 %v4155
    %5304 = vmatpush1.bf16.msra.mxu0 %v4154
    %5305 = vmatprep.subr.bf16.mxu0 %v4171
    %5306 = vmatpush1.bf16.msra.mxu0 %v4170
    %5307 = vmatprep.subr.bf16.mxu0 %v4187
    %5308 = vmatpush1.bf16.msra.mxu0 %v4186
    %5309 = vmatprep.subr.bf16.mxu0 %v4203
    %5310 = vmatpush1.bf16.msra.mxu0 %v4202
    %5311 = vmatprep.subr.bf16.mxu0 %v4219
    %5312 = vmatpush1.bf16.msra.mxu0 %v4218
    %5313 = vmatprep.subr.bf16.mxu0 %v4235
    %5314 = vmatpush1.bf16.msra.mxu0 %v4234
    %5315 = vmatprep.mubr.bf16.mxu0 %v1593
    %5316 = vmatmul.mubr.bf16.gmra.mrb[0].mxu0 %v1592
    %v5317 = vpop.f32.mrb[0].mxu0
    %v5318 = vadd.f32 %v5277, %v5317
    %v5319 = vpop.f32.mrb[0].mxu0
    %v5320 = vadd.f32 %v5279, %v5319
    %v5321 = vpop.f32.mrb[0].mxu0
    %v5322 = vpop.f32.mrb[0].mxu0
    %5323 = vdwg.mxu0
    %5324 = vmatprep.subr.bf16.mxu0 %v3741
    %5325 = vmatpush1.bf16.msra.mxu0 %v3740
    %5326 = vmatprep.subr.bf16.mxu0 %v3757
    %5327 = vmatpush1.bf16.msra.mxu0 %v3756
    %5328 = vmatprep.subr.bf16.mxu0 %v3773
    %5329 = vmatpush1.bf16.msra.mxu0 %v3772
    %5330 = vmatprep.subr.bf16.mxu0 %v3789
    %5331 = vmatpush1.bf16.msra.mxu0 %v3788
    %5332 = vmatprep.subr.bf16.mxu0 %v3805
    %5333 = vmatpush1.bf16.msra.mxu0 %v3804
    %5334 = vmatprep.subr.bf16.mxu0 %v3821
    %5335 = vmatpush1.bf16.msra.mxu0 %v3820
    %5336 = vmatprep.subr.bf16.mxu0 %v3837
    %5337 = vmatpush1.bf16.msra.mxu0 %v3836
    %5338 = vmatprep.subr.bf16.mxu0 %v3853
    %5339 = vmatpush1.bf16.msra.mxu0 %v3852
    %5340 = vmatprep.subr.bf16.mxu0 %v3869
    %5341 = vmatpush1.bf16.msra.mxu0 %v3868
    %5342 = vmatprep.subr.bf16.mxu0 %v3885
    %5343 = vmatpush1.bf16.msra.mxu0 %v3884
    %5344 = vmatprep.subr.bf16.mxu0 %v3901
    %5345 = vmatpush1.bf16.msra.mxu0 %v3900
    %5346 = vmatprep.subr.bf16.mxu0 %v3917
    %5347 = vmatpush1.bf16.msra.mxu0 %v3916
    %5348 = vmatprep.subr.bf16.mxu0 %v3933
    %5349 = vmatpush1.bf16.msra.mxu0 %v3932
    %5350 = vmatprep.subr.bf16.mxu0 %v3949
    %5351 = vmatpush1.bf16.msra.mxu0 %v3948
    %5352 = vmatprep.subr.bf16.mxu0 %v3965
    %5353 = vmatpush1.bf16.msra.mxu0 %v3964
    %5354 = vmatprep.subr.bf16.mxu0 %v3981
    %5355 = vmatpush1.bf16.msra.mxu0 %v3980
    %5356 = vmatprep.mubr.bf16.mxu0 %v1591
    %5357 = vmatmul.mubr.bf16.gmra.mrb[0].mxu0 %v1590
    %v5358 = vpop.f32.mrb[0].mxu0
    %v5359 = vadd.f32 %v2169, %v5358
    %v5360 = vpop.f32.mrb[0].mxu0
    %v5361 = vadd.f32 %v2173, %v5360
    %v5362 = vpop.f32.mrb[0].mxu0
    %v5363 = vpop.f32.mrb[0].mxu0
    %5364 = vdwg.mxu0
    %5365 = vmatprep.subr.bf16.mxu0 %v3997
    %5366 = vmatpush1.bf16.msra.mxu0 %v3996
    %5367 = vmatprep.subr.bf16.mxu0 %v4013
    %5368 = vmatpush1.bf16.msra.mxu0 %v4012
    %5369 = vmatprep.subr.bf16.mxu0 %v4029
    %5370 = vmatpush1.bf16.msra.mxu0 %v4028
    %5371 = vmatprep.subr.bf16.mxu0 %v4045
    %5372 = vmatpush1.bf16.msra.mxu0 %v4044
    %5373 = vmatprep.subr.bf16.mxu0 %v4061
    %5374 = vmatpush1.bf16.msra.mxu0 %v4060
    %5375 = vmatprep.subr.bf16.mxu0 %v4077
    %5376 = vmatpush1.bf16.msra.mxu0 %v4076
    %5377 = vmatprep.subr.bf16.mxu0 %v4093
    %5378 = vmatpush1.bf16.msra.mxu0 %v4092
    %5379 = vmatprep.subr.bf16.mxu0 %v4109
    %5380 = vmatpush1.bf16.msra.mxu0 %v4108
    %5381 = vmatprep.subr.bf16.mxu0 %v4125
    %5382 = vmatpush1.bf16.msra.mxu0 %v4124
    %5383 = vmatprep.subr.bf16.mxu0 %v4141
    %5384 = vmatpush1.bf16.msra.mxu0 %v4140
    %5385 = vmatprep.subr.bf16.mxu0 %v4157
    %5386 = vmatpush1.bf16.msra.mxu0 %v4156
    %5387 = vmatprep.subr.bf16.mxu0 %v4173
    %5388 = vmatpush1.bf16.msra.mxu0 %v4172
    %5389 = vmatprep.subr.bf16.mxu0 %v4189
    %5390 = vmatpush1.bf16.msra.mxu0 %v4188
    %5391 = vmatprep.subr.bf16.mxu0 %v4205
    %5392 = vmatpush1.bf16.msra.mxu0 %v4204
    %5393 = vmatprep.subr.bf16.mxu0 %v4221
    %5394 = vmatpush1.bf16.msra.mxu0 %v4220
    %5395 = vmatprep.subr.bf16.mxu0 %v4237
    %5396 = vmatpush1.bf16.msra.mxu0 %v4236
    %5397 = vmatprep.mubr.bf16.mxu0 %v1593
    %5398 = vmatmul.mubr.bf16.gmra.mrb[0].mxu0 %v1592
    %v5399 = vpop.f32.mrb[0].mxu0
    %v5400 = vadd.f32 %v5359, %v5399
    %v5401 = vpop.f32.mrb[0].mxu0
    %v5402 = vadd.f32 %v5361, %v5401
    %v5403 = vpop.f32.mrb[0].mxu0
    %v5404 = vpop.f32.mrb[0].mxu0
    %5405 = vdwg.mxu0
    %v5406 = vmax.f32 %v4826, 0.0
    %v5407 = vmax.f32 %v4828, 0.0
    %v5408 = vmax.f32 %v4908, 0.0
    %v5409 = vmax.f32 %v4910, 0.0
    %v5410 = vmax.f32 %v4990, 0.0
    %v5411 = vmax.f32 %v4992, 0.0
    %v5412 = vmax.f32 %v5072, 0.0
    %v5413 = vmax.f32 %v5074, 0.0
    %v5414 = vmax.f32 %v5154, 0.0
    %v5415 = vmax.f32 %v5156, 0.0
    %v5416 = vmax.f32 %v5236, 0.0
    %v5417 = vmax.f32 %v5238, 0.0
    %v5418 = vmax.f32 %v5318, 0.0
    %v5419 = vmax.f32 %v5320, 0.0
    %v5420 = vmax.f32 %v5400, 0.0
    %v5421 = vmax.f32 %v5402, 0.0
    %v5422 = vpack.c.bf16 %v5406, %v5406
    %v5423 = vpack.c.bf16 %v5407, %v5407
    %v5424 = vpack.c.bf16 %v5408, %v5408
    %v5425 = vpack.c.bf16 %v5409, %v5409
    %v5426 = vpack.c.bf16 %v5410, %v5410
    %v5427 = vpack.c.bf16 %v5411, %v5411
    %v5428 = vpack.c.bf16 %v5412, %v5412
    %v5429 = vpack.c.bf16 %v5413, %v5413
    %v5430 = vpack.c.bf16 %v5414, %v5414
    %v5431 = vpack.c.bf16 %v5415, %v5415
    %v5432 = vpack.c.bf16 %v5416, %v5416
    %v5433 = vpack.c.bf16 %v5417, %v5417
    %v5434 = vpack.c.bf16 %v5418, %v5418
    %v5435 = vpack.c.bf16 %v5419, %v5419
    %v5436 = vpack.c.bf16 %v5420, %v5420
    %v5437 = vpack.c.bf16 %v5421, %v5421
    %v5438 = vld [vmem:[#allocation12] sm:$0xf]
    %v5439 = vld [vmem:[#allocation12 + $0x4] sm:$0xf]
    %v5440 = vld [vmem:[#allocation12 + $0x8] sm:$0xf]
    %v5441 = vld [vmem:[#allocation12 + $0xc] sm:$0xf]
    %v5442 = vld [vmem:[#allocation12 + $0x10] sm:$0xf]
    %v5443 = vld [vmem:[#allocation12 + $0x14] sm:$0xf]
    %v5444 = vld [vmem:[#allocation12 + $0x18] sm:$0xf]
    %v5445 = vld [vmem:[#allocation12 + $0x1c] sm:$0xf]
    %v5446 = vld [vmem:[#allocation12 + $0x20] sm:$0xf]
    %v5447 = vld [vmem:[#allocation12 + $0x24] sm:$0xf]
    %v5448 = vld [vmem:[#allocation12 + $0x28] sm:$0xf]
    %v5449 = vld [vmem:[#allocation12 + $0x2c] sm:$0xf]
    %v5450 = vld [vmem:[#allocation12 + $0x30] sm:$0xf]
    %v5451 = vld [vmem:[#allocation12 + $0x34] sm:$0xf]
    %v5452 = vld [vmem:[#allocation12 + $0x38] sm:$0xf]
    %v5453 = vld [vmem:[#allocation12 + $0x3c] sm:$0xf]
    %v5454 = vld [vmem:[#allocation12 + $0x40] sm:$0xf]
    %v5455 = vld [vmem:[#allocation12 + $0x44] sm:$0xf]
    %v5456 = vld [vmem:[#allocation12 + $0x48] sm:$0xf]
    %v5457 = vld [vmem:[#allocation12 + $0x4c] sm:$0xf]
    %v5458 = vld [vmem:[#allocation12 + $0x50] sm:$0xf]
    %v5459 = vld [vmem:[#allocation12 + $0x54] sm:$0xf]
    %v5460 = vld [vmem:[#allocation12 + $0x58] sm:$0xf]
    %v5461 = vld [vmem:[#allocation12 + $0x5c] sm:$0xf]
    %v5462 = vld [vmem:[#allocation12 + $0x60] sm:$0xf]
    %v5463 = vld [vmem:[#allocation12 + $0x64] sm:$0xf]
    %v5464 = vld [vmem:[#allocation12 + $0x68] sm:$0xf]
    %v5465 = vld [vmem:[#allocation12 + $0x6c] sm:$0xf]
    %v5466 = vld [vmem:[#allocation12 + $0x70] sm:$0xf]
    %v5467 = vld [vmem:[#allocation12 + $0x74] sm:$0xf]
    %v5468 = vld [vmem:[#allocation12 + $0x78] sm:$0xf]
    %v5469 = vld [vmem:[#allocation12 + $0x7c] sm:$0xf]
    %v5470 = vld [vmem:[#allocation12 + $0x80] sm:$0xf]
    %v5471 = vld [vmem:[#allocation12 + $0x84] sm:$0xf]
    %v5472 = vld [vmem:[#allocation12 + $0x88] sm:$0xf]
    %v5473 = vld [vmem:[#allocation12 + $0x8c] sm:$0xf]
    %v5474 = vld [vmem:[#allocation12 + $0x90] sm:$0xf]
    %v5475 = vld [vmem:[#allocation12 + $0x94] sm:$0xf]
    %v5476 = vld [vmem:[#allocation12 + $0x98] sm:$0xf]
    %v5477 = vld [vmem:[#allocation12 + $0x9c] sm:$0xf]
    %v5478 = vld [vmem:[#allocation12 + $0xa0] sm:$0xf]
    %v5479 = vld [vmem:[#allocation12 + $0xa4] sm:$0xf]
    %v5480 = vld [vmem:[#allocation12 + $0xa8] sm:$0xf]
    %v5481 = vld [vmem:[#allocation12 + $0xac] sm:$0xf]
    %v5482 = vld [vmem:[#allocation12 + $0xb0] sm:$0xf]
    %v5483 = vld [vmem:[#allocation12 + $0xb4] sm:$0xf]
    %v5484 = vld [vmem:[#allocation12 + $0xb8] sm:$0xf]
    %v5485 = vld [vmem:[#allocation12 + $0xbc] sm:$0xf]
    %v5486 = vld [vmem:[#allocation12 + $0xc0] sm:$0xf]
    %v5487 = vld [vmem:[#allocation12 + $0xc4] sm:$0xf]
    %v5488 = vld [vmem:[#allocation12 + $0xc8] sm:$0xf]
    %v5489 = vld [vmem:[#allocation12 + $0xcc] sm:$0xf]
    %v5490 = vld [vmem:[#allocation12 + $0xd0] sm:$0xf]
    %v5491 = vld [vmem:[#allocation12 + $0xd4] sm:$0xf]
    %v5492 = vld [vmem:[#allocation12 + $0xd8] sm:$0xf]
    %v5493 = vld [vmem:[#allocation12 + $0xdc] sm:$0xf]
    %v5494 = vld [vmem:[#allocation12 + $0xe0] sm:$0xf]
    %v5495 = vld [vmem:[#allocation12 + $0xe4] sm:$0xf]
    %v5496 = vld [vmem:[#allocation12 + $0xe8] sm:$0xf]
    %v5497 = vld [vmem:[#allocation12 + $0xec] sm:$0xf]
    %v5498 = vld [vmem:[#allocation12 + $0xf0] sm:$0xf]
    %v5499 = vld [vmem:[#allocation12 + $0xf4] sm:$0xf]
    %v5500 = vld [vmem:[#allocation12 + $0xf8] sm:$0xf]
    %v5501 = vld [vmem:[#allocation12 + $0xfc] sm:$0xf]
    %v5502 = vld [vmem:[#allocation12 + $0x100] sm:$0xf]
    %v5503 = vld [vmem:[#allocation12 + $0x104] sm:$0xf]
    %v5504 = vld [vmem:[#allocation12 + $0x108] sm:$0xf]
    %v5505 = vld [vmem:[#allocation12 + $0x10c] sm:$0xf]
    %v5506 = vld [vmem:[#allocation12 + $0x110] sm:$0xf]
    %v5507 = vld [vmem:[#allocation12 + $0x114] sm:$0xf]
    %v5508 = vld [vmem:[#allocation12 + $0x118] sm:$0xf]
    %v5509 = vld [vmem:[#allocation12 + $0x11c] sm:$0xf]
    %v5510 = vld [vmem:[#allocation12 + $0x120] sm:$0xf]
    %v5511 = vld [vmem:[#allocation12 + $0x124] sm:$0xf]
    %v5512 = vld [vmem:[#allocation12 + $0x128] sm:$0xf]
    %v5513 = vld [vmem:[#allocation12 + $0x12c] sm:$0xf]
    %v5514 = vld [vmem:[#allocation12 + $0x130] sm:$0xf]
    %v5515 = vld [vmem:[#allocation12 + $0x134] sm:$0xf]
    %v5516 = vld [vmem:[#allocation12 + $0x138] sm:$0xf]
    %v5517 = vld [vmem:[#allocation12 + $0x13c] sm:$0xf]
    %v5518 = vld [vmem:[#allocation12 + $0x140] sm:$0xf]
    %v5519 = vld [vmem:[#allocation12 + $0x144] sm:$0xf]
    %v5520 = vld [vmem:[#allocation12 + $0x148] sm:$0xf]
    %v5521 = vld [vmem:[#allocation12 + $0x14c] sm:$0xf]
    %v5522 = vld [vmem:[#allocation12 + $0x150] sm:$0xf]
    %v5523 = vld [vmem:[#allocation12 + $0x154] sm:$0xf]
    %v5524 = vld [vmem:[#allocation12 + $0x158] sm:$0xf]
    %v5525 = vld [vmem:[#allocation12 + $0x15c] sm:$0xf]
    %v5526 = vld [vmem:[#allocation12 + $0x160] sm:$0xf]
    %v5527 = vld [vmem:[#allocation12 + $0x164] sm:$0xf]
    %v5528 = vld [vmem:[#allocation12 + $0x168] sm:$0xf]
    %v5529 = vld [vmem:[#allocation12 + $0x16c] sm:$0xf]
    %v5530 = vld [vmem:[#allocation12 + $0x170] sm:$0xf]
    %v5531 = vld [vmem:[#allocation12 + $0x174] sm:$0xf]
    %v5532 = vld [vmem:[#allocation12 + $0x178] sm:$0xf]
    %v5533 = vld [vmem:[#allocation12 + $0x17c] sm:$0xf]
    %v5534 = vld [vmem:[#allocation12 + $0x180] sm:$0xf]
    %v5535 = vld [vmem:[#allocation12 + $0x184] sm:$0xf]
    %v5536 = vld [vmem:[#allocation12 + $0x188] sm:$0xf]
    %v5537 = vld [vmem:[#allocation12 + $0x18c] sm:$0xf]
    %v5538 = vld [vmem:[#allocation12 + $0x190] sm:$0xf]
    %v5539 = vld [vmem:[#allocation12 + $0x194] sm:$0xf]
    %v5540 = vld [vmem:[#allocation12 + $0x198] sm:$0xf]
    %v5541 = vld [vmem:[#allocation12 + $0x19c] sm:$0xf]
    %v5542 = vld [vmem:[#allocation12 + $0x1a0] sm:$0xf]
    %v5543 = vld [vmem:[#allocation12 + $0x1a4] sm:$0xf]
    %v5544 = vld [vmem:[#allocation12 + $0x1a8] sm:$0xf]
    %v5545 = vld [vmem:[#allocation12 + $0x1ac] sm:$0xf]
    %v5546 = vld [vmem:[#allocation12 + $0x1b0] sm:$0xf]
    %v5547 = vld [vmem:[#allocation12 + $0x1b4] sm:$0xf]
    %v5548 = vld [vmem:[#allocation12 + $0x1b8] sm:$0xf]
    %v5549 = vld [vmem:[#allocation12 + $0x1bc] sm:$0xf]
    %v5550 = vld [vmem:[#allocation12 + $0x1c0] sm:$0xf]
    %v5551 = vld [vmem:[#allocation12 + $0x1c4] sm:$0xf]
    %v5552 = vld [vmem:[#allocation12 + $0x1c8] sm:$0xf]
    %v5553 = vld [vmem:[#allocation12 + $0x1cc] sm:$0xf]
    %v5554 = vld [vmem:[#allocation12 + $0x1d0] sm:$0xf]
    %v5555 = vld [vmem:[#allocation12 + $0x1d4] sm:$0xf]
    %v5556 = vld [vmem:[#allocation12 + $0x1d8] sm:$0xf]
    %v5557 = vld [vmem:[#allocation12 + $0x1dc] sm:$0xf]
    %v5558 = vld [vmem:[#allocation12 + $0x1e0] sm:$0xf]
    %v5559 = vld [vmem:[#allocation12 + $0x1e4] sm:$0xf]
    %v5560 = vld [vmem:[#allocation12 + $0x1e8] sm:$0xf]
    %v5561 = vld [vmem:[#allocation12 + $0x1ec] sm:$0xf]
    %v5562 = vld [vmem:[#allocation12 + $0x1f0] sm:$0xf]
    %v5563 = vld [vmem:[#allocation12 + $0x1f4] sm:$0xf]
    %v5564 = vld [vmem:[#allocation12 + $0x1f8] sm:$0xf]
    %v5565 = vld [vmem:[#allocation12 + $0x1fc] sm:$0xf]
    %v5566 = vld [vmem:[#allocation12 + $0x200] sm:$0xf]
    %v5567 = vld [vmem:[#allocation12 + $0x204] sm:$0xf]
    %v5568 = vld [vmem:[#allocation12 + $0x208] sm:$0xf]
    %v5569 = vld [vmem:[#allocation12 + $0x20c] sm:$0xf]
    %v5570 = vld [vmem:[#allocation12 + $0x210] sm:$0xf]
    %v5571 = vld [vmem:[#allocation12 + $0x214] sm:$0xf]
    %v5572 = vld [vmem:[#allocation12 + $0x218] sm:$0xf]
    %v5573 = vld [vmem:[#allocation12 + $0x21c] sm:$0xf]
    %v5574 = vld [vmem:[#allocation12 + $0x220] sm:$0xf]
    %v5575 = vld [vmem:[#allocation12 + $0x224] sm:$0xf]
    %v5576 = vld [vmem:[#allocation12 + $0x228] sm:$0xf]
    %v5577 = vld [vmem:[#allocation12 + $0x22c] sm:$0xf]
    %v5578 = vld [vmem:[#allocation12 + $0x230] sm:$0xf]
    %v5579 = vld [vmem:[#allocation12 + $0x234] sm:$0xf]
    %v5580 = vld [vmem:[#allocation12 + $0x238] sm:$0xf]
    %v5581 = vld [vmem:[#allocation12 + $0x23c] sm:$0xf]
    %v5582 = vld [vmem:[#allocation12 + $0x240] sm:$0xf]
    %v5583 = vld [vmem:[#allocation12 + $0x244] sm:$0xf]
    %v5584 = vld [vmem:[#allocation12 + $0x248] sm:$0xf]
    %v5585 = vld [vmem:[#allocation12 + $0x24c] sm:$0xf]
    %v5586 = vld [vmem:[#allocation12 + $0x250] sm:$0xf]
    %v5587 = vld [vmem:[#allocation12 + $0x254] sm:$0xf]
    %v5588 = vld [vmem:[#allocation12 + $0x258] sm:$0xf]
    %v5589 = vld [vmem:[#allocation12 + $0x25c] sm:$0xf]
    %v5590 = vld [vmem:[#allocation12 + $0x260] sm:$0xf]
    %v5591 = vld [vmem:[#allocation12 + $0x264] sm:$0xf]
    %v5592 = vld [vmem:[#allocation12 + $0x268] sm:$0xf]
    %v5593 = vld [vmem:[#allocation12 + $0x26c] sm:$0xf]
    %v5594 = vld [vmem:[#allocation12 + $0x270] sm:$0xf]
    %v5595 = vld [vmem:[#allocation12 + $0x274] sm:$0xf]
    %v5596 = vld [vmem:[#allocation12 + $0x278] sm:$0xf]
    %v5597 = vld [vmem:[#allocation12 + $0x27c] sm:$0xf]
    %v5598 = vld [vmem:[#allocation12 + $0x280] sm:$0xf]
    %v5599 = vld [vmem:[#allocation12 + $0x284] sm:$0xf]
    %v5600 = vld [vmem:[#allocation12 + $0x288] sm:$0xf]
    %v5601 = vld [vmem:[#allocation12 + $0x28c] sm:$0xf]
    %v5602 = vld [vmem:[#allocation12 + $0x290] sm:$0xf]
    %v5603 = vld [vmem:[#allocation12 + $0x294] sm:$0xf]
    %v5604 = vld [vmem:[#allocation12 + $0x298] sm:$0xf]
    %v5605 = vld [vmem:[#allocation12 + $0x29c] sm:$0xf]
    %v5606 = vld [vmem:[#allocation12 + $0x2a0] sm:$0xf]
    %v5607 = vld [vmem:[#allocation12 + $0x2a4] sm:$0xf]
    %v5608 = vld [vmem:[#allocation12 + $0x2a8] sm:$0xf]
    %v5609 = vld [vmem:[#allocation12 + $0x2ac] sm:$0xf]
    %v5610 = vld [vmem:[#allocation12 + $0x2b0] sm:$0xf]
    %v5611 = vld [vmem:[#allocation12 + $0x2b4] sm:$0xf]
    %v5612 = vld [vmem:[#allocation12 + $0x2b8] sm:$0xf]
    %v5613 = vld [vmem:[#allocation12 + $0x2bc] sm:$0xf]
    %v5614 = vld [vmem:[#allocation12 + $0x2c0] sm:$0xf]
    %v5615 = vld [vmem:[#allocation12 + $0x2c4] sm:$0xf]
    %v5616 = vld [vmem:[#allocation12 + $0x2c8] sm:$0xf]
    %v5617 = vld [vmem:[#allocation12 + $0x2cc] sm:$0xf]
    %v5618 = vld [vmem:[#allocation12 + $0x2d0] sm:$0xf]
    %v5619 = vld [vmem:[#allocation12 + $0x2d4] sm:$0xf]
    %v5620 = vld [vmem:[#allocation12 + $0x2d8] sm:$0xf]
    %v5621 = vld [vmem:[#allocation12 + $0x2dc] sm:$0xf]
    %v5622 = vld [vmem:[#allocation12 + $0x2e0] sm:$0xf]
    %v5623 = vld [vmem:[#allocation12 + $0x2e4] sm:$0xf]
    %v5624 = vld [vmem:[#allocation12 + $0x2e8] sm:$0xf]
    %v5625 = vld [vmem:[#allocation12 + $0x2ec] sm:$0xf]
    %v5626 = vld [vmem:[#allocation12 + $0x2f0] sm:$0xf]
    %v5627 = vld [vmem:[#allocation12 + $0x2f4] sm:$0xf]
    %v5628 = vld [vmem:[#allocation12 + $0x2f8] sm:$0xf]
    %v5629 = vld [vmem:[#allocation12 + $0x2fc] sm:$0xf]
    %v5630 = vld [vmem:[#allocation12 + $0x300] sm:$0xf]
    %v5631 = vld [vmem:[#allocation12 + $0x304] sm:$0xf]
    %v5632 = vld [vmem:[#allocation12 + $0x308] sm:$0xf]
    %v5633 = vld [vmem:[#allocation12 + $0x30c] sm:$0xf]
    %v5634 = vld [vmem:[#allocation12 + $0x310] sm:$0xf]
    %v5635 = vld [vmem:[#allocation12 + $0x314] sm:$0xf]
    %v5636 = vld [vmem:[#allocation12 + $0x318] sm:$0xf]
    %v5637 = vld [vmem:[#allocation12 + $0x31c] sm:$0xf]
    %v5638 = vld [vmem:[#allocation12 + $0x320] sm:$0xf]
    %v5639 = vld [vmem:[#allocation12 + $0x324] sm:$0xf]
    %v5640 = vld [vmem:[#allocation12 + $0x328] sm:$0xf]
    %v5641 = vld [vmem:[#allocation12 + $0x32c] sm:$0xf]
    %v5642 = vld [vmem:[#allocation12 + $0x330] sm:$0xf]
    %v5643 = vld [vmem:[#allocation12 + $0x334] sm:$0xf]
    %v5644 = vld [vmem:[#allocation12 + $0x338] sm:$0xf]
    %v5645 = vld [vmem:[#allocation12 + $0x33c] sm:$0xf]
    %v5646 = vld [vmem:[#allocation12 + $0x340] sm:$0xf]
    %v5647 = vld [vmem:[#allocation12 + $0x344] sm:$0xf]
    %v5648 = vld [vmem:[#allocation12 + $0x348] sm:$0xf]
    %v5649 = vld [vmem:[#allocation12 + $0x34c] sm:$0xf]
    %v5650 = vld [vmem:[#allocation12 + $0x350] sm:$0xf]
    %v5651 = vld [vmem:[#allocation12 + $0x354] sm:$0xf]
    %v5652 = vld [vmem:[#allocation12 + $0x358] sm:$0xf]
    %v5653 = vld [vmem:[#allocation12 + $0x35c] sm:$0xf]
    %v5654 = vld [vmem:[#allocation12 + $0x360] sm:$0xf]
    %v5655 = vld [vmem:[#allocation12 + $0x364] sm:$0xf]
    %v5656 = vld [vmem:[#allocation12 + $0x368] sm:$0xf]
    %v5657 = vld [vmem:[#allocation12 + $0x36c] sm:$0xf]
    %v5658 = vld [vmem:[#allocation12 + $0x370] sm:$0xf]
    %v5659 = vld [vmem:[#allocation12 + $0x374] sm:$0xf]
    %v5660 = vld [vmem:[#allocation12 + $0x378] sm:$0xf]
    %v5661 = vld [vmem:[#allocation12 + $0x37c] sm:$0xf]
    %v5662 = vld [vmem:[#allocation12 + $0x380] sm:$0xf]
    %v5663 = vld [vmem:[#allocation12 + $0x384] sm:$0xf]
    %v5664 = vld [vmem:[#allocation12 + $0x388] sm:$0xf]
    %v5665 = vld [vmem:[#allocation12 + $0x38c] sm:$0xf]
    %v5666 = vld [vmem:[#allocation12 + $0x390] sm:$0xf]
    %v5667 = vld [vmem:[#allocation12 + $0x394] sm:$0xf]
    %v5668 = vld [vmem:[#allocation12 + $0x398] sm:$0xf]
    %v5669 = vld [vmem:[#allocation12 + $0x39c] sm:$0xf]
    %v5670 = vld [vmem:[#allocation12 + $0x3a0] sm:$0xf]
    %v5671 = vld [vmem:[#allocation12 + $0x3a4] sm:$0xf]
    %v5672 = vld [vmem:[#allocation12 + $0x3a8] sm:$0xf]
    %v5673 = vld [vmem:[#allocation12 + $0x3ac] sm:$0xf]
    %v5674 = vld [vmem:[#allocation12 + $0x3b0] sm:$0xf]
    %v5675 = vld [vmem:[#allocation12 + $0x3b4] sm:$0xf]
    %v5676 = vld [vmem:[#allocation12 + $0x3b8] sm:$0xf]
    %v5677 = vld [vmem:[#allocation12 + $0x3bc] sm:$0xf]
    %v5678 = vld [vmem:[#allocation12 + $0x3c0] sm:$0xf]
    %v5679 = vld [vmem:[#allocation12 + $0x3c4] sm:$0xf]
    %v5680 = vld [vmem:[#allocation12 + $0x3c8] sm:$0xf]
    %v5681 = vld [vmem:[#allocation12 + $0x3cc] sm:$0xf]
    %v5682 = vld [vmem:[#allocation12 + $0x3d0] sm:$0xf]
    %v5683 = vld [vmem:[#allocation12 + $0x3d4] sm:$0xf]
    %v5684 = vld [vmem:[#allocation12 + $0x3d8] sm:$0xf]
    %v5685 = vld [vmem:[#allocation12 + $0x3dc] sm:$0xf]
    %v5686 = vld [vmem:[#allocation12 + $0x3e0] sm:$0xf]
    %v5687 = vld [vmem:[#allocation12 + $0x3e4] sm:$0xf]
    %v5688 = vld [vmem:[#allocation12 + $0x3e8] sm:$0xf]
    %v5689 = vld [vmem:[#allocation12 + $0x3ec] sm:$0xf]
    %v5690 = vld [vmem:[#allocation12 + $0x3f0] sm:$0xf]
    %v5691 = vld [vmem:[#allocation12 + $0x3f4] sm:$0xf]
    %v5692 = vld [vmem:[#allocation12 + $0x3f8] sm:$0xf]
    %v5693 = vld [vmem:[#allocation12 + $0x3fc] sm:$0xf]
    %v5694 = vld [vmem:[#allocation13] sm:$0x1]
    %v5696 = vlaneseq
    %v5697 = vshrl.u32 %v5696, 7
    %v5698 = vsub.s32 0, %v5697
    %v5699 = vrot.slane %v5694, %v5698
    %v5957 = vunpack.c.l.b16 %v5438
    %v5958 = vunpack.c.l.b16 %v5439
    %v5959 = vunpack.c.l.b16 %v5440
    %v5960 = vunpack.c.l.b16 %v5441
    %v5961 = vunpack.c.l.b16 %v5442
    %v5962 = vunpack.c.l.b16 %v5443
    %v5963 = vunpack.c.l.b16 %v5444
    %v5964 = vunpack.c.l.b16 %v5445
    %v5965 = vunpack.c.l.b16 %v5446
    %v5966 = vunpack.c.l.b16 %v5447
    %v5967 = vunpack.c.l.b16 %v5448
    %v5968 = vunpack.c.l.b16 %v5449
    %v5969 = vunpack.c.l.b16 %v5450
    %v5970 = vunpack.c.l.b16 %v5451
    %v5971 = vunpack.c.l.b16 %v5452
    %v5972 = vunpack.c.l.b16 %v5453
    %v5973 = vunpack.c.l.b16 %v5454
    %v5974 = vunpack.c.l.b16 %v5455
    %v5975 = vunpack.c.l.b16 %v5456
    %v5976 = vunpack.c.l.b16 %v5457
    %v5977 = vunpack.c.l.b16 %v5458
    %v5978 = vunpack.c.l.b16 %v5459
    %v5979 = vunpack.c.l.b16 %v5460
    %v5980 = vunpack.c.l.b16 %v5461
    %v5981 = vunpack.c.l.b16 %v5462
    %v5982 = vunpack.c.l.b16 %v5463
    %v5983 = vunpack.c.l.b16 %v5464
    %v5984 = vunpack.c.l.b16 %v5465
    %v5985 = vunpack.c.l.b16 %v5466
    %v5986 = vunpack.c.l.b16 %v5467
    %v5987 = vunpack.c.l.b16 %v5468
    %v5988 = vunpack.c.l.b16 %v5469
    %v5989 = vunpack.c.l.b16 %v5470
    %v5990 = vunpack.c.l.b16 %v5471
    %v5991 = vunpack.c.l.b16 %v5472
    %v5992 = vunpack.c.l.b16 %v5473
    %v5993 = vunpack.c.l.b16 %v5474
    %v5994 = vunpack.c.l.b16 %v5475
    %v5995 = vunpack.c.l.b16 %v5476
    %v5996 = vunpack.c.l.b16 %v5477
    %v5997 = vunpack.c.l.b16 %v5478
    %v5998 = vunpack.c.l.b16 %v5479
    %v5999 = vunpack.c.l.b16 %v5480
    %v6000 = vunpack.c.l.b16 %v5481
    %v6001 = vunpack.c.l.b16 %v5482
    %v6002 = vunpack.c.l.b16 %v5483
    %v6003 = vunpack.c.l.b16 %v5484
    %v6004 = vunpack.c.l.b16 %v5485
    %v6005 = vunpack.c.l.b16 %v5486
    %v6006 = vunpack.c.l.b16 %v5487
    %v6007 = vunpack.c.l.b16 %v5488
    %v6008 = vunpack.c.l.b16 %v5489
    %v6009 = vunpack.c.l.b16 %v5490
    %v6010 = vunpack.c.l.b16 %v5491
    %v6011 = vunpack.c.l.b16 %v5492
    %v6012 = vunpack.c.l.b16 %v5493
    %v6013 = vunpack.c.l.b16 %v5494
    %v6014 = vunpack.c.l.b16 %v5495
    %v6015 = vunpack.c.l.b16 %v5496
    %v6016 = vunpack.c.l.b16 %v5497
    %v6017 = vunpack.c.l.b16 %v5498
    %v6018 = vunpack.c.l.b16 %v5499
    %v6019 = vunpack.c.l.b16 %v5500
    %v6020 = vunpack.c.l.b16 %v5501
    %v6021 = vunpack.c.l.b16 %v5502
    %v6022 = vunpack.c.l.b16 %v5503
    %v6023 = vunpack.c.l.b16 %v5504
    %v6024 = vunpack.c.l.b16 %v5505
    %v6025 = vunpack.c.l.b16 %v5506
    %v6026 = vunpack.c.l.b16 %v5507
    %v6027 = vunpack.c.l.b16 %v5508
    %v6028 = vunpack.c.l.b16 %v5509
    %v6029 = vunpack.c.l.b16 %v5510
    %v6030 = vunpack.c.l.b16 %v5511
    %v6031 = vunpack.c.l.b16 %v5512
    %v6032 = vunpack.c.l.b16 %v5513
    %v6033 = vunpack.c.l.b16 %v5514
    %v6034 = vunpack.c.l.b16 %v5515
    %v6035 = vunpack.c.l.b16 %v5516
    %v6036 = vunpack.c.l.b16 %v5517
    %v6037 = vunpack.c.l.b16 %v5518
    %v6038 = vunpack.c.l.b16 %v5519
    %v6039 = vunpack.c.l.b16 %v5520
    %v6040 = vunpack.c.l.b16 %v5521
    %v6041 = vunpack.c.l.b16 %v5522
    %v6042 = vunpack.c.l.b16 %v5523
    %v6043 = vunpack.c.l.b16 %v5524
    %v6044 = vunpack.c.l.b16 %v5525
    %v6045 = vunpack.c.l.b16 %v5526
    %v6046 = vunpack.c.l.b16 %v5527
    %v6047 = vunpack.c.l.b16 %v5528
    %v6048 = vunpack.c.l.b16 %v5529
    %v6049 = vunpack.c.l.b16 %v5530
    %v6050 = vunpack.c.l.b16 %v5531
    %v6051 = vunpack.c.l.b16 %v5532
    %v6052 = vunpack.c.l.b16 %v5533
    %v6053 = vunpack.c.l.b16 %v5534
    %v6054 = vunpack.c.l.b16 %v5535
    %v6055 = vunpack.c.l.b16 %v5536
    %v6056 = vunpack.c.l.b16 %v5537
    %v6057 = vunpack.c.l.b16 %v5538
    %v6058 = vunpack.c.l.b16 %v5539
    %v6059 = vunpack.c.l.b16 %v5540
    %v6060 = vunpack.c.l.b16 %v5541
    %v6061 = vunpack.c.l.b16 %v5542
    %v6062 = vunpack.c.l.b16 %v5543
    %v6063 = vunpack.c.l.b16 %v5544
    %v6064 = vunpack.c.l.b16 %v5545
    %v6065 = vunpack.c.l.b16 %v5546
    %v6066 = vunpack.c.l.b16 %v5547
    %v6067 = vunpack.c.l.b16 %v5548
    %v6068 = vunpack.c.l.b16 %v5549
    %v6069 = vunpack.c.l.b16 %v5550
    %v6070 = vunpack.c.l.b16 %v5551
    %v6071 = vunpack.c.l.b16 %v5552
    %v6072 = vunpack.c.l.b16 %v5553
    %v6073 = vunpack.c.l.b16 %v5554
    %v6074 = vunpack.c.l.b16 %v5555
    %v6075 = vunpack.c.l.b16 %v5556
    %v6076 = vunpack.c.l.b16 %v5557
    %v6077 = vunpack.c.l.b16 %v5558
    %v6078 = vunpack.c.l.b16 %v5559
    %v6079 = vunpack.c.l.b16 %v5560
    %v6080 = vunpack.c.l.b16 %v5561
    %v6081 = vunpack.c.l.b16 %v5562
    %v6082 = vunpack.c.l.b16 %v5563
    %v6083 = vunpack.c.l.b16 %v5564
    %v6084 = vunpack.c.l.b16 %v5565
    %v6085 = vunpack.c.l.b16 %v5566
    %v6086 = vunpack.c.l.b16 %v5567
    %v6087 = vunpack.c.l.b16 %v5568
    %v6088 = vunpack.c.l.b16 %v5569
    %v6089 = vunpack.c.l.b16 %v5570
    %v6090 = vunpack.c.l.b16 %v5571
    %v6091 = vunpack.c.l.b16 %v5572
    %v6092 = vunpack.c.l.b16 %v5573
    %v6093 = vunpack.c.l.b16 %v5574
    %v6094 = vunpack.c.l.b16 %v5575
    %v6095 = vunpack.c.l.b16 %v5576
    %v6096 = vunpack.c.l.b16 %v5577
    %v6097 = vunpack.c.l.b16 %v5578
    %v6098 = vunpack.c.l.b16 %v5579
    %v6099 = vunpack.c.l.b16 %v5580
    %v6100 = vunpack.c.l.b16 %v5581
    %v6101 = vunpack.c.l.b16 %v5582
    %v6102 = vunpack.c.l.b16 %v5583
    %v6103 = vunpack.c.l.b16 %v5584
    %v6104 = vunpack.c.l.b16 %v5585
    %v6105 = vunpack.c.l.b16 %v5586
    %v6106 = vunpack.c.l.b16 %v5587
    %v6107 = vunpack.c.l.b16 %v5588
    %v6108 = vunpack.c.l.b16 %v5589
    %v6109 = vunpack.c.l.b16 %v5590
    %v6110 = vunpack.c.l.b16 %v5591
    %v6111 = vunpack.c.l.b16 %v5592
    %v6112 = vunpack.c.l.b16 %v5593
    %v6113 = vunpack.c.l.b16 %v5594
    %v6114 = vunpack.c.l.b16 %v5595
    %v6115 = vunpack.c.l.b16 %v5596
    %v6116 = vunpack.c.l.b16 %v5597
    %v6117 = vunpack.c.l.b16 %v5598
    %v6118 = vunpack.c.l.b16 %v5599
    %v6119 = vunpack.c.l.b16 %v5600
    %v6120 = vunpack.c.l.b16 %v5601
    %v6121 = vunpack.c.l.b16 %v5602
    %v6122 = vunpack.c.l.b16 %v5603
    %v6123 = vunpack.c.l.b16 %v5604
    %v6124 = vunpack.c.l.b16 %v5605
    %v6125 = vunpack.c.l.b16 %v5606
    %v6126 = vunpack.c.l.b16 %v5607
    %v6127 = vunpack.c.l.b16 %v5608
    %v6128 = vunpack.c.l.b16 %v5609
    %v6129 = vunpack.c.l.b16 %v5610
    %v6130 = vunpack.c.l.b16 %v5611
    %v6131 = vunpack.c.l.b16 %v5612
    %v6132 = vunpack.c.l.b16 %v5613
    %v6133 = vunpack.c.l.b16 %v5614
    %v6134 = vunpack.c.l.b16 %v5615
    %v6135 = vunpack.c.l.b16 %v5616
    %v6136 = vunpack.c.l.b16 %v5617
    %v6137 = vunpack.c.l.b16 %v5618
    %v6138 = vunpack.c.l.b16 %v5619
    %v6139 = vunpack.c.l.b16 %v5620
    %v6140 = vunpack.c.l.b16 %v5621
    %v6141 = vunpack.c.l.b16 %v5622
    %v6142 = vunpack.c.l.b16 %v5623
    %v6143 = vunpack.c.l.b16 %v5624
    %v6144 = vunpack.c.l.b16 %v5625
    %v6145 = vunpack.c.l.b16 %v5626
    %v6146 = vunpack.c.l.b16 %v5627
    %v6147 = vunpack.c.l.b16 %v5628
    %v6148 = vunpack.c.l.b16 %v5629
    %v6149 = vunpack.c.l.b16 %v5630
    %v6150 = vunpack.c.l.b16 %v5631
    %v6151 = vunpack.c.l.b16 %v5632
    %v6152 = vunpack.c.l.b16 %v5633
    %v6153 = vunpack.c.l.b16 %v5634
    %v6154 = vunpack.c.l.b16 %v5635
    %v6155 = vunpack.c.l.b16 %v5636
    %v6156 = vunpack.c.l.b16 %v5637
    %v6157 = vunpack.c.l.b16 %v5638
    %v6158 = vunpack.c.l.b16 %v5639
    %v6159 = vunpack.c.l.b16 %v5640
    %v6160 = vunpack.c.l.b16 %v5641
    %v6161 = vunpack.c.l.b16 %v5642
    %v6162 = vunpack.c.l.b16 %v5643
    %v6163 = vunpack.c.l.b16 %v5644
    %v6164 = vunpack.c.l.b16 %v5645
    %v6165 = vunpack.c.l.b16 %v5646
    %v6166 = vunpack.c.l.b16 %v5647
    %v6167 = vunpack.c.l.b16 %v5648
    %v6168 = vunpack.c.l.b16 %v5649
    %v6169 = vunpack.c.l.b16 %v5650
    %v6170 = vunpack.c.l.b16 %v5651
    %v6171 = vunpack.c.l.b16 %v5652
    %v6172 = vunpack.c.l.b16 %v5653
    %v6173 = vunpack.c.l.b16 %v5654
    %v6174 = vunpack.c.l.b16 %v5655
    %v6175 = vunpack.c.l.b16 %v5656
    %v6176 = vunpack.c.l.b16 %v5657
    %v6177 = vunpack.c.l.b16 %v5658
    %v6178 = vunpack.c.l.b16 %v5659
    %v6179 = vunpack.c.l.b16 %v5660
    %v6180 = vunpack.c.l.b16 %v5661
    %v6181 = vunpack.c.l.b16 %v5662
    %v6182 = vunpack.c.l.b16 %v5663
    %v6183 = vunpack.c.l.b16 %v5664
    %v6184 = vunpack.c.l.b16 %v5665
    %v6185 = vunpack.c.l.b16 %v5666
    %v6186 = vunpack.c.l.b16 %v5667
    %v6187 = vunpack.c.l.b16 %v5668
    %v6188 = vunpack.c.l.b16 %v5669
    %v6189 = vunpack.c.l.b16 %v5670
    %v6190 = vunpack.c.l.b16 %v5671
    %v6191 = vunpack.c.l.b16 %v5672
    %v6192 = vunpack.c.l.b16 %v5673
    %v6193 = vunpack.c.l.b16 %v5674
    %v6194 = vunpack.c.l.b16 %v5675
    %v6195 = vunpack.c.l.b16 %v5676
    %v6196 = vunpack.c.l.b16 %v5677
    %v6197 = vunpack.c.l.b16 %v5678
    %v6198 = vunpack.c.l.b16 %v5679
    %v6199 = vunpack.c.l.b16 %v5680
    %v6200 = vunpack.c.l.b16 %v5681
    %v6201 = vunpack.c.l.b16 %v5682
    %v6202 = vunpack.c.l.b16 %v5683
    %v6203 = vunpack.c.l.b16 %v5684
    %v6204 = vunpack.c.l.b16 %v5685
    %v6205 = vunpack.c.l.b16 %v5686
    %v6206 = vunpack.c.l.b16 %v5687
    %v6207 = vunpack.c.l.b16 %v5688
    %v6208 = vunpack.c.l.b16 %v5689
    %v6209 = vunpack.c.l.b16 %v5690
    %v6210 = vunpack.c.l.b16 %v5691
    %v6211 = vunpack.c.l.b16 %v5692
    %v6212 = vunpack.c.l.b16 %v5693
    %v6213 = vpack.c.b16 %v5958, %v5957
    %v6214 = vpack.c.b16 %v5960, %v5959
    %v6215 = vpack.c.b16 %v5962, %v5961
    %v6216 = vpack.c.b16 %v5964, %v5963
    %v6217 = vpack.c.b16 %v5966, %v5965
    %v6218 = vpack.c.b16 %v5968, %v5967
    %v6219 = vpack.c.b16 %v5970, %v5969
    %v6220 = vpack.c.b16 %v5972, %v5971
    %v6221 = vpack.c.b16 %v5974, %v5973
    %v6222 = vpack.c.b16 %v5976, %v5975
    %v6223 = vpack.c.b16 %v5978, %v5977
    %v6224 = vpack.c.b16 %v5980, %v5979
    %v6225 = vpack.c.b16 %v5982, %v5981
    %v6226 = vpack.c.b16 %v5984, %v5983
    %v6227 = vpack.c.b16 %v5986, %v5985
    %v6228 = vpack.c.b16 %v5988, %v5987
    %v6229 = vpack.c.b16 %v5990, %v5989
    %v6230 = vpack.c.b16 %v5992, %v5991
    %v6231 = vpack.c.b16 %v5994, %v5993
    %v6232 = vpack.c.b16 %v5996, %v5995
    %v6233 = vpack.c.b16 %v5998, %v5997
    %v6234 = vpack.c.b16 %v6000, %v5999
    %v6235 = vpack.c.b16 %v6002, %v6001
    %v6236 = vpack.c.b16 %v6004, %v6003
    %v6237 = vpack.c.b16 %v6006, %v6005
    %v6238 = vpack.c.b16 %v6008, %v6007
    %v6239 = vpack.c.b16 %v6010, %v6009
    %v6240 = vpack.c.b16 %v6012, %v6011
    %v6241 = vpack.c.b16 %v6014, %v6013
    %v6242 = vpack.c.b16 %v6016, %v6015
    %v6243 = vpack.c.b16 %v6018, %v6017
    %v6244 = vpack.c.b16 %v6020, %v6019
    %v6245 = vpack.c.b16 %v6022, %v6021
    %v6246 = vpack.c.b16 %v6024, %v6023
    %v6247 = vpack.c.b16 %v6026, %v6025
    %v6248 = vpack.c.b16 %v6028, %v6027
    %v6249 = vpack.c.b16 %v6030, %v6029
    %v6250 = vpack.c.b16 %v6032, %v6031
    %v6251 = vpack.c.b16 %v6034, %v6033
    %v6252 = vpack.c.b16 %v6036, %v6035
    %v6253 = vpack.c.b16 %v6038, %v6037
    %v6254 = vpack.c.b16 %v6040, %v6039
    %v6255 = vpack.c.b16 %v6042, %v6041
    %v6256 = vpack.c.b16 %v6044, %v6043
    %v6257 = vpack.c.b16 %v6046, %v6045
    %v6258 = vpack.c.b16 %v6048, %v6047
    %v6259 = vpack.c.b16 %v6050, %v6049
    %v6260 = vpack.c.b16 %v6052, %v6051
    %v6261 = vpack.c.b16 %v6054, %v6053
    %v6262 = vpack.c.b16 %v6056, %v6055
    %v6263 = vpack.c.b16 %v6058, %v6057
    %v6264 = vpack.c.b16 %v6060, %v6059
    %v6265 = vpack.c.b16 %v6062, %v6061
    %v6266 = vpack.c.b16 %v6064, %v6063
    %v6267 = vpack.c.b16 %v6066, %v6065
    %v6268 = vpack.c.b16 %v6068, %v6067
    %v6269 = vpack.c.b16 %v6070, %v6069
    %v6270 = vpack.c.b16 %v6072, %v6071
    %v6271 = vpack.c.b16 %v6074, %v6073
    %v6272 = vpack.c.b16 %v6076, %v6075
    %v6273 = vpack.c.b16 %v6078, %v6077
    %v6274 = vpack.c.b16 %v6080, %v6079
    %v6275 = vpack.c.b16 %v6082, %v6081
    %v6276 = vpack.c.b16 %v6084, %v6083
    %v6277 = vpack.c.b16 %v6086, %v6085
    %v6278 = vpack.c.b16 %v6088, %v6087
    %v6279 = vpack.c.b16 %v6090, %v6089
    %v6280 = vpack.c.b16 %v6092, %v6091
    %v6281 = vpack.c.b16 %v6094, %v6093
    %v6282 = vpack.c.b16 %v6096, %v6095
    %v6283 = vpack.c.b16 %v6098, %v6097
    %v6284 = vpack.c.b16 %v6100, %v6099
    %v6285 = vpack.c.b16 %v6102, %v6101
    %v6286 = vpack.c.b16 %v6104, %v6103
    %v6287 = vpack.c.b16 %v6106, %v6105
    %v6288 = vpack.c.b16 %v6108, %v6107
    %v6289 = vpack.c.b16 %v6110, %v6109
    %v6290 = vpack.c.b16 %v6112, %v6111
    %v6291 = vpack.c.b16 %v6114, %v6113
    %v6292 = vpack.c.b16 %v6116, %v6115
    %v6293 = vpack.c.b16 %v6118, %v6117
    %v6294 = vpack.c.b16 %v6120, %v6119
    %v6295 = vpack.c.b16 %v6122, %v6121
    %v6296 = vpack.c.b16 %v6124, %v6123
    %v6297 = vpack.c.b16 %v6126, %v6125
    %v6298 = vpack.c.b16 %v6128, %v6127
    %v6299 = vpack.c.b16 %v6130, %v6129
    %v6300 = vpack.c.b16 %v6132, %v6131
    %v6301 = vpack.c.b16 %v6134, %v6133
    %v6302 = vpack.c.b16 %v6136, %v6135
    %v6303 = vpack.c.b16 %v6138, %v6137
    %v6304 = vpack.c.b16 %v6140, %v6139
    %v6305 = vpack.c.b16 %v6142, %v6141
    %v6306 = vpack.c.b16 %v6144, %v6143
    %v6307 = vpack.c.b16 %v6146, %v6145
    %v6308 = vpack.c.b16 %v6148, %v6147
    %v6309 = vpack.c.b16 %v6150, %v6149
    %v6310 = vpack.c.b16 %v6152, %v6151
    %v6311 = vpack.c.b16 %v6154, %v6153
    %v6312 = vpack.c.b16 %v6156, %v6155
    %v6313 = vpack.c.b16 %v6158, %v6157
    %v6314 = vpack.c.b16 %v6160, %v6159
    %v6315 = vpack.c.b16 %v6162, %v6161
    %v6316 = vpack.c.b16 %v6164, %v6163
    %v6317 = vpack.c.b16 %v6166, %v6165
    %v6318 = vpack.c.b16 %v6168, %v6167
    %v6319 = vpack.c.b16 %v6170, %v6169
    %v6320 = vpack.c.b16 %v6172, %v6171
    %v6321 = vpack.c.b16 %v6174, %v6173
    %v6322 = vpack.c.b16 %v6176, %v6175
    %v6323 = vpack.c.b16 %v6178, %v6177
    %v6324 = vpack.c.b16 %v6180, %v6179
    %v6325 = vpack.c.b16 %v6182, %v6181
    %v6326 = vpack.c.b16 %v6184, %v6183
    %v6327 = vpack.c.b16 %v6186, %v6185
    %v6328 = vpack.c.b16 %v6188, %v6187
    %v6329 = vpack.c.b16 %v6190, %v6189
    %v6330 = vpack.c.b16 %v6192, %v6191
    %v6331 = vpack.c.b16 %v6194, %v6193
    %v6332 = vpack.c.b16 %v6196, %v6195
    %v6333 = vpack.c.b16 %v6198, %v6197
    %v6334 = vpack.c.b16 %v6200, %v6199
    %v6335 = vpack.c.b16 %v6202, %v6201
    %v6336 = vpack.c.b16 %v6204, %v6203
    %v6337 = vpack.c.b16 %v6206, %v6205
    %v6338 = vpack.c.b16 %v6208, %v6207
    %v6339 = vpack.c.b16 %v6210, %v6209
    %v6340 = vpack.c.b16 %v6212, %v6211
    %6469 = vmatprep.subr.bf16.mxu0 0
    %6470 = vmatpush1.bf16.msra.mxu0 %v6213
    %6471 = vmatprep.subr.bf16.mxu0 0
    %6472 = vmatpush1.bf16.msra.mxu0 %v6214
    %6473 = vmatprep.subr.bf16.mxu0 0
    %6474 = vmatpush1.bf16.msra.mxu0 %v6215
    %6475 = vmatprep.subr.bf16.mxu0 0
    %6476 = vmatpush1.bf16.msra.mxu0 %v6216
    %6477 = vmatprep.subr.bf16.mxu0 0
    %6478 = vmatpush1.bf16.msra.mxu0 %v6217
    %6479 = vmatprep.subr.bf16.mxu0 0
    %6480 = vmatpush1.bf16.msra.mxu0 %v6218
    %6481 = vmatprep.subr.bf16.mxu0 0
    %6482 = vmatpush1.bf16.msra.mxu0 %v6219
    %6483 = vmatprep.subr.bf16.mxu0 0
    %6484 = vmatpush1.bf16.msra.mxu0 %v6220
    %6485 = vmatprep.subr.bf16.mxu0 0
    %6486 = vmatpush1.bf16.msra.mxu0 %v6221
    %6487 = vmatprep.subr.bf16.mxu0 0
    %6488 = vmatpush1.bf16.msra.mxu0 %v6222
    %6489 = vmatprep.subr.bf16.mxu0 0
    %6490 = vmatpush1.bf16.msra.mxu0 %v6223
    %6491 = vmatprep.subr.bf16.mxu0 0
    %6492 = vmatpush1.bf16.msra.mxu0 %v6224
    %6493 = vmatprep.subr.bf16.mxu0 0
    %6494 = vmatpush1.bf16.msra.mxu0 %v6225
    %6495 = vmatprep.subr.bf16.mxu0 0
    %6496 = vmatpush1.bf16.msra.mxu0 %v6226
    %6497 = vmatprep.subr.bf16.mxu0 0
    %6498 = vmatpush1.bf16.msra.mxu0 %v6227
    %6499 = vmatprep.subr.bf16.mxu0 0
    %6500 = vmatpush1.bf16.msra.mxu0 %v6228
    %6501 = vmatprep.mubr.bf16.mxu0 %v5423
    %6502 = vmatmul.mubr.bf16.gmra.mrb[0].mxu0 %v5422
    %v6503 = vpop.f32.mrb[0].mxu0
    %v6504 = vadd.f32 %v5699, %v6503
    %v6505 = vpop.f32.mrb[0].mxu0
    %v6506 = vpop.f32.mrb[0].mxu0
    %v6507 = vpop.f32.mrb[0].mxu0
    %6508 = vdwg.mxu0
    %6509 = vmatprep.subr.bf16.mxu0 0
    %6510 = vmatpush1.bf16.msra.mxu0 %v6229
    %6511 = vmatprep.subr.bf16.mxu0 0
    %6512 = vmatpush1.bf16.msra.mxu0 %v6230
    %6513 = vmatprep.subr.bf16.mxu0 0
    %6514 = vmatpush1.bf16.msra.mxu0 %v6231
    %6515 = vmatprep.subr.bf16.mxu0 0
    %6516 = vmatpush1.bf16.msra.mxu0 %v6232
    %6517 = vmatprep.subr.bf16.mxu0 0
    %6518 = vmatpush1.bf16.msra.mxu0 %v6233
    %6519 = vmatprep.subr.bf16.mxu0 0
    %6520 = vmatpush1.bf16.msra.mxu0 %v6234
    %6521 = vmatprep.subr.bf16.mxu0 0
    %6522 = vmatpush1.bf16.msra.mxu0 %v6235
    %6523 = vmatprep.subr.bf16.mxu0 0
    %6524 = vmatpush1.bf16.msra.mxu0 %v6236
    %6525 = vmatprep.subr.bf16.mxu0 0
    %6526 = vmatpush1.bf16.msra.mxu0 %v6237
    %6527 = vmatprep.subr.bf16.mxu0 0
    %6528 = vmatpush1.bf16.msra.mxu0 %v6238
    %6529 = vmatprep.subr.bf16.mxu0 0
    %6530 = vmatpush1.bf16.msra.mxu0 %v6239
    %6531 = vmatprep.subr.bf16.mxu0 0
    %6532 = vmatpush1.bf16.msra.mxu0 %v6240
    %6533 = vmatprep.subr.bf16.mxu0 0
    %6534 = vmatpush1.bf16.msra.mxu0 %v6241
    %6535 = vmatprep.subr.bf16.mxu0 0
    %6536 = vmatpush1.bf16.msra.mxu0 %v6242
    %6537 = vmatprep.subr.bf16.mxu0 0
    %6538 = vmatpush1.bf16.msra.mxu0 %v6243
    %6539 = vmatprep.subr.bf16.mxu0 0
    %6540 = vmatpush1.bf16.msra.mxu0 %v6244
    %6541 = vmatprep.mubr.bf16.mxu0 %v5425
    %6542 = vmatmul.mubr.bf16.gmra.mrb[0].mxu0 %v5424
    %v6543 = vpop.f32.mrb[0].mxu0
    %v6544 = vadd.f32 %v6504, %v6543
    %v6545 = vpop.f32.mrb[0].mxu0
    %v6546 = vpop.f32.mrb[0].mxu0
    %v6547 = vpop.f32.mrb[0].mxu0
    %6548 = vdwg.mxu0
    %6549 = vmatprep.subr.bf16.mxu0 0
    %6550 = vmatpush1.bf16.msra.mxu0 %v6245
    %6551 = vmatprep.subr.bf16.mxu0 0
    %6552 = vmatpush1.bf16.msra.mxu0 %v6246
    %6553 = vmatprep.subr.bf16.mxu0 0
    %6554 = vmatpush1.bf16.msra.mxu0 %v6247
    %6555 = vmatprep.subr.bf16.mxu0 0
    %6556 = vmatpush1.bf16.msra.mxu0 %v6248
    %6557 = vmatprep.subr.bf16.mxu0 0
    %6558 = vmatpush1.bf16.msra.mxu0 %v6249
    %6559 = vmatprep.subr.bf16.mxu0 0
    %6560 = vmatpush1.bf16.msra.mxu0 %v6250
    %6561 = vmatprep.subr.bf16.mxu0 0
    %6562 = vmatpush1.bf16.msra.mxu0 %v6251
    %6563 = vmatprep.subr.bf16.mxu0 0
    %6564 = vmatpush1.bf16.msra.mxu0 %v6252
    %6565 = vmatprep.subr.bf16.mxu0 0
    %6566 = vmatpush1.bf16.msra.mxu0 %v6253
    %6567 = vmatprep.subr.bf16.mxu0 0
    %6568 = vmatpush1.bf16.msra.mxu0 %v6254
    %6569 = vmatprep.subr.bf16.mxu0 0
    %6570 = vmatpush1.bf16.msra.mxu0 %v6255
    %6571 = vmatprep.subr.bf16.mxu0 0
    %6572 = vmatpush1.bf16.msra.mxu0 %v6256
    %6573 = vmatprep.subr.bf16.mxu0 0
    %6574 = vmatpush1.bf16.msra.mxu0 %v6257
    %6575 = vmatprep.subr.bf16.mxu0 0
    %6576 = vmatpush1.bf16.msra.mxu0 %v6258
    %6577 = vmatprep.subr.bf16.mxu0 0
    %6578 = vmatpush1.bf16.msra.mxu0 %v6259
    %6579 = vmatprep.subr.bf16.mxu0 0
    %6580 = vmatpush1.bf16.msra.mxu0 %v6260
    %6581 = vmatprep.mubr.bf16.mxu0 %v5427
    %6582 = vmatmul.mubr.bf16.gmra.mrb[0].mxu0 %v5426
    %v6583 = vpop.f32.mrb[0].mxu0
    %v6584 = vadd.f32 %v6544, %v6583
    %v6585 = vpop.f32.mrb[0].mxu0
    %v6586 = vpop.f32.mrb[0].mxu0
    %v6587 = vpop.f32.mrb[0].mxu0
    %6588 = vdwg.mxu0
    %6589 = vmatprep.subr.bf16.mxu0 0
    %6590 = vmatpush1.bf16.msra.mxu0 %v6261
    %6591 = vmatprep.subr.bf16.mxu0 0
    %6592 = vmatpush1.bf16.msra.mxu0 %v6262
    %6593 = vmatprep.subr.bf16.mxu0 0
    %6594 = vmatpush1.bf16.msra.mxu0 %v6263
    %6595 = vmatprep.subr.bf16.mxu0 0
    %6596 = vmatpush1.bf16.msra.mxu0 %v6264
    %6597 = vmatprep.subr.bf16.mxu0 0
    %6598 = vmatpush1.bf16.msra.mxu0 %v6265
    %6599 = vmatprep.subr.bf16.mxu0 0
    %6600 = vmatpush1.bf16.msra.mxu0 %v6266
    %6601 = vmatprep.subr.bf16.mxu0 0
    %6602 = vmatpush1.bf16.msra.mxu0 %v6267
    %6603 = vmatprep.subr.bf16.mxu0 0
    %6604 = vmatpush1.bf16.msra.mxu0 %v6268
    %6605 = vmatprep.subr.bf16.mxu0 0
    %6606 = vmatpush1.bf16.msra.mxu0 %v6269
    %6607 = vmatprep.subr.bf16.mxu0 0
    %6608 = vmatpush1.bf16.msra.mxu0 %v6270
    %6609 = vmatprep.subr.bf16.mxu0 0
    %6610 = vmatpush1.bf16.msra.mxu0 %v6271
    %6611 = vmatprep.subr.bf16.mxu0 0
    %6612 = vmatpush1.bf16.msra.mxu0 %v6272
    %6613 = vmatprep.subr.bf16.mxu0 0
    %6614 = vmatpush1.bf16.msra.mxu0 %v6273
    %6615 = vmatprep.subr.bf16.mxu0 0
    %6616 = vmatpush1.bf16.msra.mxu0 %v6274
    %6617 = vmatprep.subr.bf16.mxu0 0
    %6618 = vmatpush1.bf16.msra.mxu0 %v6275
    %6619 = vmatprep.subr.bf16.mxu0 0
    %6620 = vmatpush1.bf16.msra.mxu0 %v6276
    %6621 = vmatprep.mubr.bf16.mxu0 %v5429
    %6622 = vmatmul.mubr.bf16.gmra.mrb[0].mxu0 %v5428
    %v6623 = vpop.f32.mrb[0].mxu0
    %v6624 = vadd.f32 %v6584, %v6623
    %v6625 = vpop.f32.mrb[0].mxu0
    %v6626 = vpop.f32.mrb[0].mxu0
    %v6627 = vpop.f32.mrb[0].mxu0
    %6628 = vdwg.mxu0
    %6629 = vmatprep.subr.bf16.mxu0 0
    %6630 = vmatpush1.bf16.msra.mxu0 %v6277
    %6631 = vmatprep.subr.bf16.mxu0 0
    %6632 = vmatpush1.bf16.msra.mxu0 %v6278
    %6633 = vmatprep.subr.bf16.mxu0 0
    %6634 = vmatpush1.bf16.msra.mxu0 %v6279
    %6635 = vmatprep.subr.bf16.mxu0 0
    %6636 = vmatpush1.bf16.msra.mxu0 %v6280
    %6637 = vmatprep.subr.bf16.mxu0 0
    %6638 = vmatpush1.bf16.msra.mxu0 %v6281
    %6639 = vmatprep.subr.bf16.mxu0 0
    %6640 = vmatpush1.bf16.msra.mxu0 %v6282
    %6641 = vmatprep.subr.bf16.mxu0 0
    %6642 = vmatpush1.bf16.msra.mxu0 %v6283
    %6643 = vmatprep.subr.bf16.mxu0 0
    %6644 = vmatpush1.bf16.msra.mxu0 %v6284
    %6645 = vmatprep.subr.bf16.mxu0 0
    %6646 = vmatpush1.bf16.msra.mxu0 %v6285
    %6647 = vmatprep.subr.bf16.mxu0 0
    %6648 = vmatpush1.bf16.msra.mxu0 %v6286
    %6649 = vmatprep.subr.bf16.mxu0 0
    %6650 = vmatpush1.bf16.msra.mxu0 %v6287
    %6651 = vmatprep.subr.bf16.mxu0 0
    %6652 = vmatpush1.bf16.msra.mxu0 %v6288
    %6653 = vmatprep.subr.bf16.mxu0 0
    %6654 = vmatpush1.bf16.msra.mxu0 %v6289
    %6655 = vmatprep.subr.bf16.mxu0 0
    %6656 = vmatpush1.bf16.msra.mxu0 %v6290
    %6657 = vmatprep.subr.bf16.mxu0 0
    %6658 = vmatpush1.bf16.msra.mxu0 %v6291
    %6659 = vmatprep.subr.bf16.mxu0 0
    %6660 = vmatpush1.bf16.msra.mxu0 %v6292
    %6661 = vmatprep.mubr.bf16.mxu0 %v5431
    %6662 = vmatmul.mubr.bf16.gmra.mrb[0].mxu0 %v5430
    %v6663 = vpop.f32.mrb[0].mxu0
    %v6664 = vadd.f32 %v6624, %v6663
    %v6665 = vpop.f32.mrb[0].mxu0
    %v6666 = vpop.f32.mrb[0].mxu0
    %v6667 = vpop.f32.mrb[0].mxu0
    %6668 = vdwg.mxu0
    %6669 = vmatprep.subr.bf16.mxu0 0
    %6670 = vmatpush1.bf16.msra.mxu0 %v6293
    %6671 = vmatprep.subr.bf16.mxu0 0
    %6672 = vmatpush1.bf16.msra.mxu0 %v6294
    %6673 = vmatprep.subr.bf16.mxu0 0
    %6674 = vmatpush1.bf16.msra.mxu0 %v6295
    %6675 = vmatprep.subr.bf16.mxu0 0
    %6676 = vmatpush1.bf16.msra.mxu0 %v6296
    %6677 = vmatprep.subr.bf16.mxu0 0
    %6678 = vmatpush1.bf16.msra.mxu0 %v6297
    %6679 = vmatprep.subr.bf16.mxu0 0
    %6680 = vmatpush1.bf16.msra.mxu0 %v6298
    %6681 = vmatprep.subr.bf16.mxu0 0
    %6682 = vmatpush1.bf16.msra.mxu0 %v6299
    %6683 = vmatprep.subr.bf16.mxu0 0
    %6684 = vmatpush1.bf16.msra.mxu0 %v6300
    %6685 = vmatprep.subr.bf16.mxu0 0
    %6686 = vmatpush1.bf16.msra.mxu0 %v6301
    %6687 = vmatprep.subr.bf16.mxu0 0
    %6688 = vmatpush1.bf16.msra.mxu0 %v6302
    %6689 = vmatprep.subr.bf16.mxu0 0
    %6690 = vmatpush1.bf16.msra.mxu0 %v6303
    %6691 = vmatprep.subr.bf16.mxu0 0
    %6692 = vmatpush1.bf16.msra.mxu0 %v6304
    %6693 = vmatprep.subr.bf16.mxu0 0
    %6694 = vmatpush1.bf16.msra.mxu0 %v6305
    %6695 = vmatprep.subr.bf16.mxu0 0
    %6696 = vmatpush1.bf16.msra.mxu0 %v6306
    %6697 = vmatprep.subr.bf16.mxu0 0
    %6698 = vmatpush1.bf16.msra.mxu0 %v6307
    %6699 = vmatprep.subr.bf16.mxu0 0
    %6700 = vmatpush1.bf16.msra.mxu0 %v6308
    %6701 = vmatprep.mubr.bf16.mxu0 %v5433
    %6702 = vmatmul.mubr.bf16.gmra.mrb[0].mxu0 %v5432
    %v6703 = vpop.f32.mrb[0].mxu0
    %v6704 = vadd.f32 %v6664, %v6703
    %v6705 = vpop.f32.mrb[0].mxu0
    %v6706 = vpop.f32.mrb[0].mxu0
    %v6707 = vpop.f32.mrb[0].mxu0
    %6708 = vdwg.mxu0
    %6709 = vmatprep.subr.bf16.mxu0 0
    %6710 = vmatpush1.bf16.msra.mxu0 %v6309
    %6711 = vmatprep.subr.bf16.mxu0 0
    %6712 = vmatpush1.bf16.msra.mxu0 %v6310
    %6713 = vmatprep.subr.bf16.mxu0 0
    %6714 = vmatpush1.bf16.msra.mxu0 %v6311
    %6715 = vmatprep.subr.bf16.mxu0 0
    %6716 = vmatpush1.bf16.msra.mxu0 %v6312
    %6717 = vmatprep.subr.bf16.mxu0 0
    %6718 = vmatpush1.bf16.msra.mxu0 %v6313
    %6719 = vmatprep.subr.bf16.mxu0 0
    %6720 = vmatpush1.bf16.msra.mxu0 %v6314
    %6721 = vmatprep.subr.bf16.mxu0 0
    %6722 = vmatpush1.bf16.msra.mxu0 %v6315
    %6723 = vmatprep.subr.bf16.mxu0 0
    %6724 = vmatpush1.bf16.msra.mxu0 %v6316
    %6725 = vmatprep.subr.bf16.mxu0 0
    %6726 = vmatpush1.bf16.msra.mxu0 %v6317
    %6727 = vmatprep.subr.bf16.mxu0 0
    %6728 = vmatpush1.bf16.msra.mxu0 %v6318
    %6729 = vmatprep.subr.bf16.mxu0 0
    %6730 = vmatpush1.bf16.msra.mxu0 %v6319
    %6731 = vmatprep.subr.bf16.mxu0 0
    %6732 = vmatpush1.bf16.msra.mxu0 %v6320
    %6733 = vmatprep.subr.bf16.mxu0 0
    %6734 = vmatpush1.bf16.msra.mxu0 %v6321
    %6735 = vmatprep.subr.bf16.mxu0 0
    %6736 = vmatpush1.bf16.msra.mxu0 %v6322
    %6737 = vmatprep.subr.bf16.mxu0 0
    %6738 = vmatpush1.bf16.msra.mxu0 %v6323
    %6739 = vmatprep.subr.bf16.mxu0 0
    %6740 = vmatpush1.bf16.msra.mxu0 %v6324
    %6741 = vmatprep.mubr.bf16.mxu0 %v5435
    %6742 = vmatmul.mubr.bf16.gmra.mrb[0].mxu0 %v5434
    %v6743 = vpop.f32.mrb[0].mxu0
    %v6744 = vadd.f32 %v6704, %v6743
    %v6745 = vpop.f32.mrb[0].mxu0
    %v6746 = vpop.f32.mrb[0].mxu0
    %v6747 = vpop.f32.mrb[0].mxu0
    %6748 = vdwg.mxu0
    %6749 = vmatprep.subr.bf16.mxu0 0
    %6750 = vmatpush1.bf16.msra.mxu0 %v6325
    %6751 = vmatprep.subr.bf16.mxu0 0
    %6752 = vmatpush1.bf16.msra.mxu0 %v6326
    %6753 = vmatprep.subr.bf16.mxu0 0
    %6754 = vmatpush1.bf16.msra.mxu0 %v6327
    %6755 = vmatprep.subr.bf16.mxu0 0
    %6756 = vmatpush1.bf16.msra.mxu0 %v6328
    %6757 = vmatprep.subr.bf16.mxu0 0
    %6758 = vmatpush1.bf16.msra.mxu0 %v6329
    %6759 = vmatprep.subr.bf16.mxu0 0
    %6760 = vmatpush1.bf16.msra.mxu0 %v6330
    %6761 = vmatprep.subr.bf16.mxu0 0
    %6762 = vmatpush1.bf16.msra.mxu0 %v6331
    %6763 = vmatprep.subr.bf16.mxu0 0
    %6764 = vmatpush1.bf16.msra.mxu0 %v6332
    %6765 = vmatprep.subr.bf16.mxu0 0
    %6766 = vmatpush1.bf16.msra.mxu0 %v6333
    %6767 = vmatprep.subr.bf16.mxu0 0
    %6768 = vmatpush1.bf16.msra.mxu0 %v6334
    %6769 = vmatprep.subr.bf16.mxu0 0
    %6770 = vmatpush1.bf16.msra.mxu0 %v6335
    %6771 = vmatprep.subr.bf16.mxu0 0
    %6772 = vmatpush1.bf16.msra.mxu0 %v6336
    %6773 = vmatprep.subr.bf16.mxu0 0
    %6774 = vmatpush1.bf16.msra.mxu0 %v6337
    %6775 = vmatprep.subr.bf16.mxu0 0
    %6776 = vmatpush1.bf16.msra.mxu0 %v6338
    %6777 = vmatprep.subr.bf16.mxu0 0
    %6778 = vmatpush1.bf16.msra.mxu0 %v6339
    %6779 = vmatprep.subr.bf16.mxu0 0
    %6780 = vmatpush1.bf16.msra.mxu0 %v6340
    %6781 = vmatprep.mubr.bf16.mxu0 %v5437
    %6782 = vmatmul.mubr.bf16.gmra.mrb[0].mxu0 %v5436
    %v6783 = vpop.f32.mrb[0].mxu0
    %v6784 = vadd.f32 %v6744, %v6783
    %v6785 = vpop.f32.mrb[0].mxu0
    %v6786 = vpop.f32.mrb[0].mxu0
    %v6787 = vpop.f32.mrb[0].mxu0
    %6788 = vdwg.mxu0
    %v6789 = vmax.f32 %v6784, 0.0
    %6790 = vst [vmem:[%s9] sm:$0xff] %v6789
    // Predicated region
    $region70: #{net_forward.1} parent=1 // pred_check
      _
    $region71: #{net_forward.1} parent=1 // pred_check_branch
      %6792 = sbr.rel (0) target = $region73
    $region72: #{net_forward.1} parent=1 // pred_region
      _
    $region73: #{net_forward.1} parent=1 // pred_fallthru
      _
    // Predicated region
    $region74: #{net_forward.1} parent=1 // pred_check
      _
    $region75: #{net_forward.1} parent=1 // pred_check_branch
      %6794 = sbr.rel (0) target = $region77
    $region76: #{net_forward.1} parent=1 // pred_region
      _
    $region77: #{net_forward.1} parent=1 // pred_fallthru
      _
    %6795 = vsyncpa [#allocation3], 1
    %6796 = vsyncpa [#allocation5], 1
    %6797 = vsyncpa [#allocation8], 1
    %6798 = vsyncpa [#allocation11], 1
    %6799 = vsyncpa [#allocation14], 1

</llo_original>
